<compile_context>
chip_gen: v7x
topology: tpu7x:2x2x1
jax: 0.10.0
libtpu: 0.0.40
codegen_flags: <defaults>
</compile_context>

<pallas_src>
import functools

import jax
import jax.numpy as jnp
from jax.experimental import pallas as pl
from jax.experimental.pallas import tpu as pltpu


# --------------------------------------------------------------------------- #
# Kernel
# --------------------------------------------------------------------------- #
def mmoe_kernel(x_ref,
                w1_ref, b1_ref,          # fused layer-1 (experts || gates)
                we2_ref, be2_ref,        # expert layer-2 (per expert)
                wg2_ref, bg2_ref,        # gate  layer-2 (block-diagonal)
                out_ref,
                acc_ref,                 # f32 VMEM scratch [TB, T*H2]
                *, num_experts, num_tasks, H1, H2, G1):
    """One batch tile: fused layer-1, block-diag gate logits, softmax mixture."""
    E, T = num_experts, num_tasks
    EH = E * H1

    # In-kernel cast to the matmul dtype (bf16); f32 accumulation throughout.
    x = x_ref[...].astype(w1_ref.dtype)                       # [TB, D]

    # ---- single fused layer-1 matmul: experts (E*H1 cols) || gates (T*G1 cols)
    h = jnp.dot(x, w1_ref[...], preferred_element_type=jnp.float32) + b1_ref[...]
    h = jnp.maximum(h, 0.0)                                    # [TB, E*H1 + T*G1]
    h1 = h[:, :EH].astype(x.dtype)                             # [TB, E*H1]  (128-aligned slice)
    g = h[:, EH:].astype(x.dtype)                              # [TB, T*G1]

    # ---- gate logits: one block-diagonal matmul producing all tasks at once
    logits = jnp.dot(g, wg2_ref[...], preferred_element_type=jnp.float32) + bg2_ref[...]
    probs = []                                                 # [TB, T*E]
    for t in range(T):
        lt = logits[:, t * E:(t + 1) * E]                      # [TB, E]
        m = jnp.max(lt, axis=-1, keepdims=True)
        p = jnp.exp(lt - m)
        inv = pl.reciprocal(jnp.sum(p, axis=-1, keepdims=True), approx=True)
        probs.append(p * inv)

    # ---- experts layer-2 (minimal-FLOP per-expert loop) mixed straight into a
    #      lane-dense f32 accumulator [TB, T*H2]
    acc_ref[...] = jnp.zeros_like(acc_ref)
    for e in range(E):
        he = h1[:, e * H1:(e + 1) * H1]                        # [TB, H1]
        oe = jnp.dot(he, we2_ref[e], preferred_element_type=jnp.float32) + be2_ref[e]
        oe = jnp.maximum(oe, 0.0)                              # [TB, H2] f32
        for t in range(T):
            acc_ref[:, t * H2:(t + 1) * H2] += probs[t][:, e:e + 1] * oe

    out_ref[...] = acc_ref[...].astype(out_ref.dtype)


# --------------------------------------------------------------------------- #
# One-time parameter packing (call once at init, NOT per forward)
# --------------------------------------------------------------------------- #
def prepare_mmoe_params(params, mm_dtype=jnp.bfloat16):
    """Pack raw per-expert/per-task weights into the fused kernel layout."""
    we1, be1, we2, be2, wg1, bg1, wg2, bg2 = params
    E, D, H1 = we1.shape
    T, _, G1 = wg1.shape
    H2 = we2.shape[-1]

    # Fused layer-1: column block e is expert e, then column block t is gate t.
    # (For other configs keep E*H1, T*G1 and T*H2 multiples of 128 — zero-pad
    #  columns here if needed so stores stay unmasked / lane-dense.)
    we1_cols = jnp.transpose(we1, (1, 0, 2)).reshape(D, E * H1)
    wg1_cols = jnp.transpose(wg1, (1, 0, 2)).reshape(D, T * G1)
    w1f = jnp.concatenate([we1_cols, wg1_cols], axis=1).astype(mm_dtype)
    b1f = jnp.concatenate([be1.reshape(1, E * H1),
                           bg1.reshape(1, T * G1)], axis=1).astype(jnp.float32)

    # Block-diagonal gate layer-2: [T*G1, T*E].
    wg2bd = jnp.zeros((T * G1, T * E), jnp.float32)
    for t in range(T):
        wg2bd = wg2bd.at[t * G1:(t + 1) * G1, t * E:(t + 1) * E].set(wg2[t])
    wg2bd = wg2bd.astype(mm_dtype)
    bg2f = bg2.reshape(1, T * E).astype(jnp.float32)

    packed = dict(w1f=w1f, b1f=b1f,
                  we2=we2.astype(mm_dtype), be2=be2.astype(jnp.float32),
                  wg2=wg2bd, bg2=bg2f)
    dims = dict(num_experts=E, num_tasks=T, input_dim=D, H1=H1, H2=H2, G1=G1)
    return packed, dims


# --------------------------------------------------------------------------- #
# Forward wrapper (hot path: just the pallas_call)
# --------------------------------------------------------------------------- #
def mmoe_forward(x, packed, dims, *, tile_b=None, out_dtype=jnp.bfloat16):
    """x: [B, D] float32.  Returns [B, T, H2] (out_dtype) mixture outputs."""
    E, T = dims["num_experts"], dims["num_tasks"]
    H1, H2, G1 = dims["H1"], dims["H2"], dims["G1"]
    B, D = x.shape
    N1 = E * H1 + T * G1

    if tile_b is None:
        # Big tiles for DMA efficiency, but keep grid >= 2 so v7x's two
        # TensorCores both get work (neutral on single-TC v5e/v6e).
        tile_b = B
        for cand in (512, 256, 128):
            if B % cand == 0 and B // cand >= 2:
                tile_b = cand
                break
    assert B % tile_b == 0, "batch must be a multiple of tile_b (no tail tile)"

    kernel = functools.partial(mmoe_kernel, num_experts=E, num_tasks=T,
                               H1=H1, H2=H2, G1=G1)

    out = pl.pallas_call(
        kernel,
        out_shape=jax.ShapeDtypeStruct((B, T * H2), out_dtype),
        grid=(B // tile_b,),
        in_specs=[
            pl.BlockSpec((tile_b, D), lambda i: (i, 0)),       # x batch tile (f32)
            pl.BlockSpec((D, N1), lambda i: (0, 0)),           # fused layer-1 W
            pl.BlockSpec((1, N1), lambda i: (0, 0)),           # fused layer-1 b
            pl.BlockSpec((E, H1, H2), lambda i: (0, 0, 0)),    # expert layer-2 W
            pl.BlockSpec((E, H2), lambda i: (0, 0)),           # expert layer-2 b
            pl.BlockSpec((T * G1, T * E), lambda i: (0, 0)),   # gate layer-2 W (blockdiag)
            pl.BlockSpec((1, T * E), lambda i: (0, 0)),        # gate layer-2 b
        ],
        out_specs=pl.BlockSpec((tile_b, T * H2), lambda i: (i, 0)),
        scratch_shapes=[pltpu.VMEM((tile_b, T * H2), jnp.float32)],
        compiler_params=pltpu.CompilerParams(
            dimension_semantics=("parallel",),                 # batch axis independent
            vmem_limit_bytes=32 * 1024 * 1024,
        ),
    )(x, packed["w1f"], packed["b1f"], packed["we2"], packed["be2"],
      packed["wg2"], packed["bg2"])

    # Free reshape; consumers index task t as out[:, t] (no extra HBM pass).
    return out.reshape(B, T, H2)


# --------------------------------------------------------------------------- #
# References
# --------------------------------------------------------------------------- #
def mmoe_reference(x, params, *, num_experts, num_tasks):
    """Pure-f32 reference mirroring the PyTorch forward."""
    we1, be1, we2, be2, wg1, bg1, wg2, bg2 = params
    experts = []
    for e in range(num_experts):
        h = jnp.maximum(x @ we1[e] + be1[e], 0.0)
        h = jnp.maximum(h @ we2[e] + be2[e], 0.0)
        experts.append(h)
    experts = jnp.stack(experts, axis=1)                       # [B, E, H2]
    outs = []
    for t in range(num_tasks):
        g = jnp.maximum(x @ wg1[t] + bg1[t], 0.0)
        logits = g @ wg2[t] + bg2[t]
        probs = jax.nn.softmax(logits, axis=-1)                # [B, E]
        outs.append(jnp.sum(probs[:, :, None] * experts, axis=1))
    return outs


def mmoe_reference_bf16(x, params, *, num_experts, num_tasks):
    """Reference emulating the kernel's bf16 matmul inputs (f32 accumulation)."""
    bf = jnp.bfloat16
    we1, be1, we2, be2, wg1, bg1, wg2, bg2 = params
    xq = x.astype(bf)
    experts = []
    for e in range(num_experts):
        h = jnp.maximum(jnp.dot(xq, we1[e].astype(bf),
                                preferred_element_type=jnp.float32) + be1[e], 0.0)
        h = h.astype(bf)
        o = jnp.maximum(jnp.dot(h, we2[e].astype(bf),
                                preferred_element_type=jnp.float32) + be2[e], 0.0)
        experts.append(o)
    experts = jnp.stack(experts, axis=1)
    outs = []
    for t in range(num_tasks):
        g = jnp.maximum(jnp.dot(xq, wg1[t].astype(bf),
                                preferred_element_type=jnp.float32) + bg1[t], 0.0)
        g = g.astype(bf)
        logits = jnp.dot(g, wg2[t].astype(bf),
                         preferred_element_type=jnp.float32) + bg2[t]
        probs = jax.nn.softmax(logits, axis=-1)
        outs.append(jnp.sum(probs[:, :, None] * experts, axis=1))
    return outs


# --------------------------------------------------------------------------- #
if __name__ == "__main__":
    # MXU-friendly config: E*H1=512, T*G1=128, T*H2=128 all lane-aligned.
    num_experts, num_tasks = 4, 2
    B, D = 512, 128
    H1, H2 = 128, 64          # expert_hidden_units = [128, 64]
    G1 = 64                   # gate_hidden_units   = [64]

    key = jax.random.PRNGKey(0)
    ks = jax.random.split(key, 9)
    s = 0.1
    x = jax.random.normal(ks[0], (B, D), jnp.float32)
    params = (
        s * jax.random.normal(ks[1], (num_experts, D, H1), jnp.float32),
        s * jax.random.normal(ks[2], (num_experts, H1), jnp.float32),
        s * jax.random.normal(ks[3], (num_experts, H1, H2), jnp.float32),
        s * jax.random.normal(ks[4], (num_experts, H2), jnp.float32),
        s * jax.random.normal(ks[5], (num_tasks, D, G1), jnp.float32),
        s * jax.random.normal(ks[6], (num_tasks, G1), jnp.float32),
        s * jax.random.normal(ks[7], (num_tasks, G1, num_experts), jnp.float32),
        s * jax.random.normal(ks[8], (num_tasks, num_experts), jnp.float32),
    )

    # One-time prep (would live at parameter-init time in a real model).
    packed, dims = prepare_mmoe_params(params)
    packed = jax.tree_util.tree_map(jax.block_until_ready, packed)

    # Hot path: only the pallas_call. tile_b=256 -> grid=2 (both v7x TCs busy).
    fwd = jax.jit(lambda xx, pp: mmoe_forward(xx, pp, dims, tile_b=256,
                                              out_dtype=jnp.bfloat16))
    out = jax.block_until_ready(fwd(x, packed))                # [B, T, H2] bf16
    assert out.shape == (B, num_tasks, H2)
    out_f32 = out.astype(jnp.float32)

    refs_bf16 = mmoe_reference_bf16(x, params, num_experts=num_experts,
                                    num_tasks=num_tasks)
    refs_f32 = mmoe_reference(x, params, num_experts=num_experts,
                              num_tasks=num_tasks)
    for t in range(num_tasks):
        o = out_f32[:, t]
        # Tight check vs bf16-emulating reference (approx-reciprocal + bf16 output).
        d1 = float(jnp.max(jnp.abs(o - refs_bf16[t])))
        assert jnp.allclose(o, refs_bf16[t], atol=5e-2, rtol=5e-2), d1
        # Loose sanity check vs pure-f32 reference.
        d2 = float(jnp.max(jnp.abs(o - refs_f32[t])))
        assert jnp.allclose(o, refs_f32[t], atol=1.5e-1, rtol=1.5e-1), d2

    print("KERNEL_OK")
</pallas_src>

<mosaic_0001>
module attributes {stable_mosaic.version = 11 : i64} {
  func.func @mmoe_kernel(%arg0: i32, %arg1: memref<256x128xf32, #tpu.memory_space<vmem>>, %arg2: memref<128x640xbf16, #tpu.memory_space<vmem>>, %arg3: memref<1x640xf32, #tpu.memory_space<vmem>>, %arg4: memref<4x128x64xbf16, #tpu.memory_space<vmem>>, %arg5: memref<4x64xf32, #tpu.memory_space<vmem>>, %arg6: memref<128x8xbf16, #tpu.memory_space<vmem>>, %arg7: memref<1x8xf32, #tpu.memory_space<vmem>>, %arg8: memref<256x128xbf16, #tpu.memory_space<vmem>>, %arg9: memref<256x128xf32, #tpu.memory_space<vmem>>) attributes {dimension_semantics = [#tpu.dimension_semantics<parallel>], iteration_bounds = array<i64: 2>, scalar_prefetch = 0 : i64, scratch_operands = 1 : i64, tpu.core_type = #tpu.core_type<tc>, window_params = [{transform_indices = @transform_0, window_bounds = array<i64: 256, 128>}, {pipeline_mode = #tpu.pipeline_mode<synchronous>, transform_indices = @transform_1, window_bounds = array<i64: 128, 640>}, {pipeline_mode = #tpu.pipeline_mode<synchronous>, transform_indices = @transform_2, window_bounds = array<i64: 1, 640>}, {pipeline_mode = #tpu.pipeline_mode<synchronous>, transform_indices = @transform_3, window_bounds = array<i64: 4, 128, 64>}, {pipeline_mode = #tpu.pipeline_mode<synchronous>, transform_indices = @transform_4, window_bounds = array<i64: 4, 64>}, {pipeline_mode = #tpu.pipeline_mode<synchronous>, transform_indices = @transform_5, window_bounds = array<i64: 128, 8>}, {pipeline_mode = #tpu.pipeline_mode<synchronous>, transform_indices = @transform_6, window_bounds = array<i64: 1, 8>}, {transform_indices = @transform_7, window_bounds = array<i64: 256, 128>}]} {
    %c0 = arith.constant 0 : index
    %c0_0 = arith.constant 0 : index
    %0 = vector.load %arg1[%c0, %c0_0] : memref<256x128xf32, #tpu.memory_space<vmem>>, vector<256x128xf32>
    %1 = arith.truncf %0 : vector<256x128xf32> to vector<256x128xbf16>
    %c0_1 = arith.constant 0 : index
    %c0_2 = arith.constant 0 : index
    %2 = vector.load %arg2[%c0_1, %c0_2] : memref<128x640xbf16, #tpu.memory_space<vmem>>, vector<128x640xbf16>
    %cst = arith.constant dense<0.000000e+00> : vector<256x640xf32>
    %3 = tpu.matmul %1, %2, %cst {dimension_numbers = #tpu.dot_dimension_numbers<[1], [0], [0], [1], [0, 0, 1, 1], [], []>} : vector<256x128xbf16>, vector<128x640xbf16>, vector<256x640xf32> -> vector<256x640xf32>
    %c0_3 = arith.constant 0 : index
    %c0_4 = arith.constant 0 : index
    %4 = vector.load %arg3[%c0_3, %c0_4] : memref<1x640xf32, #tpu.memory_space<vmem>>, vector<1x640xf32>
    %5 = vector.broadcast %4 : vector<1x640xf32> to vector<256x640xf32>
    %6 = arith.addf %3, %5 : vector<256x640xf32>
    %cst_5 = arith.constant 0.000000e+00 : f32
    %7 = vector.broadcast %cst_5 : f32 to vector<256x640xf32>
    %8 = arith.maximumf %6, %7 : vector<256x640xf32>
    %9 = vector.extract_strided_slice %8 {offsets = [0, 0], sizes = [256, 512], strides = [1, 1]} : vector<256x640xf32> to vector<256x512xf32>
    %10 = arith.truncf %9 : vector<256x512xf32> to vector<256x512xbf16>
    %11 = vector.extract_strided_slice %8 {offsets = [0, 512], sizes = [256, 128], strides = [1, 1]} : vector<256x640xf32> to vector<256x128xf32>
    %12 = arith.truncf %11 : vector<256x128xf32> to vector<256x128xbf16>
    %c0_6 = arith.constant 0 : index
    %c0_7 = arith.constant 0 : index
    %13 = vector.load %arg6[%c0_6, %c0_7] : memref<128x8xbf16, #tpu.memory_space<vmem>>, vector<128x8xbf16>
    %cst_8 = arith.constant dense<0.000000e+00> : vector<256x8xf32>
    %14 = tpu.matmul %12, %13, %cst_8 {dimension_numbers = #tpu.dot_dimension_numbers<[1], [0], [0], [1], [0, 0, 1, 1], [], []>} : vector<256x128xbf16>, vector<128x8xbf16>, vector<256x8xf32> -> vector<256x8xf32>
    %c0_9 = arith.constant 0 : index
    %c0_10 = arith.constant 0 : index
    %15 = vector.load %arg7[%c0_9, %c0_10] : memref<1x8xf32, #tpu.memory_space<vmem>>, vector<1x8xf32>
    %16 = vector.broadcast %15 : vector<1x8xf32> to vector<256x8xf32>
    %17 = arith.addf %14, %16 : vector<256x8xf32>
    %18 = vector.extract_strided_slice %17 {offsets = [0, 0], sizes = [256, 4], strides = [1, 1]} : vector<256x8xf32> to vector<256x4xf32>
    %cst_11 = arith.constant dense<0xFF800000> : vector<256xf32>
    %19 = vector.multi_reduction <maximumf>, %18, %cst_11 [1] : vector<256x4xf32> to vector<256xf32>
    %20 = vector.shape_cast %19 : vector<256xf32> to vector<256x1xf32>
    %21 = vector.broadcast %20 : vector<256x1xf32> to vector<256x4xf32>
    %22 = arith.subf %18, %21 : vector<256x4xf32>
    %23 = math.exp %22 : vector<256x4xf32>
    %cst_12 = arith.constant dense<0.000000e+00> : vector<256xf32>
    %24 = vector.multi_reduction <add>, %23, %cst_12 [1] : vector<256x4xf32> to vector<256xf32>
    %25 = vector.shape_cast %24 : vector<256xf32> to vector<256x1xf32>
    %26 = tpu.reciprocal %25 {approx = true} : vector<256x1xf32> -> vector<256x1xf32>
    %27 = vector.broadcast %26 : vector<256x1xf32> to vector<256x4xf32>
    %28 = arith.mulf %23, %27 : vector<256x4xf32>
    %29 = vector.extract_strided_slice %17 {offsets = [0, 4], sizes = [256, 4], strides = [1, 1]} : vector<256x8xf32> to vector<256x4xf32>
    %cst_13 = arith.constant dense<0xFF800000> : vector<256xf32>
    %30 = vector.multi_reduction <maximumf>, %29, %cst_13 [1] : vector<256x4xf32> to vector<256xf32>
    %31 = vector.shape_cast %30 : vector<256xf32> to vector<256x1xf32>
    %32 = vector.broadcast %31 : vector<256x1xf32> to vector<256x4xf32>
    %33 = arith.subf %29, %32 : vector<256x4xf32>
    %34 = math.exp %33 : vector<256x4xf32>
    %cst_14 = arith.constant dense<0.000000e+00> : vector<256xf32>
    %35 = vector.multi_reduction <add>, %34, %cst_14 [1] : vector<256x4xf32> to vector<256xf32>
    %36 = vector.shape_cast %35 : vector<256xf32> to vector<256x1xf32>
    %37 = tpu.reciprocal %36 {approx = true} : vector<256x1xf32> -> vector<256x1xf32>
    %38 = vector.broadcast %37 : vector<256x1xf32> to vector<256x4xf32>
    %39 = arith.mulf %34, %38 : vector<256x4xf32>
    %cst_15 = arith.constant 0.000000e+00 : f32
    %40 = vector.broadcast %cst_15 : f32 to vector<256x128xf32>
    %c0_16 = arith.constant 0 : index
    %c0_17 = arith.constant 0 : index
    %41 = vector.load %arg9[%c0_16, %c0_17] : memref<256x128xf32, #tpu.memory_space<vmem>>, vector<256x128xf32>
    tpu.vector_store %arg9[%c0_16, %c0_17], %40 {strides = array<i32>} : memref<256x128xf32, #tpu.memory_space<vmem>>, vector<256x128xf32>,
    %42 = vector.extract_strided_slice %10 {offsets = [0, 0], sizes = [256, 128], strides = [1, 1]} : vector<256x512xbf16> to vector<256x128xbf16>
    %c0_18 = arith.constant 0 : index
    %c0_19 = arith.constant 0 : index
    %c0_20 = arith.constant 0 : index
    %43 = vector.load %arg4[%c0_18, %c0_19, %c0_20] : memref<4x128x64xbf16, #tpu.memory_space<vmem>>, vector<1x128x64xbf16>
    %44 = vector.shape_cast %43 : vector<1x128x64xbf16> to vector<128x64xbf16>
    %cst_21 = arith.constant dense<0.000000e+00> : vector<256x64xf32>
    %45 = tpu.matmul %42, %44, %cst_21 {dimension_numbers = #tpu.dot_dimension_numbers<[1], [0], [0], [1], [0, 0, 1, 1], [], []>} : vector<256x128xbf16>, vector<128x64xbf16>, vector<256x64xf32> -> vector<256x64xf32>
    %c0_22 = arith.constant 0 : index
    %c0_23 = arith.constant 0 : index
    %46 = vector.load %arg5[%c0_22, %c0_23] : memref<4x64xf32, #tpu.memory_space<vmem>>, vector<1x64xf32>
    %47 = vector.shape_cast %46 : vector<1x64xf32> to vector<64xf32>
    %48 = vector.shape_cast %47 : vector<64xf32> to vector<1x64xf32>
    %49 = vector.broadcast %48 : vector<1x64xf32> to vector<256x64xf32>
    %50 = arith.addf %45, %49 : vector<256x64xf32>
    %cst_24 = arith.constant 0.000000e+00 : f32
    %51 = vector.broadcast %cst_24 : f32 to vector<256x64xf32>
    %52 = arith.maximumf %50, %51 : vector<256x64xf32>
    %c0_25 = arith.constant 0 : index
    %c0_26 = arith.constant 0 : index
    %53 = vector.load %arg9[%c0_25, %c0_26] : memref<256x128xf32, #tpu.memory_space<vmem>>, vector<256x64xf32>
    %54 = vector.extract_strided_slice %28 {offsets = [0, 0], sizes = [256, 1], strides = [1, 1]} : vector<256x4xf32> to vector<256x1xf32>
    %55 = vector.broadcast %54 : vector<256x1xf32> to vector<256x64xf32>
    %56 = arith.mulf %55, %52 : vector<256x64xf32>
    %57 = arith.addf %53, %56 : vector<256x64xf32>
    %c0_27 = arith.constant 0 : index
    %c0_28 = arith.constant 0 : index
    %58 = vector.load %arg9[%c0_27, %c0_28] : memref<256x128xf32, #tpu.memory_space<vmem>>, vector<256x64xf32>
    tpu.vector_store %arg9[%c0_27, %c0_28], %57 {strides = array<i32>} : memref<256x128xf32, #tpu.memory_space<vmem>>, vector<256x64xf32>,
    %c0_29 = arith.constant 0 : index
    %c64 = arith.constant 64 : index
    %59 = vector.load %arg9[%c0_29, %c64] : memref<256x128xf32, #tpu.memory_space<vmem>>, vector<256x64xf32>
    %60 = vector.extract_strided_slice %39 {offsets = [0, 0], sizes = [256, 1], strides = [1, 1]} : vector<256x4xf32> to vector<256x1xf32>
    %61 = vector.broadcast %60 : vector<256x1xf32> to vector<256x64xf32>
    %62 = arith.mulf %61, %52 : vector<256x64xf32>
    %63 = arith.addf %59, %62 : vector<256x64xf32>
    %c0_30 = arith.constant 0 : index
    %c64_31 = arith.constant 64 : index
    %64 = vector.load %arg9[%c0_30, %c64_31] : memref<256x128xf32, #tpu.memory_space<vmem>>, vector<256x64xf32>
    tpu.vector_store %arg9[%c0_30, %c64_31], %63 {strides = array<i32>} : memref<256x128xf32, #tpu.memory_space<vmem>>, vector<256x64xf32>,
    %65 = vector.extract_strided_slice %10 {offsets = [0, 128], sizes = [256, 128], strides = [1, 1]} : vector<256x512xbf16> to vector<256x128xbf16>
    %c1 = arith.constant 1 : index
    %c0_32 = arith.constant 0 : index
    %c0_33 = arith.constant 0 : index
    %66 = vector.load %arg4[%c1, %c0_32, %c0_33] : memref<4x128x64xbf16, #tpu.memory_space<vmem>>, vector<1x128x64xbf16>
    %67 = vector.shape_cast %66 : vector<1x128x64xbf16> to vector<128x64xbf16>
    %cst_34 = arith.constant dense<0.000000e+00> : vector<256x64xf32>
    %68 = tpu.matmul %65, %67, %cst_34 {dimension_numbers = #tpu.dot_dimension_numbers<[1], [0], [0], [1], [0, 0, 1, 1], [], []>} : vector<256x128xbf16>, vector<128x64xbf16>, vector<256x64xf32> -> vector<256x64xf32>
    %c1_35 = arith.constant 1 : index
    %c0_36 = arith.constant 0 : index
    %69 = vector.load %arg5[%c1_35, %c0_36] : memref<4x64xf32, #tpu.memory_space<vmem>>, vector<1x64xf32>
    %70 = vector.shape_cast %69 : vector<1x64xf32> to vector<64xf32>
    %71 = vector.shape_cast %70 : vector<64xf32> to vector<1x64xf32>
    %72 = vector.broadcast %71 : vector<1x64xf32> to vector<256x64xf32>
    %73 = arith.addf %68, %72 : vector<256x64xf32>
    %cst_37 = arith.constant 0.000000e+00 : f32
    %74 = vector.broadcast %cst_37 : f32 to vector<256x64xf32>
    %75 = arith.maximumf %73, %74 : vector<256x64xf32>
    %c0_38 = arith.constant 0 : index
    %c0_39 = arith.constant 0 : index
    %76 = vector.load %arg9[%c0_38, %c0_39] : memref<256x128xf32, #tpu.memory_space<vmem>>, vector<256x64xf32>
    %77 = vector.extract_strided_slice %28 {offsets = [0, 1], sizes = [256, 1], strides = [1, 1]} : vector<256x4xf32> to vector<256x1xf32>
    %78 = vector.broadcast %77 : vector<256x1xf32> to vector<256x64xf32>
    %79 = arith.mulf %78, %75 : vector<256x64xf32>
    %80 = arith.addf %76, %79 : vector<256x64xf32>
    %c0_40 = arith.constant 0 : index
    %c0_41 = arith.constant 0 : index
    %81 = vector.load %arg9[%c0_40, %c0_41] : memref<256x128xf32, #tpu.memory_space<vmem>>, vector<256x64xf32>
    tpu.vector_store %arg9[%c0_40, %c0_41], %80 {strides = array<i32>} : memref<256x128xf32, #tpu.memory_space<vmem>>, vector<256x64xf32>,
    %c0_42 = arith.constant 0 : index
    %c64_43 = arith.constant 64 : index
    %82 = vector.load %arg9[%c0_42, %c64_43] : memref<256x128xf32, #tpu.memory_space<vmem>>, vector<256x64xf32>
    %83 = vector.extract_strided_slice %39 {offsets = [0, 1], sizes = [256, 1], strides = [1, 1]} : vector<256x4xf32> to vector<256x1xf32>
    %84 = vector.broadcast %83 : vector<256x1xf32> to vector<256x64xf32>
    %85 = arith.mulf %84, %75 : vector<256x64xf32>
    %86 = arith.addf %82, %85 : vector<256x64xf32>
    %c0_44 = arith.constant 0 : index
    %c64_45 = arith.constant 64 : index
    %87 = vector.load %arg9[%c0_44, %c64_45] : memref<256x128xf32, #tpu.memory_space<vmem>>, vector<256x64xf32>
    tpu.vector_store %arg9[%c0_44, %c64_45], %86 {strides = array<i32>} : memref<256x128xf32, #tpu.memory_space<vmem>>, vector<256x64xf32>,
    %88 = vector.extract_strided_slice %10 {offsets = [0, 256], sizes = [256, 128], strides = [1, 1]} : vector<256x512xbf16> to vector<256x128xbf16>
    %c2 = arith.constant 2 : index
    %c0_46 = arith.constant 0 : index
    %c0_47 = arith.constant 0 : index
    %89 = vector.load %arg4[%c2, %c0_46, %c0_47] : memref<4x128x64xbf16, #tpu.memory_space<vmem>>, vector<1x128x64xbf16>
    %90 = vector.shape_cast %89 : vector<1x128x64xbf16> to vector<128x64xbf16>
    %cst_48 = arith.constant dense<0.000000e+00> : vector<256x64xf32>
    %91 = tpu.matmul %88, %90, %cst_48 {dimension_numbers = #tpu.dot_dimension_numbers<[1], [0], [0], [1], [0, 0, 1, 1], [], []>} : vector<256x128xbf16>, vector<128x64xbf16>, vector<256x64xf32> -> vector<256x64xf32>
    %c2_49 = arith.constant 2 : index
    %c0_50 = arith.constant 0 : index
    %92 = vector.load %arg5[%c2_49, %c0_50] : memref<4x64xf32, #tpu.memory_space<vmem>>, vector<1x64xf32>
    %93 = vector.shape_cast %92 : vector<1x64xf32> to vector<64xf32>
    %94 = vector.shape_cast %93 : vector<64xf32> to vector<1x64xf32>
    %95 = vector.broadcast %94 : vector<1x64xf32> to vector<256x64xf32>
    %96 = arith.addf %91, %95 : vector<256x64xf32>
    %cst_51 = arith.constant 0.000000e+00 : f32
    %97 = vector.broadcast %cst_51 : f32 to vector<256x64xf32>
    %98 = arith.maximumf %96, %97 : vector<256x64xf32>
    %c0_52 = arith.constant 0 : index
    %c0_53 = arith.constant 0 : index
    %99 = vector.load %arg9[%c0_52, %c0_53] : memref<256x128xf32, #tpu.memory_space<vmem>>, vector<256x64xf32>
    %100 = vector.extract_strided_slice %28 {offsets = [0, 2], sizes = [256, 1], strides = [1, 1]} : vector<256x4xf32> to vector<256x1xf32>
    %101 = vector.broadcast %100 : vector<256x1xf32> to vector<256x64xf32>
    %102 = arith.mulf %101, %98 : vector<256x64xf32>
    %103 = arith.addf %99, %102 : vector<256x64xf32>
    %c0_54 = arith.constant 0 : index
    %c0_55 = arith.constant 0 : index
    %104 = vector.load %arg9[%c0_54, %c0_55] : memref<256x128xf32, #tpu.memory_space<vmem>>, vector<256x64xf32>
    tpu.vector_store %arg9[%c0_54, %c0_55], %103 {strides = array<i32>} : memref<256x128xf32, #tpu.memory_space<vmem>>, vector<256x64xf32>,
    %c0_56 = arith.constant 0 : index
    %c64_57 = arith.constant 64 : index
    %105 = vector.load %arg9[%c0_56, %c64_57] : memref<256x128xf32, #tpu.memory_space<vmem>>, vector<256x64xf32>
    %106 = vector.extract_strided_slice %39 {offsets = [0, 2], sizes = [256, 1], strides = [1, 1]} : vector<256x4xf32> to vector<256x1xf32>
    %107 = vector.broadcast %106 : vector<256x1xf32> to vector<256x64xf32>
    %108 = arith.mulf %107, %98 : vector<256x64xf32>
    %109 = arith.addf %105, %108 : vector<256x64xf32>
    %c0_58 = arith.constant 0 : index
    %c64_59 = arith.constant 64 : index
    %110 = vector.load %arg9[%c0_58, %c64_59] : memref<256x128xf32, #tpu.memory_space<vmem>>, vector<256x64xf32>
    tpu.vector_store %arg9[%c0_58, %c64_59], %109 {strides = array<i32>} : memref<256x128xf32, #tpu.memory_space<vmem>>, vector<256x64xf32>,
    %111 = vector.extract_strided_slice %10 {offsets = [0, 384], sizes = [256, 128], strides = [1, 1]} : vector<256x512xbf16> to vector<256x128xbf16>
    %c3 = arith.constant 3 : index
    %c0_60 = arith.constant 0 : index
    %c0_61 = arith.constant 0 : index
    %112 = vector.load %arg4[%c3, %c0_60, %c0_61] : memref<4x128x64xbf16, #tpu.memory_space<vmem>>, vector<1x128x64xbf16>
    %113 = vector.shape_cast %112 : vector<1x128x64xbf16> to vector<128x64xbf16>
    %cst_62 = arith.constant dense<0.000000e+00> : vector<256x64xf32>
    %114 = tpu.matmul %111, %113, %cst_62 {dimension_numbers = #tpu.dot_dimension_numbers<[1], [0], [0], [1], [0, 0, 1, 1], [], []>} : vector<256x128xbf16>, vector<128x64xbf16>, vector<256x64xf32> -> vector<256x64xf32>
    %c3_63 = arith.constant 3 : index
    %c0_64 = arith.constant 0 : index
    %115 = vector.load %arg5[%c3_63, %c0_64] : memref<4x64xf32, #tpu.memory_space<vmem>>, vector<1x64xf32>
    %116 = vector.shape_cast %115 : vector<1x64xf32> to vector<64xf32>
    %117 = vector.shape_cast %116 : vector<64xf32> to vector<1x64xf32>
    %118 = vector.broadcast %117 : vector<1x64xf32> to vector<256x64xf32>
    %119 = arith.addf %114, %118 : vector<256x64xf32>
    %cst_65 = arith.constant 0.000000e+00 : f32
    %120 = vector.broadcast %cst_65 : f32 to vector<256x64xf32>
    %121 = arith.maximumf %119, %120 : vector<256x64xf32>
    %c0_66 = arith.constant 0 : index
    %c0_67 = arith.constant 0 : index
    %122 = vector.load %arg9[%c0_66, %c0_67] : memref<256x128xf32, #tpu.memory_space<vmem>>, vector<256x64xf32>
    %123 = vector.extract_strided_slice %28 {offsets = [0, 3], sizes = [256, 1], strides = [1, 1]} : vector<256x4xf32> to vector<256x1xf32>
    %124 = vector.broadcast %123 : vector<256x1xf32> to vector<256x64xf32>
    %125 = arith.mulf %124, %121 : vector<256x64xf32>
    %126 = arith.addf %122, %125 : vector<256x64xf32>
    %c0_68 = arith.constant 0 : index
    %c0_69 = arith.constant 0 : index
    %127 = vector.load %arg9[%c0_68, %c0_69] : memref<256x128xf32, #tpu.memory_space<vmem>>, vector<256x64xf32>
    tpu.vector_store %arg9[%c0_68, %c0_69], %126 {strides = array<i32>} : memref<256x128xf32, #tpu.memory_space<vmem>>, vector<256x64xf32>,
    %c0_70 = arith.constant 0 : index
    %c64_71 = arith.constant 64 : index
    %128 = vector.load %arg9[%c0_70, %c64_71] : memref<256x128xf32, #tpu.memory_space<vmem>>, vector<256x64xf32>
    %129 = vector.extract_strided_slice %39 {offsets = [0, 3], sizes = [256, 1], strides = [1, 1]} : vector<256x4xf32> to vector<256x1xf32>
    %130 = vector.broadcast %129 : vector<256x1xf32> to vector<256x64xf32>
    %131 = arith.mulf %130, %121 : vector<256x64xf32>
    %132 = arith.addf %128, %131 : vector<256x64xf32>
    %c0_72 = arith.constant 0 : index
    %c64_73 = arith.constant 64 : index
    %133 = vector.load %arg9[%c0_72, %c64_73] : memref<256x128xf32, #tpu.memory_space<vmem>>, vector<256x64xf32>
    tpu.vector_store %arg9[%c0_72, %c64_73], %132 {strides = array<i32>} : memref<256x128xf32, #tpu.memory_space<vmem>>, vector<256x64xf32>,
    %c0_74 = arith.constant 0 : index
    %c0_75 = arith.constant 0 : index
    %134 = vector.load %arg9[%c0_74, %c0_75] : memref<256x128xf32, #tpu.memory_space<vmem>>, vector<256x128xf32>
    %135 = arith.truncf %134 : vector<256x128xf32> to vector<256x128xbf16>
    %c0_76 = arith.constant 0 : index
    %c0_77 = arith.constant 0 : index
    %136 = vector.load %arg8[%c0_76, %c0_77] : memref<256x128xbf16, #tpu.memory_space<vmem>>, vector<256x128xbf16>
    tpu.vector_store %arg8[%c0_76, %c0_77], %135 {strides = array<i32>} : memref<256x128xbf16, #tpu.memory_space<vmem>>, vector<256x128xbf16>,
    return
  }
  func.func @transform_0(%arg0: i32) -> (i32, i32) {
    %c0_i32 = arith.constant 0 : i32
    %c0_i32_0 = arith.constant 0 : i32
    return %arg0, %c0_i32 : i32, i32
  }
  func.func @transform_1(%arg0: i32) -> (i32, i32) {
    %c0_i32 = arith.constant 0 : i32
    %c0_i32_0 = arith.constant 0 : i32
    %c0_i32_1 = arith.constant 0 : i32
    return %c0_i32, %c0_i32_0 : i32, i32
  }
  func.func @transform_2(%arg0: i32) -> (i32, i32) {
    %c0_i32 = arith.constant 0 : i32
    %c0_i32_0 = arith.constant 0 : i32
    %c0_i32_1 = arith.constant 0 : i32
    return %c0_i32, %c0_i32_0 : i32, i32
  }
  func.func @transform_3(%arg0: i32) -> (i32, i32, i32) {
    %c0_i32 = arith.constant 0 : i32
    %c0_i32_0 = arith.constant 0 : i32
    %c0_i32_1 = arith.constant 0 : i32
    %c0_i32_2 = arith.constant 0 : i32
    return %c0_i32, %c0_i32_0, %c0_i32_1 : i32, i32, i32
  }
  func.func @transform_4(%arg0: i32) -> (i32, i32) {
    %c0_i32 = arith.constant 0 : i32
    %c0_i32_0 = arith.constant 0 : i32
    %c0_i32_1 = arith.constant 0 : i32
    return %c0_i32, %c0_i32_0 : i32, i32
  }
  func.func @transform_5(%arg0: i32) -> (i32, i32) {
    %c0_i32 = arith.constant 0 : i32
    %c0_i32_0 = arith.constant 0 : i32
    %c0_i32_1 = arith.constant 0 : i32
    return %c0_i32, %c0_i32_0 : i32, i32
  }
  func.func @transform_6(%arg0: i32) -> (i32, i32) {
    %c0_i32 = arith.constant 0 : i32
    %c0_i32_0 = arith.constant 0 : i32
    %c0_i32_1 = arith.constant 0 : i32
    return %c0_i32, %c0_i32_0 : i32, i32
  }
  func.func @transform_7(%arg0: i32) -> (i32, i32) {
    %c0_i32 = arith.constant 0 : i32
    %c0_i32_0 = arith.constant 0 : i32
    return %arg0, %c0_i32 : i32, i32
  }
}

</mosaic_0001>

<llo_original>
// kernel: _lambda_.1
$region0: #{_lambda_.1}
  #allocation0 [shape = 'u32[]', space=smem, size = 0x4, offset = 0x4, fixed_abs, tag = 'smem constant byte address 0x4 - core index']
  #allocation1 [shape = 'u32[144,128]{1,0:T(1,128)}', space=vmem, size = 0x12000, scoped, tag = 'internal scratch']
  #allocation2 [shape = 'f32[256,128]{1,0:T(8,128)}', space=vmem, size = 0x20000, scoped, tag = 'scratch operand']
  %s0 = inlined_call_operand.hbm [shape: f32[512,128], index: 0, kind: input, shape index: {}]
  %s1 = inlined_call_operand.vmem [shape: bf16[128,640], index: 1, kind: input, shape index: {}]
  %s2 = inlined_call_operand.vmem [shape: f32[1,640], index: 2, kind: input, shape index: {}]
  %s3 = inlined_call_operand.vmem [shape: bf16[4,128,64], index: 3, kind: input, shape index: {}]
  %s4 = inlined_call_operand.vmem [shape: f32[4,64], index: 4, kind: input, shape index: {}]
  %s5 = inlined_call_operand.vmem [shape: bf16[128,8], index: 5, kind: input, shape index: {}]
  %s6 = inlined_call_operand.vmem [shape: f32[1,8], index: 6, kind: input, shape index: {}]
  %s7 = inlined_call_operand.vmem [shape: bf16[512,128], index: 7, kind: output, shape index: {}]
  %s8 = sld [smem:[#allocation0]]
  $region65: #{_lambda_.1} parent=0
    _
  %s10 = ssub.s32 1, %s8
  %s11 = scalar_select 0, %s10, %s8
  $region1: #{_lambda_.1} parent=0
    #allocation3 [shape = 'u8[262144]{0}', space=vmem, size = 0x40000, scoped, tag = 'input window, operand 0']
    #allocation4 [shape = 's32[2]{0}', space=sflag, size = 0x8, scoped, tag = 'scoped memory for _lambda_.1']
    %12 = vsyncpa [#allocation4], 0
    %s13 = scalar_lea.sflag [#allocation4], 1
    %14 = vsyncpa %s13, 0
    loop: start=0, step=1, limit=4
    $region2: #{_lambda_.1} parent=1 // loop_pre_header
      _
    $region3: #{_lambda_.1} parent=1 // loop_header
      %s16 = sphi 0, %s20
      %p17 = scmp.ge.s32.totalorder %s16, 4
      %s26 = sphi 0, %s28
      %s29 = sphi 0, %s26
      %s30 = sphi 0, %s29
      %s46 = sphi 0, %s30
      %s50 = sphi 0, %s50
      %s52 = sphi 0, %s50
      %s53 = sphi 0, %s52
      %s67 = sphi 0, %s53
      %s71 = sphi 0, %s71
      %s73 = sphi 0, %s71
      %s74 = sphi 0, %s73
      %s88 = sphi 0, %s74
      %s92 = sphi 0, %s92
      %s94 = sphi 0, %s92
      %s95 = sphi 0, %s94
      %s109 = sphi 0, %s95
      %s113 = sphi 0, %s113
      %s115 = sphi 0, %s113
      %s116 = sphi 0, %s115
      %s130 = sphi 0, %s116
      %s134 = sphi 0, %s134
      %s136 = sphi 0, %s134
      %s137 = sphi 0, %s136
      %s151 = sphi 0, %s137
      %s155 = sphi 0, %s155
      %s157 = sphi 0, %s155
      %s158 = sphi 0, %s157
      %s172 = sphi 0, %s158
      %s178 = sphi 0, %s180
      %s181 = sphi 0, %s178
      %s182 = sphi 0, %s181
      %s198 = sphi 0, %s182
    $region4: #{_lambda_.1} parent=1 // loop_header_branch
      %19 = sbr.rel (%p17) target = $region8
    $region5: #{_lambda_.1} parent=1 // loop_body
      %s21 = ssub.s32 %s16, 1
      %s22 = ssub.s32 %s16, 2
      %s23 = sadd.s32 %s16, 1
      %s24 = ssub.s32 %s16, %s23
      %p25 = scmp.eq.s32.totalorder %s24, 0
      %s27 = sadd.s32 %s26, 1
      %s28 = scalar_select %p25, %s26, %s27
      %p31 = pneg %p25
      %p32 = scmp.eq.s32.totalorder %s16, 1
      %p33 = por %p31, %p32
      %p34 = scmp.ne.s32.totalorder %s26, %s29
      %p35 = scmp.eq.s32.totalorder %s16, 0
      %p36 = por %p34, %p35
      %p37 = scmp.ne.s32.totalorder %s26, %s29
      %p38 = scmp.eq.s32.totalorder %s21, 1
      %p39 = por %p37, %p38
      %p40 = scmp.ne.s32.totalorder %s29, %s30
      %p41 = scmp.eq.s32.totalorder %s21, 0
      %p42 = por %p40, %p41
      %p43 = scmp.ne.s32.totalorder %s29, %s30
      %p44 = scmp.eq.s32.totalorder %s22, 1
      %p45 = por %p43, %p44
      %p47 = scmp.ne.s32.totalorder %s30, %s46
      %p48 = scmp.eq.s32.totalorder %s22, 0
      %p49 = por %p47, %p48
      %s51 = sadd.s32 %s50, 1
      %p54 = scmp.eq.s32.totalorder %s16, 1
      %p55 = scmp.ne.s32.totalorder %s50, %s52
      %p56 = scmp.eq.s32.totalorder %s16, 0
      %p57 = por %p55, %p56
      %p58 = scmp.ne.s32.totalorder %s50, %s52
      %p59 = scmp.eq.s32.totalorder %s21, 1
      %p60 = por %p58, %p59
      %p61 = scmp.ne.s32.totalorder %s52, %s53
      %p62 = scmp.eq.s32.totalorder %s21, 0
      %p63 = por %p61, %p62
      %p64 = scmp.ne.s32.totalorder %s52, %s53
      %p65 = scmp.eq.s32.totalorder %s22, 1
      %p66 = por %p64, %p65
      %p68 = scmp.ne.s32.totalorder %s53, %s67
      %p69 = scmp.eq.s32.totalorder %s22, 0
      %p70 = por %p68, %p69
      %s72 = sadd.s32 %s71, 1
      %p75 = scmp.eq.s32.totalorder %s16, 1
      %p76 = scmp.ne.s32.totalorder %s71, %s73
      %p77 = scmp.eq.s32.totalorder %s16, 0
      %p78 = por %p76, %p77
      %p79 = scmp.ne.s32.totalorder %s71, %s73
      %p80 = scmp.eq.s32.totalorder %s21, 1
      %p81 = por %p79, %p80
      %p82 = scmp.ne.s32.totalorder %s73, %s74
      %p83 = scmp.eq.s32.totalorder %s21, 0
      %p84 = por %p82, %p83
      %p85 = scmp.ne.s32.totalorder %s73, %s74
      %p86 = scmp.eq.s32.totalorder %s22, 1
      %p87 = por %p85, %p86
      %p89 = scmp.ne.s32.totalorder %s74, %s88
      %p90 = scmp.eq.s32.totalorder %s22, 0
      %p91 = por %p89, %p90
      %s93 = sadd.s32 %s92, 1
      %p96 = scmp.eq.s32.totalorder %s16, 1
      %p97 = scmp.ne.s32.totalorder %s92, %s94
      %p98 = scmp.eq.s32.totalorder %s16, 0
      %p99 = por %p97, %p98
      %p100 = scmp.ne.s32.totalorder %s92, %s94
      %p101 = scmp.eq.s32.totalorder %s21, 1
      %p102 = por %p100, %p101
      %p103 = scmp.ne.s32.totalorder %s94, %s95
      %p104 = scmp.eq.s32.totalorder %s21, 0
      %p105 = por %p103, %p104
      %p106 = scmp.ne.s32.totalorder %s94, %s95
      %p107 = scmp.eq.s32.totalorder %s22, 1
      %p108 = por %p106, %p107
      %p110 = scmp.ne.s32.totalorder %s95, %s109
      %p111 = scmp.eq.s32.totalorder %s22, 0
      %p112 = por %p110, %p111
      %s114 = sadd.s32 %s113, 1
      %p117 = scmp.eq.s32.totalorder %s16, 1
      %p118 = scmp.ne.s32.totalorder %s113, %s115
      %p119 = scmp.eq.s32.totalorder %s16, 0
      %p120 = por %p118, %p119
      %p121 = scmp.ne.s32.totalorder %s113, %s115
      %p122 = scmp.eq.s32.totalorder %s21, 1
      %p123 = por %p121, %p122
      %p124 = scmp.ne.s32.totalorder %s115, %s116
      %p125 = scmp.eq.s32.totalorder %s21, 0
      %p126 = por %p124, %p125
      %p127 = scmp.ne.s32.totalorder %s115, %s116
      %p128 = scmp.eq.s32.totalorder %s22, 1
      %p129 = por %p127, %p128
      %p131 = scmp.ne.s32.totalorder %s116, %s130
      %p132 = scmp.eq.s32.totalorder %s22, 0
      %p133 = por %p131, %p132
      %s135 = sadd.s32 %s134, 1
      %p138 = scmp.eq.s32.totalorder %s16, 1
      %p139 = scmp.ne.s32.totalorder %s134, %s136
      %p140 = scmp.eq.s32.totalorder %s16, 0
      %p141 = por %p139, %p140
      %p142 = scmp.ne.s32.totalorder %s134, %s136
      %p143 = scmp.eq.s32.totalorder %s21, 1
      %p144 = por %p142, %p143
      %p145 = scmp.ne.s32.totalorder %s136, %s137
      %p146 = scmp.eq.s32.totalorder %s21, 0
      %p147 = por %p145, %p146
      %p148 = scmp.ne.s32.totalorder %s136, %s137
      %p149 = scmp.eq.s32.totalorder %s22, 1
      %p150 = por %p148, %p149
      %p152 = scmp.ne.s32.totalorder %s137, %s151
      %p153 = scmp.eq.s32.totalorder %s22, 0
      %p154 = por %p152, %p153
      %s156 = sadd.s32 %s155, 1
      %p159 = scmp.eq.s32.totalorder %s16, 1
      %p160 = scmp.ne.s32.totalorder %s155, %s157
      %p161 = scmp.eq.s32.totalorder %s16, 0
      %p162 = por %p160, %p161
      %p163 = scmp.ne.s32.totalorder %s155, %s157
      %p164 = scmp.eq.s32.totalorder %s21, 1
      %p165 = por %p163, %p164
      %p166 = scmp.ne.s32.totalorder %s157, %s158
      %p167 = scmp.eq.s32.totalorder %s21, 0
      %p168 = por %p166, %p167
      %p169 = scmp.ne.s32.totalorder %s157, %s158
      %p170 = scmp.eq.s32.totalorder %s22, 1
      %p171 = por %p169, %p170
      %p173 = scmp.ne.s32.totalorder %s158, %s172
      %p174 = scmp.eq.s32.totalorder %s22, 0
      %p175 = por %p173, %p174
      %s176 = ssub.s32 %s16, %s23
      %p177 = scmp.eq.s32.totalorder %s176, 0
      %s179 = sadd.s32 %s178, 1
      %s180 = scalar_select %p177, %s178, %s179
      %p183 = pneg %p177
      %p184 = scmp.eq.s32.totalorder %s16, 1
      %p185 = por %p183, %p184
      %p186 = scmp.ne.s32.totalorder %s178, %s181
      %p187 = scmp.eq.s32.totalorder %s16, 0
      %p188 = por %p186, %p187
      %p189 = scmp.ne.s32.totalorder %s178, %s181
      %p190 = scmp.eq.s32.totalorder %s21, 1
      %p191 = por %p189, %p190
      %p192 = scmp.ne.s32.totalorder %s181, %s182
      %p193 = scmp.eq.s32.totalorder %s21, 0
      %p194 = por %p192, %p193
      %p195 = scmp.ne.s32.totalorder %s181, %s182
      %p196 = scmp.eq.s32.totalorder %s22, 1
      %p197 = por %p195, %p196
      %p199 = scmp.ne.s32.totalorder %s182, %s198
      %p200 = scmp.eq.s32.totalorder %s22, 0
      %p201 = por %p199, %p200
      %p202 = scmp.le.s32.totalorder 1, %s16
      %p203 = scmp.lt.s32.totalorder %s16, 3
      %p204 = pnand %p202, %p203
      %p205 = pneg %p204
      // Predicated region
      $region9: #{_lambda_.1} parent=5 // pred_check
        _
      $region10: #{_lambda_.1} parent=5 // pred_check_branch
        %207 = sbr.rel (%p204) target = $region12
      $region11: #{_lambda_.1} parent=5 // pred_region
        %s208 = ssub.s32 %s16, 1
        // Predicated region
        $region13: #{_lambda_.1} parent=11 // pred_check
          %p209 = pneg %p63
        $region14: #{_lambda_.1} parent=11 // pred_check_branch
          %211 = sbr.rel (%p209) target = $region16
        $region15: #{_lambda_.1} parent=11 // pred_region
          _
        $region16: #{_lambda_.1} parent=11 // pred_fallthru
          _
        // Predicated region
        $region17: #{_lambda_.1} parent=11 // pred_check
          %p212 = pneg %p84
        $region18: #{_lambda_.1} parent=11 // pred_check_branch
          %214 = sbr.rel (%p212) target = $region20
        $region19: #{_lambda_.1} parent=11 // pred_region
          _
        $region20: #{_lambda_.1} parent=11 // pred_fallthru
          _
        // Predicated region
        $region21: #{_lambda_.1} parent=11 // pred_check
          %p215 = pneg %p105
        $region22: #{_lambda_.1} parent=11 // pred_check_branch
          %217 = sbr.rel (%p215) target = $region24
        $region23: #{_lambda_.1} parent=11 // pred_region
          _
        $region24: #{_lambda_.1} parent=11 // pred_fallthru
          _
        // Predicated region
        $region25: #{_lambda_.1} parent=11 // pred_check
          %p218 = pneg %p126
        $region26: #{_lambda_.1} parent=11 // pred_check_branch
          %220 = sbr.rel (%p218) target = $region28
        $region27: #{_lambda_.1} parent=11 // pred_region
          _
        $region28: #{_lambda_.1} parent=11 // pred_fallthru
          _
        // Predicated region
        $region29: #{_lambda_.1} parent=11 // pred_check
          %p221 = pneg %p147
        $region30: #{_lambda_.1} parent=11 // pred_check_branch
          %223 = sbr.rel (%p221) target = $region32
        $region31: #{_lambda_.1} parent=11 // pred_region
          _
        $region32: #{_lambda_.1} parent=11 // pred_fallthru
          _
        // Predicated region
        $region33: #{_lambda_.1} parent=11 // pred_check
          %p224 = pneg %p168
        $region34: #{_lambda_.1} parent=11 // pred_check_branch
          %226 = sbr.rel (%p224) target = $region36
        $region35: #{_lambda_.1} parent=11 // pred_region
          _
        $region36: #{_lambda_.1} parent=11 // pred_fallthru
          _
      $region12: #{_lambda_.1} parent=5 // pred_fallthru
        _
      %p227 = scmp.lt.s32.totalorder %s16, 2
      // Predicated region
      $region37: #{_lambda_.1} parent=5 // pred_check
        %p228 = pneg %p227
      $region38: #{_lambda_.1} parent=5 // pred_check_branch
        %230 = sbr.rel (%p228) target = $region40
      $region39: #{_lambda_.1} parent=5 // pred_region
        // Predicated region
        $region41: #{_lambda_.1} parent=39 // pred_check
          %p231 = pneg %p36
        $region42: #{_lambda_.1} parent=39 // pred_check_branch
          %233 = sbr.rel (%p231) target = $region44
        $region43: #{_lambda_.1} parent=39 // pred_region
          %s234 = sand.u32 %s26, 1
          %s235 = scalar_lea.sflag [#allocation4], %s234
          %s236 = sand.u32 %s26, 1
          %s237 = smul.addr %s236, 256
          %s238 = scalar_lea.vmem [#allocation3], %s237
          %s239 = smul.u32 32, %s16
          %s241 = ssub.s32 4096, 4096
          %242 = vsyncadd %s235, %s241
          %s243 = smul.addr %s239, 128
          %s244 = scalar_lea.hbm %s0, %s243
          %s245 = sshll.u32 %s238, 4
          %s246 = int_to_ptr.vmem [resolvable:$true] %s245
          %251 = dma.hbm_to_vmem [thread:$0]  %s244, 4096, %s246, %s235, 128, 128, 8
        $region44: #{_lambda_.1} parent=39 // pred_fallthru
          _
      $region40: #{_lambda_.1} parent=5 // pred_fallthru
        _
      %p252 = scmp.le.s32.totalorder 1, %s16
      %p253 = scmp.lt.s32.totalorder %s16, 3
      %p254 = pnand %p252, %p253
      %p255 = pneg %p254
      // Predicated region
      $region45: #{_lambda_.1} parent=5 // pred_check
        _
      $region46: #{_lambda_.1} parent=5 // pred_check_branch
        %257 = sbr.rel (%p254) target = $region48
      $region47: #{_lambda_.1} parent=5 // pred_region
        %s258 = ssub.s32 %s16, 1
        %s259 = sand.u32 %s29, 1
        %s260 = scalar_lea.sflag [#allocation4], %s259
        %s261 = sand.u32 %s29, 1
        %s262 = smul.addr %s261, 256
        %s263 = scalar_lea.vmem [#allocation3], %s262
        // Predicated region
        $region49: #{_lambda_.1} parent=47 // pred_check
          %p264 = pneg %p42
        $region50: #{_lambda_.1} parent=47 // pred_check_branch
          %266 = sbr.rel (%p264) target = $region52
        $region51: #{_lambda_.1} parent=47 // pred_region
          %267 = dma.done %s260, 4096
        $region52: #{_lambda_.1} parent=47 // pred_fallthru
          _
        %s268 = sand.u32 %s29, 1
        %s269 = scalar_lea.sflag [#allocation4], %s268
        %s270 = sand.u32 %s29, 1
        %s271 = smul.addr %s270, 256
        %s272 = scalar_lea.vmem [#allocation3], %s271
        %p273 = pneg %p42
        %p274 = pneg %p39
        %p275 = pneg %p63
        %p276 = pneg %p60
        %p277 = pneg %p84
        %p278 = pneg %p81
        %p279 = pneg %p105
        %p280 = pneg %p102
        %p281 = pneg %p126
        %p282 = pneg %p123
        %p283 = pneg %p147
        %p284 = pneg %p144
        %p285 = pneg %p168
        %p286 = pneg %p165
        %p287 = pneg %p194
        %p288 = pneg %p191
        %s289 = smul.u32 32, %s21
        %p290 = scmp.lt.s32.totalorder %s289, 63
        %s291 = scalar_select %p290, %s289, 63
        %s292 = smul.addr %s291, 4
        %s293 = scalar_lea.vmem %s7, %s292
        %s294 = smul.u32 32, %s21
        %s295 = smul.u32 32, %s21
        %p296 = scmp.lt.s32.totalorder %s295, 63
        %s297 = scalar_select %p296, %s295, 63
        %s298 = smul.addr %s297, 4
        %s299 = scalar_lea.vmem %s7, %s298
        %s300 = smul.u32 32, %s21
        %v302 = vld [vmem:[%s263] sm:$0xff]
        %v303 = vld [vmem:[%s263 + $0x8] sm:$0xff]
        %v304 = vld [vmem:[%s263 + $0x10] sm:$0xff]
        %v305 = vld [vmem:[%s263 + $0x18] sm:$0xff]
        %v306 = vld [vmem:[%s263 + $0x20] sm:$0xff]
        %v307 = vld [vmem:[%s263 + $0x28] sm:$0xff]
        %v308 = vld [vmem:[%s263 + $0x30] sm:$0xff]
        %v309 = vld [vmem:[%s263 + $0x38] sm:$0xff]
        %v310 = vld [vmem:[%s263 + $0x40] sm:$0xff]
        %v311 = vld [vmem:[%s263 + $0x48] sm:$0xff]
        %v312 = vld [vmem:[%s263 + $0x50] sm:$0xff]
        %v313 = vld [vmem:[%s263 + $0x58] sm:$0xff]
        %v314 = vld [vmem:[%s263 + $0x60] sm:$0xff]
        %v315 = vld [vmem:[%s263 + $0x68] sm:$0xff]
        %v316 = vld [vmem:[%s263 + $0x70] sm:$0xff]
        %v317 = vld [vmem:[%s263 + $0x78] sm:$0xff]
        %v318 = vld [vmem:[%s263 + $0x80] sm:$0xff]
        %v319 = vld [vmem:[%s263 + $0x88] sm:$0xff]
        %v320 = vld [vmem:[%s263 + $0x90] sm:$0xff]
        %v321 = vld [vmem:[%s263 + $0x98] sm:$0xff]
        %v322 = vld [vmem:[%s263 + $0xa0] sm:$0xff]
        %v323 = vld [vmem:[%s263 + $0xa8] sm:$0xff]
        %v324 = vld [vmem:[%s263 + $0xb0] sm:$0xff]
        %v325 = vld [vmem:[%s263 + $0xb8] sm:$0xff]
        %v326 = vld [vmem:[%s263 + $0xc0] sm:$0xff]
        %v327 = vld [vmem:[%s263 + $0xc8] sm:$0xff]
        %v328 = vld [vmem:[%s263 + $0xd0] sm:$0xff]
        %v329 = vld [vmem:[%s263 + $0xd8] sm:$0xff]
        %v330 = vld [vmem:[%s263 + $0xe0] sm:$0xff]
        %v331 = vld [vmem:[%s263 + $0xe8] sm:$0xff]
        %v332 = vld [vmem:[%s263 + $0xf0] sm:$0xff]
        %v333 = vld [vmem:[%s263 + $0xf8] sm:$0xff]
        %v334 = vpack.c.bf16 %v303, %v302
        %v335 = vpack.c.bf16 %v305, %v304
        %v336 = vpack.c.bf16 %v307, %v306
        %v337 = vpack.c.bf16 %v309, %v308
        %v338 = vpack.c.bf16 %v311, %v310
        %v339 = vpack.c.bf16 %v313, %v312
        %v340 = vpack.c.bf16 %v315, %v314
        %v341 = vpack.c.bf16 %v317, %v316
        %v342 = vpack.c.bf16 %v319, %v318
        %v343 = vpack.c.bf16 %v321, %v320
        %v344 = vpack.c.bf16 %v323, %v322
        %v345 = vpack.c.bf16 %v325, %v324
        %v346 = vpack.c.bf16 %v327, %v326
        %v347 = vpack.c.bf16 %v329, %v328
        %v348 = vpack.c.bf16 %v331, %v330
        %v349 = vpack.c.bf16 %v333, %v332
        %v350 = vld [vmem:[%s1] sm:$0xff]
        %v351 = vld [vmem:[%s1 + $0x8] sm:$0xff]
        %v352 = vld [vmem:[%s1 + $0x10] sm:$0xf]
        %v353 = vld [vmem:[%s1 + $0x14] sm:$0xff]
        %v354 = vld [vmem:[%s1 + $0x1c] sm:$0xff]
        %v355 = vld [vmem:[%s1 + $0x24] sm:$0xf]
        %v356 = vld [vmem:[%s1 + $0x28] sm:$0xff]
        %v357 = vld [vmem:[%s1 + $0x30] sm:$0xff]
        %v358 = vld [vmem:[%s1 + $0x38] sm:$0xf]
        %v359 = vld [vmem:[%s1 + $0x3c] sm:$0xff]
        %v360 = vld [vmem:[%s1 + $0x44] sm:$0xff]
        %v361 = vld [vmem:[%s1 + $0x4c] sm:$0xf]
        %v362 = vld [vmem:[%s1 + $0x50] sm:$0xff]
        %v363 = vld [vmem:[%s1 + $0x58] sm:$0xff]
        %v364 = vld [vmem:[%s1 + $0x60] sm:$0xf]
        %v365 = vld [vmem:[%s1 + $0x64] sm:$0xff]
        %v366 = vld [vmem:[%s1 + $0x6c] sm:$0xff]
        %v367 = vld [vmem:[%s1 + $0x74] sm:$0xf]
        %v368 = vld [vmem:[%s1 + $0x78] sm:$0xff]
        %v369 = vld [vmem:[%s1 + $0x80] sm:$0xff]
        %v370 = vld [vmem:[%s1 + $0x88] sm:$0xf]
        %v371 = vld [vmem:[%s1 + $0x8c] sm:$0xff]
        %v372 = vld [vmem:[%s1 + $0x94] sm:$0xff]
        %v373 = vld [vmem:[%s1 + $0x9c] sm:$0xf]
        %v374 = vld [vmem:[%s1 + $0xa0] sm:$0xff]
        %v375 = vld [vmem:[%s1 + $0xa8] sm:$0xff]
        %v376 = vld [vmem:[%s1 + $0xb0] sm:$0xf]
        %v377 = vld [vmem:[%s1 + $0xb4] sm:$0xff]
        %v378 = vld [vmem:[%s1 + $0xbc] sm:$0xff]
        %v379 = vld [vmem:[%s1 + $0xc4] sm:$0xf]
        %v380 = vld [vmem:[%s1 + $0xc8] sm:$0xff]
        %v381 = vld [vmem:[%s1 + $0xd0] sm:$0xff]
        %v382 = vld [vmem:[%s1 + $0xd8] sm:$0xf]
        %v383 = vld [vmem:[%s1 + $0xdc] sm:$0xff]
        %v384 = vld [vmem:[%s1 + $0xe4] sm:$0xff]
        %v385 = vld [vmem:[%s1 + $0xec] sm:$0xf]
        %v386 = vld [vmem:[%s1 + $0xf0] sm:$0xff]
        %v387 = vld [vmem:[%s1 + $0xf8] sm:$0xff]
        %v388 = vld [vmem:[%s1 + $0x100] sm:$0xf]
        %v389 = vld [vmem:[%s1 + $0x104] sm:$0xff]
        %v390 = vld [vmem:[%s1 + $0x10c] sm:$0xff]
        %v391 = vld [vmem:[%s1 + $0x114] sm:$0xf]
        %v392 = vld [vmem:[%s1 + $0x118] sm:$0xff]
        %v393 = vld [vmem:[%s1 + $0x120] sm:$0xff]
        %v394 = vld [vmem:[%s1 + $0x128] sm:$0xf]
        %v395 = vld [vmem:[%s1 + $0x12c] sm:$0xff]
        %v396 = vld [vmem:[%s1 + $0x134] sm:$0xff]
        %v397 = vld [vmem:[%s1 + $0x13c] sm:$0xf]
        %v398 = vld [vmem:[%s2] sm:$0x1f]
        %v400 = vlaneseq
        %v401 = vshrl.u32 %v400, 7
        %v402 = vsub.s32 0, %v401
        %v403 = vrot.slane %v398, %v402
        %v404 = vlaneseq
        %v405 = vshrl.u32 %v404, 7
        %v406 = vsub.s32 1, %v405
        %v407 = vrot.slane %v398, %v406
        %v408 = vlaneseq
        %v409 = vshrl.u32 %v408, 7
        %v410 = vsub.s32 2, %v409
        %v411 = vrot.slane %v398, %v410
        %v412 = vlaneseq
        %v413 = vshrl.u32 %v412, 7
        %v414 = vsub.s32 3, %v413
        %v415 = vrot.slane %v398, %v414
        %v416 = vlaneseq
        %v417 = vshrl.u32 %v416, 7
        %v418 = vsub.s32 4, %v417
        %v419 = vrot.slane %v398, %v418
        %v473 = vunpack.c.l.b16 %v350
        %v474 = vunpack.c.h.b16 %v350
        %v475 = vunpack.c.l.b16 %v351
        %v476 = vunpack.c.h.b16 %v351
        %v477 = vunpack.c.l.b16 %v352
        %v478 = vunpack.c.l.b16 %v353
        %v479 = vunpack.c.h.b16 %v353
        %v480 = vunpack.c.l.b16 %v354
        %v481 = vunpack.c.h.b16 %v354
        %v482 = vunpack.c.l.b16 %v355
        %v483 = vunpack.c.l.b16 %v356
        %v484 = vunpack.c.h.b16 %v356
        %v485 = vunpack.c.l.b16 %v357
        %v486 = vunpack.c.h.b16 %v357
        %v487 = vunpack.c.l.b16 %v358
        %v488 = vunpack.c.l.b16 %v359
        %v489 = vunpack.c.h.b16 %v359
        %v490 = vunpack.c.l.b16 %v360
        %v491 = vunpack.c.h.b16 %v360
        %v492 = vunpack.c.l.b16 %v361
        %v493 = vunpack.c.l.b16 %v362
        %v494 = vunpack.c.h.b16 %v362
        %v495 = vunpack.c.l.b16 %v363
        %v496 = vunpack.c.h.b16 %v363
        %v497 = vunpack.c.l.b16 %v364
        %v498 = vunpack.c.l.b16 %v365
        %v499 = vunpack.c.h.b16 %v365
        %v500 = vunpack.c.l.b16 %v366
        %v501 = vunpack.c.h.b16 %v366
        %v502 = vunpack.c.l.b16 %v367
        %v503 = vunpack.c.l.b16 %v368
        %v504 = vunpack.c.h.b16 %v368
        %v505 = vunpack.c.l.b16 %v369
        %v506 = vunpack.c.h.b16 %v369
        %v507 = vunpack.c.l.b16 %v370
        %v508 = vunpack.c.l.b16 %v371
        %v509 = vunpack.c.h.b16 %v371
        %v510 = vunpack.c.l.b16 %v372
        %v511 = vunpack.c.h.b16 %v372
        %v512 = vunpack.c.l.b16 %v373
        %v513 = vunpack.c.l.b16 %v374
        %v514 = vunpack.c.h.b16 %v374
        %v515 = vunpack.c.l.b16 %v375
        %v516 = vunpack.c.h.b16 %v375
        %v517 = vunpack.c.l.b16 %v376
        %v518 = vunpack.c.l.b16 %v377
        %v519 = vunpack.c.h.b16 %v377
        %v520 = vunpack.c.l.b16 %v378
        %v521 = vunpack.c.h.b16 %v378
        %v522 = vunpack.c.l.b16 %v379
        %v523 = vunpack.c.l.b16 %v380
        %v524 = vunpack.c.h.b16 %v380
        %v525 = vunpack.c.l.b16 %v381
        %v526 = vunpack.c.h.b16 %v381
        %v527 = vunpack.c.l.b16 %v382
        %v528 = vunpack.c.l.b16 %v383
        %v529 = vunpack.c.h.b16 %v383
        %v530 = vunpack.c.l.b16 %v384
        %v531 = vunpack.c.h.b16 %v384
        %v532 = vunpack.c.l.b16 %v385
        %v533 = vunpack.c.l.b16 %v386
        %v534 = vunpack.c.h.b16 %v386
        %v535 = vunpack.c.l.b16 %v387
        %v536 = vunpack.c.h.b16 %v387
        %v537 = vunpack.c.l.b16 %v388
        %v538 = vunpack.c.l.b16 %v389
        %v539 = vunpack.c.h.b16 %v389
        %v540 = vunpack.c.l.b16 %v390
        %v541 = vunpack.c.h.b16 %v390
        %v542 = vunpack.c.l.b16 %v391
        %v543 = vunpack.c.l.b16 %v392
        %v544 = vunpack.c.h.b16 %v392
        %v545 = vunpack.c.l.b16 %v393
        %v546 = vunpack.c.h.b16 %v393
        %v547 = vunpack.c.l.b16 %v394
        %v548 = vunpack.c.l.b16 %v395
        %v549 = vunpack.c.h.b16 %v395
        %v550 = vunpack.c.l.b16 %v396
        %v551 = vunpack.c.h.b16 %v396
        %v552 = vunpack.c.l.b16 %v397
        %v553 = vpack.c.b16 %v478, %v473
        %v554 = vpack.c.b16 %v479, %v474
        %v555 = vpack.c.b16 %v480, %v475
        %v556 = vpack.c.b16 %v481, %v476
        %v557 = vpack.c.b16 %v482, %v477
        %v558 = vpack.c.b16 %v488, %v483
        %v559 = vpack.c.b16 %v489, %v484
        %v560 = vpack.c.b16 %v490, %v485
        %v561 = vpack.c.b16 %v491, %v486
        %v562 = vpack.c.b16 %v492, %v487
        %v563 = vpack.c.b16 %v498, %v493
        %v564 = vpack.c.b16 %v499, %v494
        %v565 = vpack.c.b16 %v500, %v495
        %v566 = vpack.c.b16 %v501, %v496
        %v567 = vpack.c.b16 %v502, %v497
        %v568 = vpack.c.b16 %v508, %v503
        %v569 = vpack.c.b16 %v509, %v504
        %v570 = vpack.c.b16 %v510, %v505
        %v571 = vpack.c.b16 %v511, %v506
        %v572 = vpack.c.b16 %v512, %v507
        %v573 = vpack.c.b16 %v518, %v513
        %v574 = vpack.c.b16 %v519, %v514
        %v575 = vpack.c.b16 %v520, %v515
        %v576 = vpack.c.b16 %v521, %v516
        %v577 = vpack.c.b16 %v522, %v517
        %v578 = vpack.c.b16 %v528, %v523
        %v579 = vpack.c.b16 %v529, %v524
        %v580 = vpack.c.b16 %v530, %v525
        %v581 = vpack.c.b16 %v531, %v526
        %v582 = vpack.c.b16 %v532, %v527
        %v583 = vpack.c.b16 %v538, %v533
        %v584 = vpack.c.b16 %v539, %v534
        %v585 = vpack.c.b16 %v540, %v535
        %v586 = vpack.c.b16 %v541, %v536
        %v587 = vpack.c.b16 %v542, %v537
        %v588 = vpack.c.b16 %v548, %v543
        %v589 = vpack.c.b16 %v549, %v544
        %v590 = vpack.c.b16 %v550, %v545
        %v591 = vpack.c.b16 %v551, %v546
        %v592 = vpack.c.b16 %v552, %v547
        %633 = vmatprep.subr.bf16.mxu0 %v554
        %634 = vmatpush1.bf16.msra.mxu0 %v553
        %635 = vmatprep.subr.bf16.mxu0 %v559
        %636 = vmatpush1.bf16.msra.mxu0 %v558
        %637 = vmatprep.subr.bf16.mxu0 %v564
        %638 = vmatpush1.bf16.msra.mxu0 %v563
        %639 = vmatprep.subr.bf16.mxu0 %v569
        %640 = vmatpush1.bf16.msra.mxu0 %v568
        %641 = vmatprep.subr.bf16.mxu0 %v574
        %642 = vmatpush1.bf16.msra.mxu0 %v573
        %643 = vmatprep.subr.bf16.mxu0 %v579
        %644 = vmatpush1.bf16.msra.mxu0 %v578
        %645 = vmatprep.subr.bf16.mxu0 %v584
        %646 = vmatpush1.bf16.msra.mxu0 %v583
        %647 = vmatprep.subr.bf16.mxu0 %v589
        %648 = vmatpush1.bf16.msra.mxu0 %v588
        %649 = vmatprep.subr.bf16.mxu0 0
        %650 = vmatpush1.bf16.msra.mxu0 0
        %651 = vmatprep.subr.bf16.mxu0 0
        %652 = vmatpush1.bf16.msra.mxu0 0
        %653 = vmatprep.subr.bf16.mxu0 0
        %654 = vmatpush1.bf16.msra.mxu0 0
        %655 = vmatprep.subr.bf16.mxu0 0
        %656 = vmatpush1.bf16.msra.mxu0 0
        %657 = vmatprep.subr.bf16.mxu0 0
        %658 = vmatpush1.bf16.msra.mxu0 0
        %659 = vmatprep.subr.bf16.mxu0 0
        %660 = vmatpush1.bf16.msra.mxu0 0
        %661 = vmatprep.subr.bf16.mxu0 0
        %662 = vmatpush1.bf16.msra.mxu0 0
        %663 = vmatprep.subr.bf16.mxu0 0
        %664 = vmatpush1.bf16.msra.mxu0 0
        %665 = vmatprep.mubr.bf16.mxu0 0
        %666 = vmatmul.mubr.bf16.gmra.mrb[0].mxu0 %v334
        %v667 = vpop.f32.mrb[0].mxu0
        %v668 = vadd.f32 %v403, %v667
        %v669 = vpop.f32.mrb[0].mxu0
        %v670 = vadd.f32 %v407, %v669
        %v671 = vpop.f32.mrb[0].mxu0
        %v672 = vadd.f32 %v403, %v671
        %v673 = vpop.f32.mrb[0].mxu0
        %v674 = vadd.f32 %v407, %v673
        %675 = vmatprep.mubr.bf16.mxu0 0
        %676 = vmatmul.mubr.bf16.gmra.mrb[0].mxu0 %v335
        %v677 = vpop.f32.mrb[0].mxu0
        %v678 = vadd.f32 %v403, %v677
        %v679 = vpop.f32.mrb[0].mxu0
        %v680 = vadd.f32 %v407, %v679
        %v681 = vpop.f32.mrb[0].mxu0
        %v682 = vadd.f32 %v403, %v681
        %v683 = vpop.f32.mrb[0].mxu0
        %v684 = vadd.f32 %v407, %v683
        %685 = vmatprep.mubr.bf16.mxu0 0
        %686 = vmatmul.mubr.bf16.gmra.mrb[0].mxu0 %v336
        %v687 = vpop.f32.mrb[0].mxu0
        %v688 = vadd.f32 %v403, %v687
        %v689 = vpop.f32.mrb[0].mxu0
        %v690 = vadd.f32 %v407, %v689
        %v691 = vpop.f32.mrb[0].mxu0
        %v692 = vadd.f32 %v403, %v691
        %v693 = vpop.f32.mrb[0].mxu0
        %v694 = vadd.f32 %v407, %v693
        %695 = vmatprep.mubr.bf16.mxu0 0
        %696 = vmatmul.mubr.bf16.gmra.mrb[0].mxu0 %v337
        %v697 = vpop.f32.mrb[0].mxu0
        %v698 = vadd.f32 %v403, %v697
        %v699 = vpop.f32.mrb[0].mxu0
        %v700 = vadd.f32 %v407, %v699
        %v701 = vpop.f32.mrb[0].mxu0
        %v702 = vadd.f32 %v403, %v701
        %v703 = vpop.f32.mrb[0].mxu0
        %v704 = vadd.f32 %v407, %v703
        %705 = vmatprep.mubr.bf16.mxu0 0
        %706 = vmatmul.mubr.bf16.gmra.mrb[0].mxu0 %v338
        %v707 = vpop.f32.mrb[0].mxu0
        %v708 = vadd.f32 %v403, %v707
        %v709 = vpop.f32.mrb[0].mxu0
        %v710 = vadd.f32 %v407, %v709
        %v711 = vpop.f32.mrb[0].mxu0
        %v712 = vadd.f32 %v403, %v711
        %v713 = vpop.f32.mrb[0].mxu0
        %v714 = vadd.f32 %v407, %v713
        %715 = vmatprep.mubr.bf16.mxu0 0
        %716 = vmatmul.mubr.bf16.gmra.mrb[0].mxu0 %v339
        %v717 = vpop.f32.mrb[0].mxu0
        %v718 = vadd.f32 %v403, %v717
        %v719 = vpop.f32.mrb[0].mxu0
        %v720 = vadd.f32 %v407, %v719
        %v721 = vpop.f32.mrb[0].mxu0
        %v722 = vadd.f32 %v403, %v721
        %v723 = vpop.f32.mrb[0].mxu0
        %v724 = vadd.f32 %v407, %v723
        %725 = vmatprep.mubr.bf16.mxu0 0
        %726 = vmatmul.mubr.bf16.gmra.mrb[0].mxu0 %v340
        %v727 = vpop.f32.mrb[0].mxu0
        %v728 = vadd.f32 %v403, %v727
        %v729 = vpop.f32.mrb[0].mxu0
        %v730 = vadd.f32 %v407, %v729
        %v731 = vpop.f32.mrb[0].mxu0
        %v732 = vadd.f32 %v403, %v731
        %v733 = vpop.f32.mrb[0].mxu0
        %v734 = vadd.f32 %v407, %v733
        %735 = vmatprep.mubr.bf16.mxu0 0
        %736 = vmatmul.mubr.bf16.gmra.mrb[0].mxu0 %v341
        %v737 = vpop.f32.mrb[0].mxu0
        %v738 = vadd.f32 %v403, %v737
        %v739 = vpop.f32.mrb[0].mxu0
        %v740 = vadd.f32 %v407, %v739
        %v741 = vpop.f32.mrb[0].mxu0
        %v742 = vadd.f32 %v403, %v741
        %v743 = vpop.f32.mrb[0].mxu0
        %v744 = vadd.f32 %v407, %v743
        %745 = vmatprep.mubr.bf16.mxu0 0
        %746 = vmatmul.mubr.bf16.gmra.mrb[0].mxu0 %v342
        %v747 = vpop.f32.mrb[0].mxu0
        %v748 = vadd.f32 %v403, %v747
        %v749 = vpop.f32.mrb[0].mxu0
        %v750 = vadd.f32 %v407, %v749
        %v751 = vpop.f32.mrb[0].mxu0
        %v752 = vadd.f32 %v403, %v751
        %v753 = vpop.f32.mrb[0].mxu0
        %v754 = vadd.f32 %v407, %v753
        %755 = vmatprep.mubr.bf16.mxu0 0
        %756 = vmatmul.mubr.bf16.gmra.mrb[0].mxu0 %v343
        %v757 = vpop.f32.mrb[0].mxu0
        %v758 = vadd.f32 %v403, %v757
        %v759 = vpop.f32.mrb[0].mxu0
        %v760 = vadd.f32 %v407, %v759
        %v761 = vpop.f32.mrb[0].mxu0
        %v762 = vadd.f32 %v403, %v761
        %v763 = vpop.f32.mrb[0].mxu0
        %v764 = vadd.f32 %v407, %v763
        %765 = vmatprep.mubr.bf16.mxu0 0
        %766 = vmatmul.mubr.bf16.gmra.mrb[0].mxu0 %v344
        %v767 = vpop.f32.mrb[0].mxu0
        %v768 = vadd.f32 %v403, %v767
        %v769 = vpop.f32.mrb[0].mxu0
        %v770 = vadd.f32 %v407, %v769
        %v771 = vpop.f32.mrb[0].mxu0
        %v772 = vadd.f32 %v403, %v771
        %v773 = vpop.f32.mrb[0].mxu0
        %v774 = vadd.f32 %v407, %v773
        %775 = vmatprep.mubr.bf16.mxu0 0
        %776 = vmatmul.mubr.bf16.gmra.mrb[0].mxu0 %v345
        %v777 = vpop.f32.mrb[0].mxu0
        %v778 = vadd.f32 %v403, %v777
        %v779 = vpop.f32.mrb[0].mxu0
        %v780 = vadd.f32 %v407, %v779
        %v781 = vpop.f32.mrb[0].mxu0
        %v782 = vadd.f32 %v403, %v781
        %v783 = vpop.f32.mrb[0].mxu0
        %v784 = vadd.f32 %v407, %v783
        %785 = vmatprep.mubr.bf16.mxu0 0
        %786 = vmatmul.mubr.bf16.gmra.mrb[0].mxu0 %v346
        %v787 = vpop.f32.mrb[0].mxu0
        %v788 = vadd.f32 %v403, %v787
        %v789 = vpop.f32.mrb[0].mxu0
        %v790 = vadd.f32 %v407, %v789
        %v791 = vpop.f32.mrb[0].mxu0
        %v792 = vadd.f32 %v403, %v791
        %v793 = vpop.f32.mrb[0].mxu0
        %v794 = vadd.f32 %v407, %v793
        %795 = vmatprep.mubr.bf16.mxu0 0
        %796 = vmatmul.mubr.bf16.gmra.mrb[0].mxu0 %v347
        %v797 = vpop.f32.mrb[0].mxu0
        %v798 = vadd.f32 %v403, %v797
        %v799 = vpop.f32.mrb[0].mxu0
        %v800 = vadd.f32 %v407, %v799
        %v801 = vpop.f32.mrb[0].mxu0
        %v802 = vadd.f32 %v403, %v801
        %v803 = vpop.f32.mrb[0].mxu0
        %v804 = vadd.f32 %v407, %v803
        %805 = vmatprep.mubr.bf16.mxu0 0
        %806 = vmatmul.mubr.bf16.gmra.mrb[0].mxu0 %v348
        %v807 = vpop.f32.mrb[0].mxu0
        %v808 = vadd.f32 %v403, %v807
        %v809 = vpop.f32.mrb[0].mxu0
        %v810 = vadd.f32 %v407, %v809
        %v811 = vpop.f32.mrb[0].mxu0
        %v812 = vadd.f32 %v403, %v811
        %v813 = vpop.f32.mrb[0].mxu0
        %v814 = vadd.f32 %v407, %v813
        %815 = vmatprep.mubr.bf16.mxu0 0
        %816 = vmatmul.mubr.bf16.gmra.mrb[0].mxu0 %v349
        %v817 = vpop.f32.mrb[0].mxu0
        %v818 = vadd.f32 %v403, %v817
        %v819 = vpop.f32.mrb[0].mxu0
        %v820 = vadd.f32 %v407, %v819
        %v821 = vpop.f32.mrb[0].mxu0
        %v822 = vadd.f32 %v403, %v821
        %v823 = vpop.f32.mrb[0].mxu0
        %v824 = vadd.f32 %v407, %v823
        %825 = vdwg.mxu0
        %826 = vmatprep.subr.bf16.mxu0 %v556
        %827 = vmatpush1.bf16.msra.mxu0 %v555
        %828 = vmatprep.subr.bf16.mxu0 %v561
        %829 = vmatpush1.bf16.msra.mxu0 %v560
        %830 = vmatprep.subr.bf16.mxu0 %v566
        %831 = vmatpush1.bf16.msra.mxu0 %v565
        %832 = vmatprep.subr.bf16.mxu0 %v571
        %833 = vmatpush1.bf16.msra.mxu0 %v570
        %834 = vmatprep.subr.bf16.mxu0 %v576
        %835 = vmatpush1.bf16.msra.mxu0 %v575
        %836 = vmatprep.subr.bf16.mxu0 %v581
        %837 = vmatpush1.bf16.msra.mxu0 %v580
        %838 = vmatprep.subr.bf16.mxu0 %v586
        %839 = vmatpush1.bf16.msra.mxu0 %v585
        %840 = vmatprep.subr.bf16.mxu0 %v591
        %841 = vmatpush1.bf16.msra.mxu0 %v590
        %842 = vmatprep.subr.bf16.mxu0 0
        %843 = vmatpush1.bf16.msra.mxu0 0
        %844 = vmatprep.subr.bf16.mxu0 0
        %845 = vmatpush1.bf16.msra.mxu0 0
        %846 = vmatprep.subr.bf16.mxu0 0
        %847 = vmatpush1.bf16.msra.mxu0 0
        %848 = vmatprep.subr.bf16.mxu0 0
        %849 = vmatpush1.bf16.msra.mxu0 0
        %850 = vmatprep.subr.bf16.mxu0 0
        %851 = vmatpush1.bf16.msra.mxu0 0
        %852 = vmatprep.subr.bf16.mxu0 0
        %853 = vmatpush1.bf16.msra.mxu0 0
        %854 = vmatprep.subr.bf16.mxu0 0
        %855 = vmatpush1.bf16.msra.mxu0 0
        %856 = vmatprep.subr.bf16.mxu0 0
        %857 = vmatpush1.bf16.msra.mxu0 0
        %858 = vmatprep.mubr.bf16.mxu0 0
        %859 = vmatmul.mubr.bf16.gmra.mrb[0].mxu0 %v334
        %v860 = vpop.f32.mrb[0].mxu0
        %v861 = vadd.f32 %v411, %v860
        %v862 = vpop.f32.mrb[0].mxu0
        %v863 = vadd.f32 %v415, %v862
        %v864 = vpop.f32.mrb[0].mxu0
        %v865 = vadd.f32 %v411, %v864
        %v866 = vpop.f32.mrb[0].mxu0
        %v867 = vadd.f32 %v415, %v866
        %868 = vmatprep.mubr.bf16.mxu0 0
        %869 = vmatmul.mubr.bf16.gmra.mrb[0].mxu0 %v335
        %v870 = vpop.f32.mrb[0].mxu0
        %v871 = vadd.f32 %v411, %v870
        %v872 = vpop.f32.mrb[0].mxu0
        %v873 = vadd.f32 %v415, %v872
        %v874 = vpop.f32.mrb[0].mxu0
        %v875 = vadd.f32 %v411, %v874
        %v876 = vpop.f32.mrb[0].mxu0
        %v877 = vadd.f32 %v415, %v876
        %878 = vmatprep.mubr.bf16.mxu0 0
        %879 = vmatmul.mubr.bf16.gmra.mrb[0].mxu0 %v336
        %v880 = vpop.f32.mrb[0].mxu0
        %v881 = vadd.f32 %v411, %v880
        %v882 = vpop.f32.mrb[0].mxu0
        %v883 = vadd.f32 %v415, %v882
        %v884 = vpop.f32.mrb[0].mxu0
        %v885 = vadd.f32 %v411, %v884
        %v886 = vpop.f32.mrb[0].mxu0
        %v887 = vadd.f32 %v415, %v886
        %888 = vmatprep.mubr.bf16.mxu0 0
        %889 = vmatmul.mubr.bf16.gmra.mrb[0].mxu0 %v337
        %v890 = vpop.f32.mrb[0].mxu0
        %v891 = vadd.f32 %v411, %v890
        %v892 = vpop.f32.mrb[0].mxu0
        %v893 = vadd.f32 %v415, %v892
        %v894 = vpop.f32.mrb[0].mxu0
        %v895 = vadd.f32 %v411, %v894
        %v896 = vpop.f32.mrb[0].mxu0
        %v897 = vadd.f32 %v415, %v896
        %898 = vmatprep.mubr.bf16.mxu0 0
        %899 = vmatmul.mubr.bf16.gmra.mrb[0].mxu0 %v338
        %v900 = vpop.f32.mrb[0].mxu0
        %v901 = vadd.f32 %v411, %v900
        %v902 = vpop.f32.mrb[0].mxu0
        %v903 = vadd.f32 %v415, %v902
        %v904 = vpop.f32.mrb[0].mxu0
        %v905 = vadd.f32 %v411, %v904
        %v906 = vpop.f32.mrb[0].mxu0
        %v907 = vadd.f32 %v415, %v906
        %908 = vmatprep.mubr.bf16.mxu0 0
        %909 = vmatmul.mubr.bf16.gmra.mrb[0].mxu0 %v339
        %v910 = vpop.f32.mrb[0].mxu0
        %v911 = vadd.f32 %v411, %v910
        %v912 = vpop.f32.mrb[0].mxu0
        %v913 = vadd.f32 %v415, %v912
        %v914 = vpop.f32.mrb[0].mxu0
        %v915 = vadd.f32 %v411, %v914
        %v916 = vpop.f32.mrb[0].mxu0
        %v917 = vadd.f32 %v415, %v916
        %918 = vmatprep.mubr.bf16.mxu0 0
        %919 = vmatmul.mubr.bf16.gmra.mrb[0].mxu0 %v340
        %v920 = vpop.f32.mrb[0].mxu0
        %v921 = vadd.f32 %v411, %v920
        %v922 = vpop.f32.mrb[0].mxu0
        %v923 = vadd.f32 %v415, %v922
        %v924 = vpop.f32.mrb[0].mxu0
        %v925 = vadd.f32 %v411, %v924
        %v926 = vpop.f32.mrb[0].mxu0
        %v927 = vadd.f32 %v415, %v926
        %928 = vmatprep.mubr.bf16.mxu0 0
        %929 = vmatmul.mubr.bf16.gmra.mrb[0].mxu0 %v341
        %v930 = vpop.f32.mrb[0].mxu0
        %v931 = vadd.f32 %v411, %v930
        %v932 = vpop.f32.mrb[0].mxu0
        %v933 = vadd.f32 %v415, %v932
        %v934 = vpop.f32.mrb[0].mxu0
        %v935 = vadd.f32 %v411, %v934
        %v936 = vpop.f32.mrb[0].mxu0
        %v937 = vadd.f32 %v415, %v936
        %938 = vmatprep.mubr.bf16.mxu0 0
        %939 = vmatmul.mubr.bf16.gmra.mrb[0].mxu0 %v342
        %v940 = vpop.f32.mrb[0].mxu0
        %v941 = vadd.f32 %v411, %v940
        %v942 = vpop.f32.mrb[0].mxu0
        %v943 = vadd.f32 %v415, %v942
        %v944 = vpop.f32.mrb[0].mxu0
        %v945 = vadd.f32 %v411, %v944
        %v946 = vpop.f32.mrb[0].mxu0
        %v947 = vadd.f32 %v415, %v946
        %948 = vmatprep.mubr.bf16.mxu0 0
        %949 = vmatmul.mubr.bf16.gmra.mrb[0].mxu0 %v343
        %v950 = vpop.f32.mrb[0].mxu0
        %v951 = vadd.f32 %v411, %v950
        %v952 = vpop.f32.mrb[0].mxu0
        %v953 = vadd.f32 %v415, %v952
        %v954 = vpop.f32.mrb[0].mxu0
        %v955 = vadd.f32 %v411, %v954
        %v956 = vpop.f32.mrb[0].mxu0
        %v957 = vadd.f32 %v415, %v956
        %958 = vmatprep.mubr.bf16.mxu0 0
        %959 = vmatmul.mubr.bf16.gmra.mrb[0].mxu0 %v344
        %v960 = vpop.f32.mrb[0].mxu0
        %v961 = vadd.f32 %v411, %v960
        %v962 = vpop.f32.mrb[0].mxu0
        %v963 = vadd.f32 %v415, %v962
        %v964 = vpop.f32.mrb[0].mxu0
        %v965 = vadd.f32 %v411, %v964
        %v966 = vpop.f32.mrb[0].mxu0
        %v967 = vadd.f32 %v415, %v966
        %968 = vmatprep.mubr.bf16.mxu0 0
        %969 = vmatmul.mubr.bf16.gmra.mrb[0].mxu0 %v345
        %v970 = vpop.f32.mrb[0].mxu0
        %v971 = vadd.f32 %v411, %v970
        %v972 = vpop.f32.mrb[0].mxu0
        %v973 = vadd.f32 %v415, %v972
        %v974 = vpop.f32.mrb[0].mxu0
        %v975 = vadd.f32 %v411, %v974
        %v976 = vpop.f32.mrb[0].mxu0
        %v977 = vadd.f32 %v415, %v976
        %978 = vmatprep.mubr.bf16.mxu0 0
        %979 = vmatmul.mubr.bf16.gmra.mrb[0].mxu0 %v346
        %v980 = vpop.f32.mrb[0].mxu0
        %v981 = vadd.f32 %v411, %v980
        %v982 = vpop.f32.mrb[0].mxu0
        %v983 = vadd.f32 %v415, %v982
        %v984 = vpop.f32.mrb[0].mxu0
        %v985 = vadd.f32 %v411, %v984
        %v986 = vpop.f32.mrb[0].mxu0
        %v987 = vadd.f32 %v415, %v986
        %988 = vmatprep.mubr.bf16.mxu0 0
        %989 = vmatmul.mubr.bf16.gmra.mrb[0].mxu0 %v347
        %v990 = vpop.f32.mrb[0].mxu0
        %v991 = vadd.f32 %v411, %v990
        %v992 = vpop.f32.mrb[0].mxu0
        %v993 = vadd.f32 %v415, %v992
        %v994 = vpop.f32.mrb[0].mxu0
        %v995 = vadd.f32 %v411, %v994
        %v996 = vpop.f32.mrb[0].mxu0
        %v997 = vadd.f32 %v415, %v996
        %998 = vmatprep.mubr.bf16.mxu0 0
        %999 = vmatmul.mubr.bf16.gmra.mrb[0].mxu0 %v348
        %v1000 = vpop.f32.mrb[0].mxu0
        %v1001 = vadd.f32 %v411, %v1000
        %v1002 = vpop.f32.mrb[0].mxu0
        %v1003 = vadd.f32 %v415, %v1002
        %v1004 = vpop.f32.mrb[0].mxu0
        %v1005 = vadd.f32 %v411, %v1004
        %v1006 = vpop.f32.mrb[0].mxu0
        %v1007 = vadd.f32 %v415, %v1006
        %1008 = vmatprep.mubr.bf16.mxu0 0
        %1009 = vmatmul.mubr.bf16.gmra.mrb[0].mxu0 %v349
        %v1010 = vpop.f32.mrb[0].mxu0
        %v1011 = vadd.f32 %v411, %v1010
        %v1012 = vpop.f32.mrb[0].mxu0
        %v1013 = vadd.f32 %v415, %v1012
        %v1014 = vpop.f32.mrb[0].mxu0
        %v1015 = vadd.f32 %v411, %v1014
        %v1016 = vpop.f32.mrb[0].mxu0
        %v1017 = vadd.f32 %v415, %v1016
        %1018 = vdwg.mxu0
        %1019 = vmatprep.subr.bf16.mxu0 0
        %1020 = vmatpush1.bf16.msra.mxu0 %v557
        %1021 = vmatprep.subr.bf16.mxu0 0
        %1022 = vmatpush1.bf16.msra.mxu0 %v562
        %1023 = vmatprep.subr.bf16.mxu0 0
        %1024 = vmatpush1.bf16.msra.mxu0 %v567
        %1025 = vmatprep.subr.bf16.mxu0 0
        %1026 = vmatpush1.bf16.msra.mxu0 %v572
        %1027 = vmatprep.subr.bf16.mxu0 0
        %1028 = vmatpush1.bf16.msra.mxu0 %v577
        %1029 = vmatprep.subr.bf16.mxu0 0
        %1030 = vmatpush1.bf16.msra.mxu0 %v582
        %1031 = vmatprep.subr.bf16.mxu0 0
        %1032 = vmatpush1.bf16.msra.mxu0 %v587
        %1033 = vmatprep.subr.bf16.mxu0 0
        %1034 = vmatpush1.bf16.msra.mxu0 %v592
        %1035 = vmatprep.subr.bf16.mxu0 0
        %1036 = vmatpush1.bf16.msra.mxu0 0
        %1037 = vmatprep.subr.bf16.mxu0 0
        %1038 = vmatpush1.bf16.msra.mxu0 0
        %1039 = vmatprep.subr.bf16.mxu0 0
        %1040 = vmatpush1.bf16.msra.mxu0 0
        %1041 = vmatprep.subr.bf16.mxu0 0
        %1042 = vmatpush1.bf16.msra.mxu0 0
        %1043 = vmatprep.subr.bf16.mxu0 0
        %1044 = vmatpush1.bf16.msra.mxu0 0
        %1045 = vmatprep.subr.bf16.mxu0 0
        %1046 = vmatpush1.bf16.msra.mxu0 0
        %1047 = vmatprep.subr.bf16.mxu0 0
        %1048 = vmatpush1.bf16.msra.mxu0 0
        %1049 = vmatprep.subr.bf16.mxu0 0
        %1050 = vmatpush1.bf16.msra.mxu0 0
        %1051 = vmatprep.mubr.bf16.mxu0 0
        %1052 = vmatmul.mubr.bf16.gmra.mrb[0].mxu0 %v334
        %v1053 = vpop.f32.mrb[0].mxu0
        %v1054 = vadd.f32 %v419, %v1053
        %v1055 = vpop.f32.mrb[0].mxu0
        %v1056 = vpop.f32.mrb[0].mxu0
        %v1057 = vadd.f32 %v419, %v1056
        %v1058 = vpop.f32.mrb[0].mxu0
        %1059 = vmatprep.mubr.bf16.mxu0 0
        %1060 = vmatmul.mubr.bf16.gmra.mrb[0].mxu0 %v335
        %v1061 = vpop.f32.mrb[0].mxu0
        %v1062 = vadd.f32 %v419, %v1061
        %v1063 = vpop.f32.mrb[0].mxu0
        %v1064 = vpop.f32.mrb[0].mxu0
        %v1065 = vadd.f32 %v419, %v1064
        %v1066 = vpop.f32.mrb[0].mxu0
        %1067 = vmatprep.mubr.bf16.mxu0 0
        %1068 = vmatmul.mubr.bf16.gmra.mrb[0].mxu0 %v336
        %v1069 = vpop.f32.mrb[0].mxu0
        %v1070 = vadd.f32 %v419, %v1069
        %v1071 = vpop.f32.mrb[0].mxu0
        %v1072 = vpop.f32.mrb[0].mxu0
        %v1073 = vadd.f32 %v419, %v1072
        %v1074 = vpop.f32.mrb[0].mxu0
        %1075 = vmatprep.mubr.bf16.mxu0 0
        %1076 = vmatmul.mubr.bf16.gmra.mrb[0].mxu0 %v337
        %v1077 = vpop.f32.mrb[0].mxu0
        %v1078 = vadd.f32 %v419, %v1077
        %v1079 = vpop.f32.mrb[0].mxu0
        %v1080 = vpop.f32.mrb[0].mxu0
        %v1081 = vadd.f32 %v419, %v1080
        %v1082 = vpop.f32.mrb[0].mxu0
        %1083 = vmatprep.mubr.bf16.mxu0 0
        %1084 = vmatmul.mubr.bf16.gmra.mrb[0].mxu0 %v338
        %v1085 = vpop.f32.mrb[0].mxu0
        %v1086 = vadd.f32 %v419, %v1085
        %v1087 = vpop.f32.mrb[0].mxu0
        %v1088 = vpop.f32.mrb[0].mxu0
        %v1089 = vadd.f32 %v419, %v1088
        %v1090 = vpop.f32.mrb[0].mxu0
        %1091 = vmatprep.mubr.bf16.mxu0 0
        %1092 = vmatmul.mubr.bf16.gmra.mrb[0].mxu0 %v339
        %v1093 = vpop.f32.mrb[0].mxu0
        %v1094 = vadd.f32 %v419, %v1093
        %v1095 = vpop.f32.mrb[0].mxu0
        %v1096 = vpop.f32.mrb[0].mxu0
        %v1097 = vadd.f32 %v419, %v1096
        %v1098 = vpop.f32.mrb[0].mxu0
        %1099 = vmatprep.mubr.bf16.mxu0 0
        %1100 = vmatmul.mubr.bf16.gmra.mrb[0].mxu0 %v340
        %v1101 = vpop.f32.mrb[0].mxu0
        %v1102 = vadd.f32 %v419, %v1101
        %v1103 = vpop.f32.mrb[0].mxu0
        %v1104 = vpop.f32.mrb[0].mxu0
        %v1105 = vadd.f32 %v419, %v1104
        %v1106 = vpop.f32.mrb[0].mxu0
        %1107 = vmatprep.mubr.bf16.mxu0 0
        %1108 = vmatmul.mubr.bf16.gmra.mrb[0].mxu0 %v341
        %v1109 = vpop.f32.mrb[0].mxu0
        %v1110 = vadd.f32 %v419, %v1109
        %v1111 = vpop.f32.mrb[0].mxu0
        %v1112 = vpop.f32.mrb[0].mxu0
        %v1113 = vadd.f32 %v419, %v1112
        %v1114 = vpop.f32.mrb[0].mxu0
        %1115 = vmatprep.mubr.bf16.mxu0 0
        %1116 = vmatmul.mubr.bf16.gmra.mrb[0].mxu0 %v342
        %v1117 = vpop.f32.mrb[0].mxu0
        %v1118 = vadd.f32 %v419, %v1117
        %v1119 = vpop.f32.mrb[0].mxu0
        %v1120 = vpop.f32.mrb[0].mxu0
        %v1121 = vadd.f32 %v419, %v1120
        %v1122 = vpop.f32.mrb[0].mxu0
        %1123 = vmatprep.mubr.bf16.mxu0 0
        %1124 = vmatmul.mubr.bf16.gmra.mrb[0].mxu0 %v343
        %v1125 = vpop.f32.mrb[0].mxu0
        %v1126 = vadd.f32 %v419, %v1125
        %v1127 = vpop.f32.mrb[0].mxu0
        %v1128 = vpop.f32.mrb[0].mxu0
        %v1129 = vadd.f32 %v419, %v1128
        %v1130 = vpop.f32.mrb[0].mxu0
        %1131 = vmatprep.mubr.bf16.mxu0 0
        %1132 = vmatmul.mubr.bf16.gmra.mrb[0].mxu0 %v344
        %v1133 = vpop.f32.mrb[0].mxu0
        %v1134 = vadd.f32 %v419, %v1133
        %v1135 = vpop.f32.mrb[0].mxu0
        %v1136 = vpop.f32.mrb[0].mxu0
        %v1137 = vadd.f32 %v419, %v1136
        %v1138 = vpop.f32.mrb[0].mxu0
        %1139 = vmatprep.mubr.bf16.mxu0 0
        %1140 = vmatmul.mubr.bf16.gmra.mrb[0].mxu0 %v345
        %v1141 = vpop.f32.mrb[0].mxu0
        %v1142 = vadd.f32 %v419, %v1141
        %v1143 = vpop.f32.mrb[0].mxu0
        %v1144 = vpop.f32.mrb[0].mxu0
        %v1145 = vadd.f32 %v419, %v1144
        %v1146 = vpop.f32.mrb[0].mxu0
        %1147 = vmatprep.mubr.bf16.mxu0 0
        %1148 = vmatmul.mubr.bf16.gmra.mrb[0].mxu0 %v346
        %v1149 = vpop.f32.mrb[0].mxu0
        %v1150 = vadd.f32 %v419, %v1149
        %v1151 = vpop.f32.mrb[0].mxu0
        %v1152 = vpop.f32.mrb[0].mxu0
        %v1153 = vadd.f32 %v419, %v1152
        %v1154 = vpop.f32.mrb[0].mxu0
        %1155 = vmatprep.mubr.bf16.mxu0 0
        %1156 = vmatmul.mubr.bf16.gmra.mrb[0].mxu0 %v347
        %v1157 = vpop.f32.mrb[0].mxu0
        %v1158 = vadd.f32 %v419, %v1157
        %v1159 = vpop.f32.mrb[0].mxu0
        %v1160 = vpop.f32.mrb[0].mxu0
        %v1161 = vadd.f32 %v419, %v1160
        %v1162 = vpop.f32.mrb[0].mxu0
        %1163 = vmatprep.mubr.bf16.mxu0 0
        %1164 = vmatmul.mubr.bf16.gmra.mrb[0].mxu0 %v348
        %v1165 = vpop.f32.mrb[0].mxu0
        %v1166 = vadd.f32 %v419, %v1165
        %v1167 = vpop.f32.mrb[0].mxu0
        %v1168 = vpop.f32.mrb[0].mxu0
        %v1169 = vadd.f32 %v419, %v1168
        %v1170 = vpop.f32.mrb[0].mxu0
        %1171 = vmatprep.mubr.bf16.mxu0 0
        %1172 = vmatmul.mubr.bf16.gmra.mrb[0].mxu0 %v349
        %v1173 = vpop.f32.mrb[0].mxu0
        %v1174 = vadd.f32 %v419, %v1173
        %v1175 = vpop.f32.mrb[0].mxu0
        %v1176 = vpop.f32.mrb[0].mxu0
        %v1177 = vadd.f32 %v419, %v1176
        %v1178 = vpop.f32.mrb[0].mxu0
        %1179 = vdwg.mxu0
        %v1180 = vmax.f32 %v668, 0.0
        %v1181 = vmax.f32 %v670, 0.0
        %v1182 = vmax.f32 %v861, 0.0
        %v1183 = vmax.f32 %v863, 0.0
        %v1184 = vmax.f32 %v1054, 0.0
        %v1185 = vmax.f32 %v672, 0.0
        %v1186 = vmax.f32 %v674, 0.0
        %v1187 = vmax.f32 %v865, 0.0
        %v1188 = vmax.f32 %v867, 0.0
        %v1189 = vmax.f32 %v1057, 0.0
        %v1190 = vmax.f32 %v678, 0.0
        %v1191 = vmax.f32 %v680, 0.0
        %v1192 = vmax.f32 %v871, 0.0
        %v1193 = vmax.f32 %v873, 0.0
        %v1194 = vmax.f32 %v1062, 0.0
        %v1195 = vmax.f32 %v682, 0.0
        %v1196 = vmax.f32 %v684, 0.0
        %v1197 = vmax.f32 %v875, 0.0
        %v1198 = vmax.f32 %v877, 0.0
        %v1199 = vmax.f32 %v1065, 0.0
        %v1200 = vmax.f32 %v688, 0.0
        %v1201 = vmax.f32 %v690, 0.0
        %v1202 = vmax.f32 %v881, 0.0
        %v1203 = vmax.f32 %v883, 0.0
        %v1204 = vmax.f32 %v1070, 0.0
        %v1205 = vmax.f32 %v692, 0.0
        %v1206 = vmax.f32 %v694, 0.0
        %v1207 = vmax.f32 %v885, 0.0
        %v1208 = vmax.f32 %v887, 0.0
        %v1209 = vmax.f32 %v1073, 0.0
        %v1210 = vmax.f32 %v698, 0.0
        %v1211 = vmax.f32 %v700, 0.0
        %v1212 = vmax.f32 %v891, 0.0
        %v1213 = vmax.f32 %v893, 0.0
        %v1214 = vmax.f32 %v1078, 0.0
        %v1215 = vmax.f32 %v702, 0.0
        %v1216 = vmax.f32 %v704, 0.0
        %v1217 = vmax.f32 %v895, 0.0
        %v1218 = vmax.f32 %v897, 0.0
        %v1219 = vmax.f32 %v1081, 0.0
        %v1220 = vmax.f32 %v708, 0.0
        %v1221 = vmax.f32 %v710, 0.0
        %v1222 = vmax.f32 %v901, 0.0
        %v1223 = vmax.f32 %v903, 0.0
        %v1224 = vmax.f32 %v1086, 0.0
        %v1225 = vmax.f32 %v712, 0.0
        %v1226 = vmax.f32 %v714, 0.0
        %v1227 = vmax.f32 %v905, 0.0
        %v1228 = vmax.f32 %v907, 0.0
        %v1229 = vmax.f32 %v1089, 0.0
        %v1230 = vmax.f32 %v718, 0.0
        %v1231 = vmax.f32 %v720, 0.0
        %v1232 = vmax.f32 %v911, 0.0
        %v1233 = vmax.f32 %v913, 0.0
        %v1234 = vmax.f32 %v1094, 0.0
        %v1235 = vmax.f32 %v722, 0.0
        %v1236 = vmax.f32 %v724, 0.0
        %v1237 = vmax.f32 %v915, 0.0
        %v1238 = vmax.f32 %v917, 0.0
        %v1239 = vmax.f32 %v1097, 0.0
        %v1240 = vmax.f32 %v728, 0.0
        %v1241 = vmax.f32 %v730, 0.0
        %v1242 = vmax.f32 %v921, 0.0
        %v1243 = vmax.f32 %v923, 0.0
        %v1244 = vmax.f32 %v1102, 0.0
        %v1245 = vmax.f32 %v732, 0.0
        %v1246 = vmax.f32 %v734, 0.0
        %v1247 = vmax.f32 %v925, 0.0
        %v1248 = vmax.f32 %v927, 0.0
        %v1249 = vmax.f32 %v1105, 0.0
        %v1250 = vmax.f32 %v738, 0.0
        %v1251 = vmax.f32 %v740, 0.0
        %v1252 = vmax.f32 %v931, 0.0
        %v1253 = vmax.f32 %v933, 0.0
        %v1254 = vmax.f32 %v1110, 0.0
        %v1255 = vmax.f32 %v742, 0.0
        %v1256 = vmax.f32 %v744, 0.0
        %v1257 = vmax.f32 %v935, 0.0
        %v1258 = vmax.f32 %v937, 0.0
        %v1259 = vmax.f32 %v1113, 0.0
        %v1260 = vmax.f32 %v748, 0.0
        %v1261 = vmax.f32 %v750, 0.0
        %v1262 = vmax.f32 %v941, 0.0
        %v1263 = vmax.f32 %v943, 0.0
        %v1264 = vmax.f32 %v1118, 0.0
        %v1265 = vmax.f32 %v752, 0.0
        %v1266 = vmax.f32 %v754, 0.0
        %v1267 = vmax.f32 %v945, 0.0
        %v1268 = vmax.f32 %v947, 0.0
        %v1269 = vmax.f32 %v1121, 0.0
        %v1270 = vmax.f32 %v758, 0.0
        %v1271 = vmax.f32 %v760, 0.0
        %v1272 = vmax.f32 %v951, 0.0
        %v1273 = vmax.f32 %v953, 0.0
        %v1274 = vmax.f32 %v1126, 0.0
        %v1275 = vmax.f32 %v762, 0.0
        %v1276 = vmax.f32 %v764, 0.0
        %v1277 = vmax.f32 %v955, 0.0
        %v1278 = vmax.f32 %v957, 0.0
        %v1279 = vmax.f32 %v1129, 0.0
        %v1280 = vmax.f32 %v768, 0.0
        %v1281 = vmax.f32 %v770, 0.0
        %v1282 = vmax.f32 %v961, 0.0
        %v1283 = vmax.f32 %v963, 0.0
        %v1284 = vmax.f32 %v1134, 0.0
        %v1285 = vmax.f32 %v772, 0.0
        %v1286 = vmax.f32 %v774, 0.0
        %v1287 = vmax.f32 %v965, 0.0
        %v1288 = vmax.f32 %v967, 0.0
        %v1289 = vmax.f32 %v1137, 0.0
        %v1290 = vmax.f32 %v778, 0.0
        %v1291 = vmax.f32 %v780, 0.0
        %v1292 = vmax.f32 %v971, 0.0
        %v1293 = vmax.f32 %v973, 0.0
        %v1294 = vmax.f32 %v1142, 0.0
        %v1295 = vmax.f32 %v782, 0.0
        %v1296 = vmax.f32 %v784, 0.0
        %v1297 = vmax.f32 %v975, 0.0
        %v1298 = vmax.f32 %v977, 0.0
        %v1299 = vmax.f32 %v1145, 0.0
        %v1300 = vmax.f32 %v788, 0.0
        %v1301 = vmax.f32 %v790, 0.0
        %v1302 = vmax.f32 %v981, 0.0
        %v1303 = vmax.f32 %v983, 0.0
        %v1304 = vmax.f32 %v1150, 0.0
        %v1305 = vmax.f32 %v792, 0.0
        %v1306 = vmax.f32 %v794, 0.0
        %v1307 = vmax.f32 %v985, 0.0
        %v1308 = vmax.f32 %v987, 0.0
        %v1309 = vmax.f32 %v1153, 0.0
        %v1310 = vmax.f32 %v798, 0.0
        %v1311 = vmax.f32 %v800, 0.0
        %v1312 = vmax.f32 %v991, 0.0
        %v1313 = vmax.f32 %v993, 0.0
        %v1314 = vmax.f32 %v1158, 0.0
        %v1315 = vmax.f32 %v802, 0.0
        %v1316 = vmax.f32 %v804, 0.0
        %v1317 = vmax.f32 %v995, 0.0
        %v1318 = vmax.f32 %v997, 0.0
        %v1319 = vmax.f32 %v1161, 0.0
        %v1320 = vmax.f32 %v808, 0.0
        %v1321 = vmax.f32 %v810, 0.0
        %v1322 = vmax.f32 %v1001, 0.0
        %v1323 = vmax.f32 %v1003, 0.0
        %v1324 = vmax.f32 %v1166, 0.0
        %v1325 = vmax.f32 %v812, 0.0
        %v1326 = vmax.f32 %v814, 0.0
        %v1327 = vmax.f32 %v1005, 0.0
        %v1328 = vmax.f32 %v1007, 0.0
        %v1329 = vmax.f32 %v1169, 0.0
        %v1330 = vmax.f32 %v818, 0.0
        %v1331 = vmax.f32 %v820, 0.0
        %v1332 = vmax.f32 %v1011, 0.0
        %v1333 = vmax.f32 %v1013, 0.0
        %v1334 = vmax.f32 %v1174, 0.0
        %v1335 = vmax.f32 %v822, 0.0
        %v1336 = vmax.f32 %v824, 0.0
        %v1337 = vmax.f32 %v1015, 0.0
        %v1338 = vmax.f32 %v1017, 0.0
        %v1339 = vmax.f32 %v1177, 0.0
        %v1340 = vpack.c.bf16 %v1185, %v1180
        %v1341 = vpack.c.bf16 %v1186, %v1181
        %v1342 = vpack.c.bf16 %v1187, %v1182
        %v1343 = vpack.c.bf16 %v1188, %v1183
        %v1344 = vpack.c.bf16 %v1195, %v1190
        %v1345 = vpack.c.bf16 %v1196, %v1191
        %v1346 = vpack.c.bf16 %v1197, %v1192
        %v1347 = vpack.c.bf16 %v1198, %v1193
        %v1348 = vpack.c.bf16 %v1205, %v1200
        %v1349 = vpack.c.bf16 %v1206, %v1201
        %v1350 = vpack.c.bf16 %v1207, %v1202
        %v1351 = vpack.c.bf16 %v1208, %v1203
        %v1352 = vpack.c.bf16 %v1215, %v1210
        %v1353 = vpack.c.bf16 %v1216, %v1211
        %v1354 = vpack.c.bf16 %v1217, %v1212
        %v1355 = vpack.c.bf16 %v1218, %v1213
        %v1356 = vpack.c.bf16 %v1225, %v1220
        %v1357 = vpack.c.bf16 %v1226, %v1221
        %v1358 = vpack.c.bf16 %v1227, %v1222
        %v1359 = vpack.c.bf16 %v1228, %v1223
        %v1360 = vpack.c.bf16 %v1235, %v1230
        %v1361 = vpack.c.bf16 %v1236, %v1231
        %v1362 = vpack.c.bf16 %v1237, %v1232
        %v1363 = vpack.c.bf16 %v1238, %v1233
        %v1364 = vpack.c.bf16 %v1245, %v1240
        %v1365 = vpack.c.bf16 %v1246, %v1241
        %v1366 = vpack.c.bf16 %v1247, %v1242
        %v1367 = vpack.c.bf16 %v1248, %v1243
        %v1368 = vpack.c.bf16 %v1255, %v1250
        %v1369 = vpack.c.bf16 %v1256, %v1251
        %v1370 = vpack.c.bf16 %v1257, %v1252
        %v1371 = vpack.c.bf16 %v1258, %v1253
        %v1372 = vpack.c.bf16 %v1265, %v1260
        %v1373 = vpack.c.bf16 %v1266, %v1261
        %v1374 = vpack.c.bf16 %v1267, %v1262
        %v1375 = vpack.c.bf16 %v1268, %v1263
        %v1376 = vpack.c.bf16 %v1275, %v1270
        %v1377 = vpack.c.bf16 %v1276, %v1271
        %v1378 = vpack.c.bf16 %v1277, %v1272
        %v1379 = vpack.c.bf16 %v1278, %v1273
        %v1380 = vpack.c.bf16 %v1285, %v1280
        %v1381 = vpack.c.bf16 %v1286, %v1281
        %v1382 = vpack.c.bf16 %v1287, %v1282
        %v1383 = vpack.c.bf16 %v1288, %v1283
        %v1384 = vpack.c.bf16 %v1295, %v1290
        %v1385 = vpack.c.bf16 %v1296, %v1291
        %v1386 = vpack.c.bf16 %v1297, %v1292
        %v1387 = vpack.c.bf16 %v1298, %v1293
        %v1388 = vpack.c.bf16 %v1305, %v1300
        %v1389 = vpack.c.bf16 %v1306, %v1301
        %v1390 = vpack.c.bf16 %v1307, %v1302
        %v1391 = vpack.c.bf16 %v1308, %v1303
        %v1392 = vpack.c.bf16 %v1315, %v1310
        %v1393 = vpack.c.bf16 %v1316, %v1311
        %v1394 = vpack.c.bf16 %v1317, %v1312
        %v1395 = vpack.c.bf16 %v1318, %v1313
        %v1396 = vpack.c.bf16 %v1325, %v1320
        %v1397 = vpack.c.bf16 %v1326, %v1321
        %v1398 = vpack.c.bf16 %v1327, %v1322
        %v1399 = vpack.c.bf16 %v1328, %v1323
        %v1400 = vpack.c.bf16 %v1335, %v1330
        %v1401 = vpack.c.bf16 %v1336, %v1331
        %v1402 = vpack.c.bf16 %v1337, %v1332
        %v1403 = vpack.c.bf16 %v1338, %v1333
        %v1404 = vpack.c.bf16 %v1189, %v1184
        %v1405 = vpack.c.bf16 %v1199, %v1194
        %v1406 = vpack.c.bf16 %v1209, %v1204
        %v1407 = vpack.c.bf16 %v1219, %v1214
        %v1408 = vpack.c.bf16 %v1229, %v1224
        %v1409 = vpack.c.bf16 %v1239, %v1234
        %v1410 = vpack.c.bf16 %v1249, %v1244
        %v1411 = vpack.c.bf16 %v1259, %v1254
        %v1412 = vpack.c.bf16 %v1269, %v1264
        %v1413 = vpack.c.bf16 %v1279, %v1274
        %v1414 = vpack.c.bf16 %v1289, %v1284
        %v1415 = vpack.c.bf16 %v1299, %v1294
        %v1416 = vpack.c.bf16 %v1309, %v1304
        %v1417 = vpack.c.bf16 %v1319, %v1314
        %v1418 = vpack.c.bf16 %v1329, %v1324
        %v1419 = vpack.c.bf16 %v1339, %v1334
        %v1420 = vld [vmem:[%s5] sm:$0xf]
        %v1421 = vld [vmem:[%s5 + $0x4] sm:$0xf]
        %v1422 = vld [vmem:[%s5 + $0x8] sm:$0xf]
        %v1423 = vld [vmem:[%s5 + $0xc] sm:$0xf]
        %v1424 = vld [vmem:[%s5 + $0x10] sm:$0xf]
        %v1425 = vld [vmem:[%s5 + $0x14] sm:$0xf]
        %v1426 = vld [vmem:[%s5 + $0x18] sm:$0xf]
        %v1427 = vld [vmem:[%s5 + $0x1c] sm:$0xf]
        %v1428 = vld [vmem:[%s5 + $0x20] sm:$0xf]
        %v1429 = vld [vmem:[%s5 + $0x24] sm:$0xf]
        %v1430 = vld [vmem:[%s5 + $0x28] sm:$0xf]
        %v1431 = vld [vmem:[%s5 + $0x2c] sm:$0xf]
        %v1432 = vld [vmem:[%s5 + $0x30] sm:$0xf]
        %v1433 = vld [vmem:[%s5 + $0x34] sm:$0xf]
        %v1434 = vld [vmem:[%s5 + $0x38] sm:$0xf]
        %v1435 = vld [vmem:[%s5 + $0x3c] sm:$0xf]
        %v1436 = vld [vmem:[%s6] sm:$0x1]
        %v1438 = vlaneseq
        %v1439 = vshrl.u32 %v1438, 7
        %v1440 = vsub.s32 0, %v1439
        %v1441 = vrot.slane %v1436, %v1440
        %v1459 = vunpack.c.l.b16 %v1420
        %v1460 = vunpack.c.l.b16 %v1421
        %v1461 = vunpack.c.l.b16 %v1422
        %v1462 = vunpack.c.l.b16 %v1423
        %v1463 = vunpack.c.l.b16 %v1424
        %v1464 = vunpack.c.l.b16 %v1425
        %v1465 = vunpack.c.l.b16 %v1426
        %v1466 = vunpack.c.l.b16 %v1427
        %v1467 = vunpack.c.l.b16 %v1428
        %v1468 = vunpack.c.l.b16 %v1429
        %v1469 = vunpack.c.l.b16 %v1430
        %v1470 = vunpack.c.l.b16 %v1431
        %v1471 = vunpack.c.l.b16 %v1432
        %v1472 = vunpack.c.l.b16 %v1433
        %v1473 = vunpack.c.l.b16 %v1434
        %v1474 = vunpack.c.l.b16 %v1435
        %v1475 = vpack.c.b16 %v1460, %v1459
        %v1476 = vpack.c.b16 %v1462, %v1461
        %v1477 = vpack.c.b16 %v1464, %v1463
        %v1478 = vpack.c.b16 %v1466, %v1465
        %v1479 = vpack.c.b16 %v1468, %v1467
        %v1480 = vpack.c.b16 %v1470, %v1469
        %v1481 = vpack.c.b16 %v1472, %v1471
        %v1482 = vpack.c.b16 %v1474, %v1473
        %1491 = vmatprep.subr.bf16.mxu0 0
        %1492 = vmatpush1.bf16.msra.mxu0 %v1475
        %1493 = vmatprep.subr.bf16.mxu0 0
        %1494 = vmatpush1.bf16.msra.mxu0 %v1476
        %1495 = vmatprep.subr.bf16.mxu0 0
        %1496 = vmatpush1.bf16.msra.mxu0 %v1477
        %1497 = vmatprep.subr.bf16.mxu0 0
        %1498 = vmatpush1.bf16.msra.mxu0 %v1478
        %1499 = vmatprep.subr.bf16.mxu0 0
        %1500 = vmatpush1.bf16.msra.mxu0 %v1479
        %1501 = vmatprep.subr.bf16.mxu0 0
        %1502 = vmatpush1.bf16.msra.mxu0 %v1480
        %1503 = vmatprep.subr.bf16.mxu0 0
        %1504 = vmatpush1.bf16.msra.mxu0 %v1481
        %1505 = vmatprep.subr.bf16.mxu0 0
        %1506 = vmatpush1.bf16.msra.mxu0 %v1482
        %1507 = vmatprep.subr.bf16.mxu0 0
        %1508 = vmatpush1.bf16.msra.mxu0 0
        %1509 = vmatprep.subr.bf16.mxu0 0
        %1510 = vmatpush1.bf16.msra.mxu0 0
        %1511 = vmatprep.subr.bf16.mxu0 0
        %1512 = vmatpush1.bf16.msra.mxu0 0
        %1513 = vmatprep.subr.bf16.mxu0 0
        %1514 = vmatpush1.bf16.msra.mxu0 0
        %1515 = vmatprep.subr.bf16.mxu0 0
        %1516 = vmatpush1.bf16.msra.mxu0 0
        %1517 = vmatprep.subr.bf16.mxu0 0
        %1518 = vmatpush1.bf16.msra.mxu0 0
        %1519 = vmatprep.subr.bf16.mxu0 0
        %1520 = vmatpush1.bf16.msra.mxu0 0
        %1521 = vmatprep.subr.bf16.mxu0 0
        %1522 = vmatpush1.bf16.msra.mxu0 0
        %1523 = vmatprep.mubr.bf16.mxu0 0
        %1524 = vmatmul.mubr.bf16.gmra.mrb[0].mxu0 %v1404
        %v1525 = vpop.f32.mrb[0].mxu0
        %v1526 = vadd.f32 %v1441, %v1525
        %v1527 = vpop.f32.mrb[0].mxu0
        %v1528 = vpop.f32.mrb[0].mxu0
        %v1529 = vadd.f32 %v1441, %v1528
        %v1530 = vpop.f32.mrb[0].mxu0
        %1531 = vmatprep.mubr.bf16.mxu0 0
        %1532 = vmatmul.mubr.bf16.gmra.mrb[0].mxu0 %v1405
        %v1533 = vpop.f32.mrb[0].mxu0
        %v1534 = vadd.f32 %v1441, %v1533
        %v1535 = vpop.f32.mrb[0].mxu0
        %v1536 = vpop.f32.mrb[0].mxu0
        %v1537 = vadd.f32 %v1441, %v1536
        %v1538 = vpop.f32.mrb[0].mxu0
        %1539 = vmatprep.mubr.bf16.mxu0 0
        %1540 = vmatmul.mubr.bf16.gmra.mrb[0].mxu0 %v1406
        %v1541 = vpop.f32.mrb[0].mxu0
        %v1542 = vadd.f32 %v1441, %v1541
        %v1543 = vpop.f32.mrb[0].mxu0
        %v1544 = vpop.f32.mrb[0].mxu0
        %v1545 = vadd.f32 %v1441, %v1544
        %v1546 = vpop.f32.mrb[0].mxu0
        %1547 = vmatprep.mubr.bf16.mxu0 0
        %1548 = vmatmul.mubr.bf16.gmra.mrb[0].mxu0 %v1407
        %v1549 = vpop.f32.mrb[0].mxu0
        %v1550 = vadd.f32 %v1441, %v1549
        %v1551 = vpop.f32.mrb[0].mxu0
        %v1552 = vpop.f32.mrb[0].mxu0
        %v1553 = vadd.f32 %v1441, %v1552
        %v1554 = vpop.f32.mrb[0].mxu0
        %1555 = vmatprep.mubr.bf16.mxu0 0
        %1556 = vmatmul.mubr.bf16.gmra.mrb[0].mxu0 %v1408
        %v1557 = vpop.f32.mrb[0].mxu0
        %v1558 = vadd.f32 %v1441, %v1557
        %v1559 = vpop.f32.mrb[0].mxu0
        %v1560 = vpop.f32.mrb[0].mxu0
        %v1561 = vadd.f32 %v1441, %v1560
        %v1562 = vpop.f32.mrb[0].mxu0
        %1563 = vmatprep.mubr.bf16.mxu0 0
        %1564 = vmatmul.mubr.bf16.gmra.mrb[0].mxu0 %v1409
        %v1565 = vpop.f32.mrb[0].mxu0
        %v1566 = vadd.f32 %v1441, %v1565
        %v1567 = vpop.f32.mrb[0].mxu0
        %v1568 = vpop.f32.mrb[0].mxu0
        %v1569 = vadd.f32 %v1441, %v1568
        %v1570 = vpop.f32.mrb[0].mxu0
        %1571 = vmatprep.mubr.bf16.mxu0 0
        %1572 = vmatmul.mubr.bf16.gmra.mrb[0].mxu0 %v1410
        %v1573 = vpop.f32.mrb[0].mxu0
        %v1574 = vadd.f32 %v1441, %v1573
        %v1575 = vpop.f32.mrb[0].mxu0
        %v1576 = vpop.f32.mrb[0].mxu0
        %v1577 = vadd.f32 %v1441, %v1576
        %v1578 = vpop.f32.mrb[0].mxu0
        %1579 = vmatprep.mubr.bf16.mxu0 0
        %1580 = vmatmul.mubr.bf16.gmra.mrb[0].mxu0 %v1411
        %v1581 = vpop.f32.mrb[0].mxu0
        %v1582 = vadd.f32 %v1441, %v1581
        %v1583 = vpop.f32.mrb[0].mxu0
        %v1584 = vpop.f32.mrb[0].mxu0
        %v1585 = vadd.f32 %v1441, %v1584
        %v1586 = vpop.f32.mrb[0].mxu0
        %1587 = vmatprep.mubr.bf16.mxu0 0
        %1588 = vmatmul.mubr.bf16.gmra.mrb[0].mxu0 %v1412
        %v1589 = vpop.f32.mrb[0].mxu0
        %v1590 = vadd.f32 %v1441, %v1589
        %v1591 = vpop.f32.mrb[0].mxu0
        %v1592 = vpop.f32.mrb[0].mxu0
        %v1593 = vadd.f32 %v1441, %v1592
        %v1594 = vpop.f32.mrb[0].mxu0
        %1595 = vmatprep.mubr.bf16.mxu0 0
        %1596 = vmatmul.mubr.bf16.gmra.mrb[0].mxu0 %v1413
        %v1597 = vpop.f32.mrb[0].mxu0
        %v1598 = vadd.f32 %v1441, %v1597
        %v1599 = vpop.f32.mrb[0].mxu0
        %v1600 = vpop.f32.mrb[0].mxu0
        %v1601 = vadd.f32 %v1441, %v1600
        %v1602 = vpop.f32.mrb[0].mxu0
        %1603 = vmatprep.mubr.bf16.mxu0 0
        %1604 = vmatmul.mubr.bf16.gmra.mrb[0].mxu0 %v1414
        %v1605 = vpop.f32.mrb[0].mxu0
        %v1606 = vadd.f32 %v1441, %v1605
        %v1607 = vpop.f32.mrb[0].mxu0
        %v1608 = vpop.f32.mrb[0].mxu0
        %v1609 = vadd.f32 %v1441, %v1608
        %v1610 = vpop.f32.mrb[0].mxu0
        %1611 = vmatprep.mubr.bf16.mxu0 0
        %1612 = vmatmul.mubr.bf16.gmra.mrb[0].mxu0 %v1415
        %v1613 = vpop.f32.mrb[0].mxu0
        %v1614 = vadd.f32 %v1441, %v1613
        %v1615 = vpop.f32.mrb[0].mxu0
        %v1616 = vpop.f32.mrb[0].mxu0
        %v1617 = vadd.f32 %v1441, %v1616
        %v1618 = vpop.f32.mrb[0].mxu0
        %1619 = vmatprep.mubr.bf16.mxu0 0
        %1620 = vmatmul.mubr.bf16.gmra.mrb[0].mxu0 %v1416
        %v1621 = vpop.f32.mrb[0].mxu0
        %v1622 = vadd.f32 %v1441, %v1621
        %v1623 = vpop.f32.mrb[0].mxu0
        %v1624 = vpop.f32.mrb[0].mxu0
        %v1625 = vadd.f32 %v1441, %v1624
        %v1626 = vpop.f32.mrb[0].mxu0
        %1627 = vmatprep.mubr.bf16.mxu0 0
        %1628 = vmatmul.mubr.bf16.gmra.mrb[0].mxu0 %v1417
        %v1629 = vpop.f32.mrb[0].mxu0
        %v1630 = vadd.f32 %v1441, %v1629
        %v1631 = vpop.f32.mrb[0].mxu0
        %v1632 = vpop.f32.mrb[0].mxu0
        %v1633 = vadd.f32 %v1441, %v1632
        %v1634 = vpop.f32.mrb[0].mxu0
        %1635 = vmatprep.mubr.bf16.mxu0 0
        %1636 = vmatmul.mubr.bf16.gmra.mrb[0].mxu0 %v1418
        %v1637 = vpop.f32.mrb[0].mxu0
        %v1638 = vadd.f32 %v1441, %v1637
        %v1639 = vpop.f32.mrb[0].mxu0
        %v1640 = vpop.f32.mrb[0].mxu0
        %v1641 = vadd.f32 %v1441, %v1640
        %v1642 = vpop.f32.mrb[0].mxu0
        %1643 = vmatprep.mubr.bf16.mxu0 0
        %1644 = vmatmul.mubr.bf16.gmra.mrb[0].mxu0 %v1419
        %v1645 = vpop.f32.mrb[0].mxu0
        %v1646 = vadd.f32 %v1441, %v1645
        %v1647 = vpop.f32.mrb[0].mxu0
        %v1648 = vpop.f32.mrb[0].mxu0
        %v1649 = vadd.f32 %v1441, %v1648
        %v1650 = vpop.f32.mrb[0].mxu0
        %1651 = vdwg.mxu0
        %vm1652 = vcmask 31744
        %v1653 = vsel %vm1652, %v1526, -inf
        %1654 = vmax.xlane.f32.xlu0 %v1653
        %v1655 = vpop.xlane.xlu0 %1654
        %v1656 = vsel %vm1652, %v1529, -inf
        %1657 = vmax.xlane.f32.xlu0 %v1656
        %v1658 = vpop.xlane.xlu0 %1657
        %v1659 = vsel %vm1652, %v1534, -inf
        %1660 = vmax.xlane.f32.xlu0 %v1659
        %v1661 = vpop.xlane.xlu0 %1660
        %v1662 = vsel %vm1652, %v1537, -inf
        %1663 = vmax.xlane.f32.xlu0 %v1662
        %v1664 = vpop.xlane.xlu0 %1663
        %v1665 = vsel %vm1652, %v1542, -inf
        %1666 = vmax.xlane.f32.xlu0 %v1665
        %v1667 = vpop.xlane.xlu0 %1666
        %v1668 = vsel %vm1652, %v1545, -inf
        %1669 = vmax.xlane.f32.xlu0 %v1668
        %v1670 = vpop.xlane.xlu0 %1669
        %v1671 = vsel %vm1652, %v1550, -inf
        %1672 = vmax.xlane.f32.xlu0 %v1671
        %v1673 = vpop.xlane.xlu0 %1672
        %v1674 = vsel %vm1652, %v1553, -inf
        %1675 = vmax.xlane.f32.xlu0 %v1674
        %v1676 = vpop.xlane.xlu0 %1675
        %v1677 = vsel %vm1652, %v1558, -inf
        %1678 = vmax.xlane.f32.xlu0 %v1677
        %v1679 = vpop.xlane.xlu0 %1678
        %v1680 = vsel %vm1652, %v1561, -inf
        %1681 = vmax.xlane.f32.xlu0 %v1680
        %v1682 = vpop.xlane.xlu0 %1681
        %v1683 = vsel %vm1652, %v1566, -inf
        %1684 = vmax.xlane.f32.xlu0 %v1683
        %v1685 = vpop.xlane.xlu0 %1684
        %v1686 = vsel %vm1652, %v1569, -inf
        %1687 = vmax.xlane.f32.xlu0 %v1686
        %v1688 = vpop.xlane.xlu0 %1687
        %v1689 = vsel %vm1652, %v1574, -inf
        %1690 = vmax.xlane.f32.xlu0 %v1689
        %v1691 = vpop.xlane.xlu0 %1690
        %v1692 = vsel %vm1652, %v1577, -inf
        %1693 = vmax.xlane.f32.xlu0 %v1692
        %v1694 = vpop.xlane.xlu0 %1693
        %v1695 = vsel %vm1652, %v1582, -inf
        %1696 = vmax.xlane.f32.xlu0 %v1695
        %v1697 = vpop.xlane.xlu0 %1696
        %v1698 = vsel %vm1652, %v1585, -inf
        %1699 = vmax.xlane.f32.xlu0 %v1698
        %v1700 = vpop.xlane.xlu0 %1699
        %v1701 = vsel %vm1652, %v1590, -inf
        %1702 = vmax.xlane.f32.xlu0 %v1701
        %v1703 = vpop.xlane.xlu0 %1702
        %v1704 = vsel %vm1652, %v1593, -inf
        %1705 = vmax.xlane.f32.xlu0 %v1704
        %v1706 = vpop.xlane.xlu0 %1705
        %v1707 = vsel %vm1652, %v1598, -inf
        %1708 = vmax.xlane.f32.xlu0 %v1707
        %v1709 = vpop.xlane.xlu0 %1708
        %v1710 = vsel %vm1652, %v1601, -inf
        %1711 = vmax.xlane.f32.xlu0 %v1710
        %v1712 = vpop.xlane.xlu0 %1711
        %v1713 = vsel %vm1652, %v1606, -inf
        %1714 = vmax.xlane.f32.xlu0 %v1713
        %v1715 = vpop.xlane.xlu0 %1714
        %v1716 = vsel %vm1652, %v1609, -inf
        %1717 = vmax.xlane.f32.xlu0 %v1716
        %v1718 = vpop.xlane.xlu0 %1717
        %v1719 = vsel %vm1652, %v1614, -inf
        %1720 = vmax.xlane.f32.xlu0 %v1719
        %v1721 = vpop.xlane.xlu0 %1720
        %v1722 = vsel %vm1652, %v1617, -inf
        %1723 = vmax.xlane.f32.xlu0 %v1722
        %v1724 = vpop.xlane.xlu0 %1723
        %v1725 = vsel %vm1652, %v1622, -inf
        %1726 = vmax.xlane.f32.xlu0 %v1725
        %v1727 = vpop.xlane.xlu0 %1726
        %v1728 = vsel %vm1652, %v1625, -inf
        %1729 = vmax.xlane.f32.xlu0 %v1728
        %v1730 = vpop.xlane.xlu0 %1729
        %v1731 = vsel %vm1652, %v1630, -inf
        %1732 = vmax.xlane.f32.xlu0 %v1731
        %v1733 = vpop.xlane.xlu0 %1732
        %v1734 = vsel %vm1652, %v1633, -inf
        %1735 = vmax.xlane.f32.xlu0 %v1734
        %v1736 = vpop.xlane.xlu0 %1735
        %v1737 = vsel %vm1652, %v1638, -inf
        %1738 = vmax.xlane.f32.xlu0 %v1737
        %v1739 = vpop.xlane.xlu0 %1738
        %v1740 = vsel %vm1652, %v1641, -inf
        %1741 = vmax.xlane.f32.xlu0 %v1740
        %v1742 = vpop.xlane.xlu0 %1741
        %v1743 = vsel %vm1652, %v1646, -inf
        %1744 = vmax.xlane.f32.xlu0 %v1743
        %v1745 = vpop.xlane.xlu0 %1744
        %v1746 = vsel %vm1652, %v1649, -inf
        %1747 = vmax.xlane.f32.xlu0 %v1746
        %v1748 = vpop.xlane.xlu0 %1747
        %v1749 = vsub.f32 %v1526, %v1655
        %v1750 = vsub.f32 %v1529, %v1658
        %v1751 = vsub.f32 %v1534, %v1661
        %v1752 = vsub.f32 %v1537, %v1664
        %v1753 = vsub.f32 %v1542, %v1667
        %v1754 = vsub.f32 %v1545, %v1670
        %v1755 = vsub.f32 %v1550, %v1673
        %v1756 = vsub.f32 %v1553, %v1676
        %v1757 = vsub.f32 %v1558, %v1679
        %v1758 = vsub.f32 %v1561, %v1682
        %v1759 = vsub.f32 %v1566, %v1685
        %v1760 = vsub.f32 %v1569, %v1688
        %v1761 = vsub.f32 %v1574, %v1691
        %v1762 = vsub.f32 %v1577, %v1694
        %v1763 = vsub.f32 %v1582, %v1697
        %v1764 = vsub.f32 %v1585, %v1700
        %v1765 = vsub.f32 %v1590, %v1703
        %v1766 = vsub.f32 %v1593, %v1706
        %v1767 = vsub.f32 %v1598, %v1709
        %v1768 = vsub.f32 %v1601, %v1712
        %v1769 = vsub.f32 %v1606, %v1715
        %v1770 = vsub.f32 %v1609, %v1718
        %v1771 = vsub.f32 %v1614, %v1721
        %v1772 = vsub.f32 %v1617, %v1724
        %v1773 = vsub.f32 %v1622, %v1727
        %v1774 = vsub.f32 %v1625, %v1730
        %v1775 = vsub.f32 %v1630, %v1733
        %v1776 = vsub.f32 %v1633, %v1736
        %v1777 = vsub.f32 %v1638, %v1739
        %v1778 = vsub.f32 %v1641, %v1742
        %v1779 = vsub.f32 %v1646, %v1745
        %v1780 = vsub.f32 %v1649, %v1748
        %v1781 = vmul.f32 %v1749, 1.442695
        %v1782 = vpow.pop %v1781
        %v1783 = vmul.f32 %v1750, 1.442695
        %v1784 = vpow.pop %v1783
        %v1785 = vmul.f32 %v1751, 1.442695
        %v1786 = vpow.pop %v1785
        %v1787 = vmul.f32 %v1752, 1.442695
        %v1788 = vpow.pop %v1787
        %v1789 = vmul.f32 %v1753, 1.442695
        %v1790 = vpow.pop %v1789
        %v1791 = vmul.f32 %v1754, 1.442695
        %v1792 = vpow.pop %v1791
        %v1793 = vmul.f32 %v1755, 1.442695
        %v1794 = vpow.pop %v1793
        %v1795 = vmul.f32 %v1756, 1.442695
        %v1796 = vpow.pop %v1795
        %v1797 = vmul.f32 %v1757, 1.442695
        %v1798 = vpow.pop %v1797
        %v1799 = vmul.f32 %v1758, 1.442695
        %v1800 = vpow.pop %v1799
        %v1801 = vmul.f32 %v1759, 1.442695
        %v1802 = vpow.pop %v1801
        %v1803 = vmul.f32 %v1760, 1.442695
        %v1804 = vpow.pop %v1803
        %v1805 = vmul.f32 %v1761, 1.442695
        %v1806 = vpow.pop %v1805
        %v1807 = vmul.f32 %v1762, 1.442695
        %v1808 = vpow.pop %v1807
        %v1809 = vmul.f32 %v1763, 1.442695
        %v1810 = vpow.pop %v1809
        %v1811 = vmul.f32 %v1764, 1.442695
        %v1812 = vpow.pop %v1811
        %v1813 = vmul.f32 %v1765, 1.442695
        %v1814 = vpow.pop %v1813
        %v1815 = vmul.f32 %v1766, 1.442695
        %v1816 = vpow.pop %v1815
        %v1817 = vmul.f32 %v1767, 1.442695
        %v1818 = vpow.pop %v1817
        %v1819 = vmul.f32 %v1768, 1.442695
        %v1820 = vpow.pop %v1819
        %v1821 = vmul.f32 %v1769, 1.442695
        %v1822 = vpow.pop %v1821
        %v1823 = vmul.f32 %v1770, 1.442695
        %v1824 = vpow.pop %v1823
        %v1825 = vmul.f32 %v1771, 1.442695
        %v1826 = vpow.pop %v1825
        %v1827 = vmul.f32 %v1772, 1.442695
        %v1828 = vpow.pop %v1827
        %v1829 = vmul.f32 %v1773, 1.442695
        %v1830 = vpow.pop %v1829
        %v1831 = vmul.f32 %v1774, 1.442695
        %v1832 = vpow.pop %v1831
        %v1833 = vmul.f32 %v1775, 1.442695
        %v1834 = vpow.pop %v1833
        %v1835 = vmul.f32 %v1776, 1.442695
        %v1836 = vpow.pop %v1835
        %v1837 = vmul.f32 %v1777, 1.442695
        %v1838 = vpow.pop %v1837
        %v1839 = vmul.f32 %v1778, 1.442695
        %v1840 = vpow.pop %v1839
        %v1841 = vmul.f32 %v1779, 1.442695
        %v1842 = vpow.pop %v1841
        %v1843 = vmul.f32 %v1780, 1.442695
        %v1844 = vpow.pop %v1843
        %v1845 = vsel %vm1652, %v1782, 0.0
        %1846 = vadd.xlane.f32.xlu0 %v1845
        %v1847 = vpop.xlane.xlu0 %1846
        %v1848 = vsel %vm1652, %v1784, 0.0
        %1849 = vadd.xlane.f32.xlu0 %v1848
        %v1850 = vpop.xlane.xlu0 %1849
        %v1851 = vsel %vm1652, %v1786, 0.0
        %1852 = vadd.xlane.f32.xlu0 %v1851
        %v1853 = vpop.xlane.xlu0 %1852
        %v1854 = vsel %vm1652, %v1788, 0.0
        %1855 = vadd.xlane.f32.xlu0 %v1854
        %v1856 = vpop.xlane.xlu0 %1855
        %v1857 = vsel %vm1652, %v1790, 0.0
        %1858 = vadd.xlane.f32.xlu0 %v1857
        %v1859 = vpop.xlane.xlu0 %1858
        %v1860 = vsel %vm1652, %v1792, 0.0
        %1861 = vadd.xlane.f32.xlu0 %v1860
        %v1862 = vpop.xlane.xlu0 %1861
        %v1863 = vsel %vm1652, %v1794, 0.0
        %1864 = vadd.xlane.f32.xlu0 %v1863
        %v1865 = vpop.xlane.xlu0 %1864
        %v1866 = vsel %vm1652, %v1796, 0.0
        %1867 = vadd.xlane.f32.xlu0 %v1866
        %v1868 = vpop.xlane.xlu0 %1867
        %v1869 = vsel %vm1652, %v1798, 0.0
        %1870 = vadd.xlane.f32.xlu0 %v1869
        %v1871 = vpop.xlane.xlu0 %1870
        %v1872 = vsel %vm1652, %v1800, 0.0
        %1873 = vadd.xlane.f32.xlu0 %v1872
        %v1874 = vpop.xlane.xlu0 %1873
        %v1875 = vsel %vm1652, %v1802, 0.0
        %1876 = vadd.xlane.f32.xlu0 %v1875
        %v1877 = vpop.xlane.xlu0 %1876
        %v1878 = vsel %vm1652, %v1804, 0.0
        %1879 = vadd.xlane.f32.xlu0 %v1878
        %v1880 = vpop.xlane.xlu0 %1879
        %v1881 = vsel %vm1652, %v1806, 0.0
        %1882 = vadd.xlane.f32.xlu0 %v1881
        %v1883 = vpop.xlane.xlu0 %1882
        %v1884 = vsel %vm1652, %v1808, 0.0
        %1885 = vadd.xlane.f32.xlu0 %v1884
        %v1886 = vpop.xlane.xlu0 %1885
        %v1887 = vsel %vm1652, %v1810, 0.0
        %1888 = vadd.xlane.f32.xlu0 %v1887
        %v1889 = vpop.xlane.xlu0 %1888
        %v1890 = vsel %vm1652, %v1812, 0.0
        %1891 = vadd.xlane.f32.xlu0 %v1890
        %v1892 = vpop.xlane.xlu0 %1891
        %v1893 = vsel %vm1652, %v1814, 0.0
        %1894 = vadd.xlane.f32.xlu0 %v1893
        %v1895 = vpop.xlane.xlu0 %1894
        %v1896 = vsel %vm1652, %v1816, 0.0
        %1897 = vadd.xlane.f32.xlu0 %v1896
        %v1898 = vpop.xlane.xlu0 %1897
        %v1899 = vsel %vm1652, %v1818, 0.0
        %1900 = vadd.xlane.f32.xlu0 %v1899
        %v1901 = vpop.xlane.xlu0 %1900
        %v1902 = vsel %vm1652, %v1820, 0.0
        %1903 = vadd.xlane.f32.xlu0 %v1902
        %v1904 = vpop.xlane.xlu0 %1903
        %v1905 = vsel %vm1652, %v1822, 0.0
        %1906 = vadd.xlane.f32.xlu0 %v1905
        %v1907 = vpop.xlane.xlu0 %1906
        %v1908 = vsel %vm1652, %v1824, 0.0
        %1909 = vadd.xlane.f32.xlu0 %v1908
        %v1910 = vpop.xlane.xlu0 %1909
        %v1911 = vsel %vm1652, %v1826, 0.0
        %1912 = vadd.xlane.f32.xlu0 %v1911
        %v1913 = vpop.xlane.xlu0 %1912
        %v1914 = vsel %vm1652, %v1828, 0.0
        %1915 = vadd.xlane.f32.xlu0 %v1914
        %v1916 = vpop.xlane.xlu0 %1915
        %v1917 = vsel %vm1652, %v1830, 0.0
        %1918 = vadd.xlane.f32.xlu0 %v1917
        %v1919 = vpop.xlane.xlu0 %1918
        %v1920 = vsel %vm1652, %v1832, 0.0
        %1921 = vadd.xlane.f32.xlu0 %v1920
        %v1922 = vpop.xlane.xlu0 %1921
        %v1923 = vsel %vm1652, %v1834, 0.0
        %1924 = vadd.xlane.f32.xlu0 %v1923
        %v1925 = vpop.xlane.xlu0 %1924
        %v1926 = vsel %vm1652, %v1836, 0.0
        %1927 = vadd.xlane.f32.xlu0 %v1926
        %v1928 = vpop.xlane.xlu0 %1927
        %v1929 = vsel %vm1652, %v1838, 0.0
        %1930 = vadd.xlane.f32.xlu0 %v1929
        %v1931 = vpop.xlane.xlu0 %1930
        %v1932 = vsel %vm1652, %v1840, 0.0
        %1933 = vadd.xlane.f32.xlu0 %v1932
        %v1934 = vpop.xlane.xlu0 %1933
        %v1935 = vsel %vm1652, %v1842, 0.0
        %1936 = vadd.xlane.f32.xlu0 %v1935
        %v1937 = vpop.xlane.xlu0 %1936
        %v1938 = vsel %vm1652, %v1844, 0.0
        %1939 = vadd.xlane.f32.xlu0 %v1938
        %v1940 = vpop.xlane.xlu0 %1939
        %v1941 = vrcp.pop %v1847
        %v1942 = vrcp.pop %v1850
        %v1943 = vrcp.pop %v1853
        %v1944 = vrcp.pop %v1856
        %v1945 = vrcp.pop %v1859
        %v1946 = vrcp.pop %v1862
        %v1947 = vrcp.pop %v1865
        %v1948 = vrcp.pop %v1868
        %v1949 = vrcp.pop %v1871
        %v1950 = vrcp.pop %v1874
        %v1951 = vrcp.pop %v1877
        %v1952 = vrcp.pop %v1880
        %v1953 = vrcp.pop %v1883
        %v1954 = vrcp.pop %v1886
        %v1955 = vrcp.pop %v1889
        %v1956 = vrcp.pop %v1892
        %v1957 = vrcp.pop %v1895
        %v1958 = vrcp.pop %v1898
        %v1959 = vrcp.pop %v1901
        %v1960 = vrcp.pop %v1904
        %v1961 = vrcp.pop %v1907
        %v1962 = vrcp.pop %v1910
        %v1963 = vrcp.pop %v1913
        %v1964 = vrcp.pop %v1916
        %v1965 = vrcp.pop %v1919
        %v1966 = vrcp.pop %v1922
        %v1967 = vrcp.pop %v1925
        %v1968 = vrcp.pop %v1928
        %v1969 = vrcp.pop %v1931
        %v1970 = vrcp.pop %v1934
        %v1971 = vrcp.pop %v1937
        %v1972 = vrcp.pop %v1940
        %v1973 = vmul.f32 %v1782, %v1941
        %v1974 = vmul.f32 %v1784, %v1942
        %v1975 = vmul.f32 %v1786, %v1943
        %v1976 = vmul.f32 %v1788, %v1944
        %v1977 = vmul.f32 %v1790, %v1945
        %v1978 = vmul.f32 %v1792, %v1946
        %v1979 = vmul.f32 %v1794, %v1947
        %v1980 = vmul.f32 %v1796, %v1948
        %v1981 = vmul.f32 %v1798, %v1949
        %v1982 = vmul.f32 %v1800, %v1950
        %v1983 = vmul.f32 %v1802, %v1951
        %v1984 = vmul.f32 %v1804, %v1952
        %v1985 = vmul.f32 %v1806, %v1953
        %v1986 = vmul.f32 %v1808, %v1954
        %v1987 = vmul.f32 %v1810, %v1955
        %v1988 = vmul.f32 %v1812, %v1956
        %v1989 = vmul.f32 %v1814, %v1957
        %v1990 = vmul.f32 %v1816, %v1958
        %v1991 = vmul.f32 %v1818, %v1959
        %v1992 = vmul.f32 %v1820, %v1960
        %v1993 = vmul.f32 %v1822, %v1961
        %v1994 = vmul.f32 %v1824, %v1962
        %v1995 = vmul.f32 %v1826, %v1963
        %v1996 = vmul.f32 %v1828, %v1964
        %v1997 = vmul.f32 %v1830, %v1965
        %v1998 = vmul.f32 %v1832, %v1966
        %v1999 = vmul.f32 %v1834, %v1967
        %v2000 = vmul.f32 %v1836, %v1968
        %v2001 = vmul.f32 %v1838, %v1969
        %v2002 = vmul.f32 %v1840, %v1970
        %v2003 = vmul.f32 %v1842, %v1971
        %v2004 = vmul.f32 %v1844, %v1972
        %vm2005 = vcmask 64544
        %v2006 = vsel %vm2005, %v1526, -inf
        %2007 = vmax.xlane.f32.xlu0 %v2006
        %v2008 = vpop.xlane.xlu0 %2007
        %v2009 = vsel %vm2005, %v1529, -inf
        %2010 = vmax.xlane.f32.xlu0 %v2009
        %v2011 = vpop.xlane.xlu0 %2010
        %v2012 = vsel %vm2005, %v1534, -inf
        %2013 = vmax.xlane.f32.xlu0 %v2012
        %v2014 = vpop.xlane.xlu0 %2013
        %v2015 = vsel %vm2005, %v1537, -inf
        %2016 = vmax.xlane.f32.xlu0 %v2015
        %v2017 = vpop.xlane.xlu0 %2016
        %v2018 = vsel %vm2005, %v1542, -inf
        %2019 = vmax.xlane.f32.xlu0 %v2018
        %v2020 = vpop.xlane.xlu0 %2019
        %v2021 = vsel %vm2005, %v1545, -inf
        %2022 = vmax.xlane.f32.xlu0 %v2021
        %v2023 = vpop.xlane.xlu0 %2022
        %v2024 = vsel %vm2005, %v1550, -inf
        %2025 = vmax.xlane.f32.xlu0 %v2024
        %v2026 = vpop.xlane.xlu0 %2025
        %v2027 = vsel %vm2005, %v1553, -inf
        %2028 = vmax.xlane.f32.xlu0 %v2027
        %v2029 = vpop.xlane.xlu0 %2028
        %v2030 = vsel %vm2005, %v1558, -inf
        %2031 = vmax.xlane.f32.xlu0 %v2030
        %v2032 = vpop.xlane.xlu0 %2031
        %v2033 = vsel %vm2005, %v1561, -inf
        %2034 = vmax.xlane.f32.xlu0 %v2033
        %v2035 = vpop.xlane.xlu0 %2034
        %v2036 = vsel %vm2005, %v1566, -inf
        %2037 = vmax.xlane.f32.xlu0 %v2036
        %v2038 = vpop.xlane.xlu0 %2037
        %v2039 = vsel %vm2005, %v1569, -inf
        %2040 = vmax.xlane.f32.xlu0 %v2039
        %v2041 = vpop.xlane.xlu0 %2040
        %v2042 = vsel %vm2005, %v1574, -inf
        %2043 = vmax.xlane.f32.xlu0 %v2042
        %v2044 = vpop.xlane.xlu0 %2043
        %v2045 = vsel %vm2005, %v1577, -inf
        %2046 = vmax.xlane.f32.xlu0 %v2045
        %v2047 = vpop.xlane.xlu0 %2046
        %v2048 = vsel %vm2005, %v1582, -inf
        %2049 = vmax.xlane.f32.xlu0 %v2048
        %v2050 = vpop.xlane.xlu0 %2049
        %v2051 = vsel %vm2005, %v1585, -inf
        %2052 = vmax.xlane.f32.xlu0 %v2051
        %v2053 = vpop.xlane.xlu0 %2052
        %v2054 = vsel %vm2005, %v1590, -inf
        %2055 = vmax.xlane.f32.xlu0 %v2054
        %v2056 = vpop.xlane.xlu0 %2055
        %v2057 = vsel %vm2005, %v1593, -inf
        %2058 = vmax.xlane.f32.xlu0 %v2057
        %v2059 = vpop.xlane.xlu0 %2058
        %v2060 = vsel %vm2005, %v1598, -inf
        %2061 = vmax.xlane.f32.xlu0 %v2060
        %v2062 = vpop.xlane.xlu0 %2061
        %v2063 = vsel %vm2005, %v1601, -inf
        %2064 = vmax.xlane.f32.xlu0 %v2063
        %v2065 = vpop.xlane.xlu0 %2064
        %v2066 = vsel %vm2005, %v1606, -inf
        %2067 = vmax.xlane.f32.xlu0 %v2066
        %v2068 = vpop.xlane.xlu0 %2067
        %v2069 = vsel %vm2005, %v1609, -inf
        %2070 = vmax.xlane.f32.xlu0 %v2069
        %v2071 = vpop.xlane.xlu0 %2070
        %v2072 = vsel %vm2005, %v1614, -inf
        %2073 = vmax.xlane.f32.xlu0 %v2072
        %v2074 = vpop.xlane.xlu0 %2073
        %v2075 = vsel %vm2005, %v1617, -inf
        %2076 = vmax.xlane.f32.xlu0 %v2075
        %v2077 = vpop.xlane.xlu0 %2076
        %v2078 = vsel %vm2005, %v1622, -inf
        %2079 = vmax.xlane.f32.xlu0 %v2078
        %v2080 = vpop.xlane.xlu0 %2079
        %v2081 = vsel %vm2005, %v1625, -inf
        %2082 = vmax.xlane.f32.xlu0 %v2081
        %v2083 = vpop.xlane.xlu0 %2082
        %v2084 = vsel %vm2005, %v1630, -inf
        %2085 = vmax.xlane.f32.xlu0 %v2084
        %v2086 = vpop.xlane.xlu0 %2085
        %v2087 = vsel %vm2005, %v1633, -inf
        %2088 = vmax.xlane.f32.xlu0 %v2087
        %v2089 = vpop.xlane.xlu0 %2088
        %v2090 = vsel %vm2005, %v1638, -inf
        %2091 = vmax.xlane.f32.xlu0 %v2090
        %v2092 = vpop.xlane.xlu0 %2091
        %v2093 = vsel %vm2005, %v1641, -inf
        %2094 = vmax.xlane.f32.xlu0 %v2093
        %v2095 = vpop.xlane.xlu0 %2094
        %v2096 = vsel %vm2005, %v1646, -inf
        %2097 = vmax.xlane.f32.xlu0 %v2096
        %v2098 = vpop.xlane.xlu0 %2097
        %v2099 = vsel %vm2005, %v1649, -inf
        %2100 = vmax.xlane.f32.xlu0 %v2099
        %v2101 = vpop.xlane.xlu0 %2100
        %v2102 = vsub.f32 %v1526, %v2008
        %v2103 = vsub.f32 %v1529, %v2011
        %v2104 = vsub.f32 %v1534, %v2014
        %v2105 = vsub.f32 %v1537, %v2017
        %v2106 = vsub.f32 %v1542, %v2020
        %v2107 = vsub.f32 %v1545, %v2023
        %v2108 = vsub.f32 %v1550, %v2026
        %v2109 = vsub.f32 %v1553, %v2029
        %v2110 = vsub.f32 %v1558, %v2032
        %v2111 = vsub.f32 %v1561, %v2035
        %v2112 = vsub.f32 %v1566, %v2038
        %v2113 = vsub.f32 %v1569, %v2041
        %v2114 = vsub.f32 %v1574, %v2044
        %v2115 = vsub.f32 %v1577, %v2047
        %v2116 = vsub.f32 %v1582, %v2050
        %v2117 = vsub.f32 %v1585, %v2053
        %v2118 = vsub.f32 %v1590, %v2056
        %v2119 = vsub.f32 %v1593, %v2059
        %v2120 = vsub.f32 %v1598, %v2062
        %v2121 = vsub.f32 %v1601, %v2065
        %v2122 = vsub.f32 %v1606, %v2068
        %v2123 = vsub.f32 %v1609, %v2071
        %v2124 = vsub.f32 %v1614, %v2074
        %v2125 = vsub.f32 %v1617, %v2077
        %v2126 = vsub.f32 %v1622, %v2080
        %v2127 = vsub.f32 %v1625, %v2083
        %v2128 = vsub.f32 %v1630, %v2086
        %v2129 = vsub.f32 %v1633, %v2089
        %v2130 = vsub.f32 %v1638, %v2092
        %v2131 = vsub.f32 %v1641, %v2095
        %v2132 = vsub.f32 %v1646, %v2098
        %v2133 = vsub.f32 %v1649, %v2101
        %v2134 = vmul.f32 %v2102, 1.442695
        %v2135 = vpow.pop %v2134
        %v2136 = vmul.f32 %v2103, 1.442695
        %v2137 = vpow.pop %v2136
        %v2138 = vmul.f32 %v2104, 1.442695
        %v2139 = vpow.pop %v2138
        %v2140 = vmul.f32 %v2105, 1.442695
        %v2141 = vpow.pop %v2140
        %v2142 = vmul.f32 %v2106, 1.442695
        %v2143 = vpow.pop %v2142
        %v2144 = vmul.f32 %v2107, 1.442695
        %v2145 = vpow.pop %v2144
        %v2146 = vmul.f32 %v2108, 1.442695
        %v2147 = vpow.pop %v2146
        %v2148 = vmul.f32 %v2109, 1.442695
        %v2149 = vpow.pop %v2148
        %v2150 = vmul.f32 %v2110, 1.442695
        %v2151 = vpow.pop %v2150
        %v2152 = vmul.f32 %v2111, 1.442695
        %v2153 = vpow.pop %v2152
        %v2154 = vmul.f32 %v2112, 1.442695
        %v2155 = vpow.pop %v2154
        %v2156 = vmul.f32 %v2113, 1.442695
        %v2157 = vpow.pop %v2156
        %v2158 = vmul.f32 %v2114, 1.442695
        %v2159 = vpow.pop %v2158
        %v2160 = vmul.f32 %v2115, 1.442695
        %v2161 = vpow.pop %v2160
        %v2162 = vmul.f32 %v2116, 1.442695
        %v2163 = vpow.pop %v2162
        %v2164 = vmul.f32 %v2117, 1.442695
        %v2165 = vpow.pop %v2164
        %v2166 = vmul.f32 %v2118, 1.442695
        %v2167 = vpow.pop %v2166
        %v2168 = vmul.f32 %v2119, 1.442695
        %v2169 = vpow.pop %v2168
        %v2170 = vmul.f32 %v2120, 1.442695
        %v2171 = vpow.pop %v2170
        %v2172 = vmul.f32 %v2121, 1.442695
        %v2173 = vpow.pop %v2172
        %v2174 = vmul.f32 %v2122, 1.442695
        %v2175 = vpow.pop %v2174
        %v2176 = vmul.f32 %v2123, 1.442695
        %v2177 = vpow.pop %v2176
        %v2178 = vmul.f32 %v2124, 1.442695
        %v2179 = vpow.pop %v2178
        %v2180 = vmul.f32 %v2125, 1.442695
        %v2181 = vpow.pop %v2180
        %v2182 = vmul.f32 %v2126, 1.442695
        %v2183 = vpow.pop %v2182
        %v2184 = vmul.f32 %v2127, 1.442695
        %v2185 = vpow.pop %v2184
        %v2186 = vmul.f32 %v2128, 1.442695
        %v2187 = vpow.pop %v2186
        %v2188 = vmul.f32 %v2129, 1.442695
        %v2189 = vpow.pop %v2188
        %v2190 = vmul.f32 %v2130, 1.442695
        %v2191 = vpow.pop %v2190
        %v2192 = vmul.f32 %v2131, 1.442695
        %v2193 = vpow.pop %v2192
        %v2194 = vmul.f32 %v2132, 1.442695
        %v2195 = vpow.pop %v2194
        %v2196 = vmul.f32 %v2133, 1.442695
        %v2197 = vpow.pop %v2196
        %2230 = vrot.lane.b32.xlu0 %v2135, 124
        %v2231 = vpop.permute.xlu0 %2230
        %2232 = vrot.lane.b32.xlu0 %v2137, 124
        %v2233 = vpop.permute.xlu0 %2232
        %2234 = vrot.lane.b32.xlu0 %v2139, 124
        %v2235 = vpop.permute.xlu0 %2234
        %2236 = vrot.lane.b32.xlu0 %v2141, 124
        %v2237 = vpop.permute.xlu0 %2236
        %2238 = vrot.lane.b32.xlu0 %v2143, 124
        %v2239 = vpop.permute.xlu0 %2238
        %2240 = vrot.lane.b32.xlu0 %v2145, 124
        %v2241 = vpop.permute.xlu0 %2240
        %2242 = vrot.lane.b32.xlu0 %v2147, 124
        %v2243 = vpop.permute.xlu0 %2242
        %2244 = vrot.lane.b32.xlu0 %v2149, 124
        %v2245 = vpop.permute.xlu0 %2244
        %2246 = vrot.lane.b32.xlu0 %v2151, 124
        %v2247 = vpop.permute.xlu0 %2246
        %2248 = vrot.lane.b32.xlu0 %v2153, 124
        %v2249 = vpop.permute.xlu0 %2248
        %2250 = vrot.lane.b32.xlu0 %v2155, 124
        %v2251 = vpop.permute.xlu0 %2250
        %2252 = vrot.lane.b32.xlu0 %v2157, 124
        %v2253 = vpop.permute.xlu0 %2252
        %2254 = vrot.lane.b32.xlu0 %v2159, 124
        %v2255 = vpop.permute.xlu0 %2254
        %2256 = vrot.lane.b32.xlu0 %v2161, 124
        %v2257 = vpop.permute.xlu0 %2256
        %2258 = vrot.lane.b32.xlu0 %v2163, 124
        %v2259 = vpop.permute.xlu0 %2258
        %2260 = vrot.lane.b32.xlu0 %v2165, 124
        %v2261 = vpop.permute.xlu0 %2260
        %2262 = vrot.lane.b32.xlu0 %v2167, 124
        %v2263 = vpop.permute.xlu0 %2262
        %2264 = vrot.lane.b32.xlu0 %v2169, 124
        %v2265 = vpop.permute.xlu0 %2264
        %2266 = vrot.lane.b32.xlu0 %v2171, 124
        %v2267 = vpop.permute.xlu0 %2266
        %2268 = vrot.lane.b32.xlu0 %v2173, 124
        %v2269 = vpop.permute.xlu0 %2268
        %2270 = vrot.lane.b32.xlu0 %v2175, 124
        %v2271 = vpop.permute.xlu0 %2270
        %2272 = vrot.lane.b32.xlu0 %v2177, 124
        %v2273 = vpop.permute.xlu0 %2272
        %2274 = vrot.lane.b32.xlu0 %v2179, 124
        %v2275 = vpop.permute.xlu0 %2274
        %2276 = vrot.lane.b32.xlu0 %v2181, 124
        %v2277 = vpop.permute.xlu0 %2276
        %2278 = vrot.lane.b32.xlu0 %v2183, 124
        %v2279 = vpop.permute.xlu0 %2278
        %2280 = vrot.lane.b32.xlu0 %v2185, 124
        %v2281 = vpop.permute.xlu0 %2280
        %2282 = vrot.lane.b32.xlu0 %v2187, 124
        %v2283 = vpop.permute.xlu0 %2282
        %2284 = vrot.lane.b32.xlu0 %v2189, 124
        %v2285 = vpop.permute.xlu0 %2284
        %2286 = vrot.lane.b32.xlu0 %v2191, 124
        %v2287 = vpop.permute.xlu0 %2286
        %2288 = vrot.lane.b32.xlu0 %v2193, 124
        %v2289 = vpop.permute.xlu0 %2288
        %2290 = vrot.lane.b32.xlu0 %v2195, 124
        %v2291 = vpop.permute.xlu0 %2290
        %2292 = vrot.lane.b32.xlu0 %v2197, 124
        %v2293 = vpop.permute.xlu0 %2292
        %v2326 = vsel %vm1652, %v2231, 0.0
        %2327 = vadd.xlane.f32.xlu0 %v2326
        %v2328 = vpop.xlane.xlu0 %2327
        %v2329 = vsel %vm1652, %v2233, 0.0
        %2330 = vadd.xlane.f32.xlu0 %v2329
        %v2331 = vpop.xlane.xlu0 %2330
        %v2332 = vsel %vm1652, %v2235, 0.0
        %2333 = vadd.xlane.f32.xlu0 %v2332
        %v2334 = vpop.xlane.xlu0 %2333
        %v2335 = vsel %vm1652, %v2237, 0.0
        %2336 = vadd.xlane.f32.xlu0 %v2335
        %v2337 = vpop.xlane.xlu0 %2336
        %v2338 = vsel %vm1652, %v2239, 0.0
        %2339 = vadd.xlane.f32.xlu0 %v2338
        %v2340 = vpop.xlane.xlu0 %2339
        %v2341 = vsel %vm1652, %v2241, 0.0
        %2342 = vadd.xlane.f32.xlu0 %v2341
        %v2343 = vpop.xlane.xlu0 %2342
        %v2344 = vsel %vm1652, %v2243, 0.0
        %2345 = vadd.xlane.f32.xlu0 %v2344
        %v2346 = vpop.xlane.xlu0 %2345
        %v2347 = vsel %vm1652, %v2245, 0.0
        %2348 = vadd.xlane.f32.xlu0 %v2347
        %v2349 = vpop.xlane.xlu0 %2348
        %v2350 = vsel %vm1652, %v2247, 0.0
        %2351 = vadd.xlane.f32.xlu0 %v2350
        %v2352 = vpop.xlane.xlu0 %2351
        %v2353 = vsel %vm1652, %v2249, 0.0
        %2354 = vadd.xlane.f32.xlu0 %v2353
        %v2355 = vpop.xlane.xlu0 %2354
        %v2356 = vsel %vm1652, %v2251, 0.0
        %2357 = vadd.xlane.f32.xlu0 %v2356
        %v2358 = vpop.xlane.xlu0 %2357
        %v2359 = vsel %vm1652, %v2253, 0.0
        %2360 = vadd.xlane.f32.xlu0 %v2359
        %v2361 = vpop.xlane.xlu0 %2360
        %v2362 = vsel %vm1652, %v2255, 0.0
        %2363 = vadd.xlane.f32.xlu0 %v2362
        %v2364 = vpop.xlane.xlu0 %2363
        %v2365 = vsel %vm1652, %v2257, 0.0
        %2366 = vadd.xlane.f32.xlu0 %v2365
        %v2367 = vpop.xlane.xlu0 %2366
        %v2368 = vsel %vm1652, %v2259, 0.0
        %2369 = vadd.xlane.f32.xlu0 %v2368
        %v2370 = vpop.xlane.xlu0 %2369
        %v2371 = vsel %vm1652, %v2261, 0.0
        %2372 = vadd.xlane.f32.xlu0 %v2371
        %v2373 = vpop.xlane.xlu0 %2372
        %v2374 = vsel %vm1652, %v2263, 0.0
        %2375 = vadd.xlane.f32.xlu0 %v2374
        %v2376 = vpop.xlane.xlu0 %2375
        %v2377 = vsel %vm1652, %v2265, 0.0
        %2378 = vadd.xlane.f32.xlu0 %v2377
        %v2379 = vpop.xlane.xlu0 %2378
        %v2380 = vsel %vm1652, %v2267, 0.0
        %2381 = vadd.xlane.f32.xlu0 %v2380
        %v2382 = vpop.xlane.xlu0 %2381
        %v2383 = vsel %vm1652, %v2269, 0.0
        %2384 = vadd.xlane.f32.xlu0 %v2383
        %v2385 = vpop.xlane.xlu0 %2384
        %v2386 = vsel %vm1652, %v2271, 0.0
        %2387 = vadd.xlane.f32.xlu0 %v2386
        %v2388 = vpop.xlane.xlu0 %2387
        %v2389 = vsel %vm1652, %v2273, 0.0
        %2390 = vadd.xlane.f32.xlu0 %v2389
        %v2391 = vpop.xlane.xlu0 %2390
        %v2392 = vsel %vm1652, %v2275, 0.0
        %2393 = vadd.xlane.f32.xlu0 %v2392
        %v2394 = vpop.xlane.xlu0 %2393
        %v2395 = vsel %vm1652, %v2277, 0.0
        %2396 = vadd.xlane.f32.xlu0 %v2395
        %v2397 = vpop.xlane.xlu0 %2396
        %v2398 = vsel %vm1652, %v2279, 0.0
        %2399 = vadd.xlane.f32.xlu0 %v2398
        %v2400 = vpop.xlane.xlu0 %2399
        %v2401 = vsel %vm1652, %v2281, 0.0
        %2402 = vadd.xlane.f32.xlu0 %v2401
        %v2403 = vpop.xlane.xlu0 %2402
        %v2404 = vsel %vm1652, %v2283, 0.0
        %2405 = vadd.xlane.f32.xlu0 %v2404
        %v2406 = vpop.xlane.xlu0 %2405
        %v2407 = vsel %vm1652, %v2285, 0.0
        %2408 = vadd.xlane.f32.xlu0 %v2407
        %v2409 = vpop.xlane.xlu0 %2408
        %v2410 = vsel %vm1652, %v2287, 0.0
        %2411 = vadd.xlane.f32.xlu0 %v2410
        %v2412 = vpop.xlane.xlu0 %2411
        %v2413 = vsel %vm1652, %v2289, 0.0
        %2414 = vadd.xlane.f32.xlu0 %v2413
        %v2415 = vpop.xlane.xlu0 %2414
        %v2416 = vsel %vm1652, %v2291, 0.0
        %2417 = vadd.xlane.f32.xlu0 %v2416
        %v2418 = vpop.xlane.xlu0 %2417
        %v2419 = vsel %vm1652, %v2293, 0.0
        %2420 = vadd.xlane.f32.xlu0 %v2419
        %v2421 = vpop.xlane.xlu0 %2420
        %v2422 = vrcp.pop %v2328
        %v2423 = vrcp.pop %v2331
        %v2424 = vrcp.pop %v2334
        %v2425 = vrcp.pop %v2337
        %v2426 = vrcp.pop %v2340
        %v2427 = vrcp.pop %v2343
        %v2428 = vrcp.pop %v2346
        %v2429 = vrcp.pop %v2349
        %v2430 = vrcp.pop %v2352
        %v2431 = vrcp.pop %v2355
        %v2432 = vrcp.pop %v2358
        %v2433 = vrcp.pop %v2361
        %v2434 = vrcp.pop %v2364
        %v2435 = vrcp.pop %v2367
        %v2436 = vrcp.pop %v2370
        %v2437 = vrcp.pop %v2373
        %v2438 = vrcp.pop %v2376
        %v2439 = vrcp.pop %v2379
        %v2440 = vrcp.pop %v2382
        %v2441 = vrcp.pop %v2385
        %v2442 = vrcp.pop %v2388
        %v2443 = vrcp.pop %v2391
        %v2444 = vrcp.pop %v2394
        %v2445 = vrcp.pop %v2397
        %v2446 = vrcp.pop %v2400
        %v2447 = vrcp.pop %v2403
        %v2448 = vrcp.pop %v2406
        %v2449 = vrcp.pop %v2409
        %v2450 = vrcp.pop %v2412
        %v2451 = vrcp.pop %v2415
        %v2452 = vrcp.pop %v2418
        %v2453 = vrcp.pop %v2421
        %v2454 = vmul.f32 %v2135, %v2422
        %v2455 = vmul.f32 %v2137, %v2423
        %v2456 = vmul.f32 %v2139, %v2424
        %v2457 = vmul.f32 %v2141, %v2425
        %v2458 = vmul.f32 %v2143, %v2426
        %v2459 = vmul.f32 %v2145, %v2427
        %v2460 = vmul.f32 %v2147, %v2428
        %v2461 = vmul.f32 %v2149, %v2429
        %v2462 = vmul.f32 %v2151, %v2430
        %v2463 = vmul.f32 %v2153, %v2431
        %v2464 = vmul.f32 %v2155, %v2432
        %v2465 = vmul.f32 %v2157, %v2433
        %v2466 = vmul.f32 %v2159, %v2434
        %v2467 = vmul.f32 %v2161, %v2435
        %v2468 = vmul.f32 %v2163, %v2436
        %v2469 = vmul.f32 %v2165, %v2437
        %v2470 = vmul.f32 %v2167, %v2438
        %v2471 = vmul.f32 %v2169, %v2439
        %v2472 = vmul.f32 %v2171, %v2440
        %v2473 = vmul.f32 %v2173, %v2441
        %v2474 = vmul.f32 %v2175, %v2442
        %v2475 = vmul.f32 %v2177, %v2443
        %v2476 = vmul.f32 %v2179, %v2444
        %v2477 = vmul.f32 %v2181, %v2445
        %v2478 = vmul.f32 %v2183, %v2446
        %v2479 = vmul.f32 %v2185, %v2447
        %v2480 = vmul.f32 %v2187, %v2448
        %v2481 = vmul.f32 %v2189, %v2449
        %v2482 = vmul.f32 %v2191, %v2450
        %v2483 = vmul.f32 %v2193, %v2451
        %v2484 = vmul.f32 %v2195, %v2452
        %v2485 = vmul.f32 %v2197, %v2453
        %2486 = vst [vmem:[#allocation2] sm:$0xff] 0.0
        %2487 = vst [vmem:[#allocation2 + $0x8] sm:$0xff] 0.0
        %2488 = vst [vmem:[#allocation2 + $0x10] sm:$0xff] 0.0
        %2489 = vst [vmem:[#allocation2 + $0x18] sm:$0xff] 0.0
        %2490 = vst [vmem:[#allocation2 + $0x20] sm:$0xff] 0.0
        %2491 = vst [vmem:[#allocation2 + $0x28] sm:$0xff] 0.0
        %2492 = vst [vmem:[#allocation2 + $0x30] sm:$0xff] 0.0
        %2493 = vst [vmem:[#allocation2 + $0x38] sm:$0xff] 0.0
        %2494 = vst [vmem:[#allocation2 + $0x40] sm:$0xff] 0.0
        %2495 = vst [vmem:[#allocation2 + $0x48] sm:$0xff] 0.0
        %2496 = vst [vmem:[#allocation2 + $0x50] sm:$0xff] 0.0
        %2497 = vst [vmem:[#allocation2 + $0x58] sm:$0xff] 0.0
        %2498 = vst [vmem:[#allocation2 + $0x60] sm:$0xff] 0.0
        %2499 = vst [vmem:[#allocation2 + $0x68] sm:$0xff] 0.0
        %2500 = vst [vmem:[#allocation2 + $0x70] sm:$0xff] 0.0
        %2501 = vst [vmem:[#allocation2 + $0x78] sm:$0xff] 0.0
        %2502 = vst [vmem:[#allocation2 + $0x80] sm:$0xff] 0.0
        %2503 = vst [vmem:[#allocation2 + $0x88] sm:$0xff] 0.0
        %2504 = vst [vmem:[#allocation2 + $0x90] sm:$0xff] 0.0
        %2505 = vst [vmem:[#allocation2 + $0x98] sm:$0xff] 0.0
        %2506 = vst [vmem:[#allocation2 + $0xa0] sm:$0xff] 0.0
        %2507 = vst [vmem:[#allocation2 + $0xa8] sm:$0xff] 0.0
        %2508 = vst [vmem:[#allocation2 + $0xb0] sm:$0xff] 0.0
        %2509 = vst [vmem:[#allocation2 + $0xb8] sm:$0xff] 0.0
        %2510 = vst [vmem:[#allocation2 + $0xc0] sm:$0xff] 0.0
        %2511 = vst [vmem:[#allocation2 + $0xc8] sm:$0xff] 0.0
        %2512 = vst [vmem:[#allocation2 + $0xd0] sm:$0xff] 0.0
        %2513 = vst [vmem:[#allocation2 + $0xd8] sm:$0xff] 0.0
        %2514 = vst [vmem:[#allocation2 + $0xe0] sm:$0xff] 0.0
        %2515 = vst [vmem:[#allocation2 + $0xe8] sm:$0xff] 0.0
        %2516 = vst [vmem:[#allocation2 + $0xf0] sm:$0xff] 0.0
        %2517 = vst [vmem:[#allocation2 + $0xf8] sm:$0xff] 0.0
        %v2518 = vld [vmem:[%s3] sm:$0xf]
        %v2519 = vld [vmem:[%s3 + $0x4] sm:$0xf]
        %v2520 = vld [vmem:[%s3 + $0x8] sm:$0xf]
        %v2521 = vld [vmem:[%s3 + $0xc] sm:$0xf]
        %v2522 = vld [vmem:[%s3 + $0x10] sm:$0xf]
        %v2523 = vld [vmem:[%s3 + $0x14] sm:$0xf]
        %v2524 = vld [vmem:[%s3 + $0x18] sm:$0xf]
        %v2525 = vld [vmem:[%s3 + $0x1c] sm:$0xf]
        %v2526 = vld [vmem:[%s3 + $0x20] sm:$0xf]
        %v2527 = vld [vmem:[%s3 + $0x24] sm:$0xf]
        %v2528 = vld [vmem:[%s3 + $0x28] sm:$0xf]
        %v2529 = vld [vmem:[%s3 + $0x2c] sm:$0xf]
        %v2530 = vld [vmem:[%s3 + $0x30] sm:$0xf]
        %v2531 = vld [vmem:[%s3 + $0x34] sm:$0xf]
        %v2532 = vld [vmem:[%s3 + $0x38] sm:$0xf]
        %v2533 = vld [vmem:[%s3 + $0x3c] sm:$0xf]
        %v2534 = vld [vmem:[%s4] sm:$0x1]
        %v2535 = vlaneseq
        %v2536 = vshrl.u32 %v2535, 7
        %v2537 = vsub.s32 0, %v2536
        %v2538 = vrot.slane %v2534, %v2537
        %v2555 = vunpack.c.l.b16 %v2518
        %v2556 = vunpack.c.l.b16 %v2519
        %v2557 = vunpack.c.l.b16 %v2520
        %v2558 = vunpack.c.l.b16 %v2521
        %v2559 = vunpack.c.l.b16 %v2522
        %v2560 = vunpack.c.l.b16 %v2523
        %v2561 = vunpack.c.l.b16 %v2524
        %v2562 = vunpack.c.l.b16 %v2525
        %v2563 = vunpack.c.l.b16 %v2526
        %v2564 = vunpack.c.l.b16 %v2527
        %v2565 = vunpack.c.l.b16 %v2528
        %v2566 = vunpack.c.l.b16 %v2529
        %v2567 = vunpack.c.l.b16 %v2530
        %v2568 = vunpack.c.l.b16 %v2531
        %v2569 = vunpack.c.l.b16 %v2532
        %v2570 = vunpack.c.l.b16 %v2533
        %v2571 = vpack.c.b16 %v2556, %v2555
        %v2572 = vpack.c.b16 %v2558, %v2557
        %v2573 = vpack.c.b16 %v2560, %v2559
        %v2574 = vpack.c.b16 %v2562, %v2561
        %v2575 = vpack.c.b16 %v2564, %v2563
        %v2576 = vpack.c.b16 %v2566, %v2565
        %v2577 = vpack.c.b16 %v2568, %v2567
        %v2578 = vpack.c.b16 %v2570, %v2569
        %2587 = vmatprep.subr.bf16.mxu0 0
        %2588 = vmatpush1.bf16.msra.mxu0 %v2571
        %2589 = vmatprep.subr.bf16.mxu0 0
        %2590 = vmatpush1.bf16.msra.mxu0 %v2572
        %2591 = vmatprep.subr.bf16.mxu0 0
        %2592 = vmatpush1.bf16.msra.mxu0 %v2573
        %2593 = vmatprep.subr.bf16.mxu0 0
        %2594 = vmatpush1.bf16.msra.mxu0 %v2574
        %2595 = vmatprep.subr.bf16.mxu0 0
        %2596 = vmatpush1.bf16.msra.mxu0 %v2575
        %2597 = vmatprep.subr.bf16.mxu0 0
        %2598 = vmatpush1.bf16.msra.mxu0 %v2576
        %2599 = vmatprep.subr.bf16.mxu0 0
        %2600 = vmatpush1.bf16.msra.mxu0 %v2577
        %2601 = vmatprep.subr.bf16.mxu0 0
        %2602 = vmatpush1.bf16.msra.mxu0 %v2578
        %2603 = vmatprep.subr.bf16.mxu0 0
        %2604 = vmatpush1.bf16.msra.mxu0 0
        %2605 = vmatprep.subr.bf16.mxu0 0
        %2606 = vmatpush1.bf16.msra.mxu0 0
        %2607 = vmatprep.subr.bf16.mxu0 0
        %2608 = vmatpush1.bf16.msra.mxu0 0
        %2609 = vmatprep.subr.bf16.mxu0 0
        %2610 = vmatpush1.bf16.msra.mxu0 0
        %2611 = vmatprep.subr.bf16.mxu0 0
        %2612 = vmatpush1.bf16.msra.mxu0 0
        %2613 = vmatprep.subr.bf16.mxu0 0
        %2614 = vmatpush1.bf16.msra.mxu0 0
        %2615 = vmatprep.subr.bf16.mxu0 0
        %2616 = vmatpush1.bf16.msra.mxu0 0
        %2617 = vmatprep.subr.bf16.mxu0 0
        %2618 = vmatpush1.bf16.msra.mxu0 0
        %2619 = vmatprep.mubr.bf16.mxu0 0
        %2620 = vmatmul.mubr.bf16.gmra.mrb[0].mxu0 %v1340
        %v2621 = vpop.f32.mrb[0].mxu0
        %v2622 = vadd.f32 %v2538, %v2621
        %v2623 = vpop.f32.mrb[0].mxu0
        %v2624 = vpop.f32.mrb[0].mxu0
        %v2625 = vadd.f32 %v2538, %v2624
        %v2626 = vpop.f32.mrb[0].mxu0
        %2627 = vmatprep.mubr.bf16.mxu0 0
        %2628 = vmatmul.mubr.bf16.gmra.mrb[0].mxu0 %v1344
        %v2629 = vpop.f32.mrb[0].mxu0
        %v2630 = vadd.f32 %v2538, %v2629
        %v2631 = vpop.f32.mrb[0].mxu0
        %v2632 = vpop.f32.mrb[0].mxu0
        %v2633 = vadd.f32 %v2538, %v2632
        %v2634 = vpop.f32.mrb[0].mxu0
        %2635 = vmatprep.mubr.bf16.mxu0 0
        %2636 = vmatmul.mubr.bf16.gmra.mrb[0].mxu0 %v1348
        %v2637 = vpop.f32.mrb[0].mxu0
        %v2638 = vadd.f32 %v2538, %v2637
        %v2639 = vpop.f32.mrb[0].mxu0
        %v2640 = vpop.f32.mrb[0].mxu0
        %v2641 = vadd.f32 %v2538, %v2640
        %v2642 = vpop.f32.mrb[0].mxu0
        %2643 = vmatprep.mubr.bf16.mxu0 0
        %2644 = vmatmul.mubr.bf16.gmra.mrb[0].mxu0 %v1352
        %v2645 = vpop.f32.mrb[0].mxu0
        %v2646 = vadd.f32 %v2538, %v2645
        %v2647 = vpop.f32.mrb[0].mxu0
        %v2648 = vpop.f32.mrb[0].mxu0
        %v2649 = vadd.f32 %v2538, %v2648
        %v2650 = vpop.f32.mrb[0].mxu0
        %2651 = vmatprep.mubr.bf16.mxu0 0
        %2652 = vmatmul.mubr.bf16.gmra.mrb[0].mxu0 %v1356
        %v2653 = vpop.f32.mrb[0].mxu0
        %v2654 = vadd.f32 %v2538, %v2653
        %v2655 = vpop.f32.mrb[0].mxu0
        %v2656 = vpop.f32.mrb[0].mxu0
        %v2657 = vadd.f32 %v2538, %v2656
        %v2658 = vpop.f32.mrb[0].mxu0
        %2659 = vmatprep.mubr.bf16.mxu0 0
        %2660 = vmatmul.mubr.bf16.gmra.mrb[0].mxu0 %v1360
        %v2661 = vpop.f32.mrb[0].mxu0
        %v2662 = vadd.f32 %v2538, %v2661
        %v2663 = vpop.f32.mrb[0].mxu0
        %v2664 = vpop.f32.mrb[0].mxu0
        %v2665 = vadd.f32 %v2538, %v2664
        %v2666 = vpop.f32.mrb[0].mxu0
        %2667 = vmatprep.mubr.bf16.mxu0 0
        %2668 = vmatmul.mubr.bf16.gmra.mrb[0].mxu0 %v1364
        %v2669 = vpop.f32.mrb[0].mxu0
        %v2670 = vadd.f32 %v2538, %v2669
        %v2671 = vpop.f32.mrb[0].mxu0
        %v2672 = vpop.f32.mrb[0].mxu0
        %v2673 = vadd.f32 %v2538, %v2672
        %v2674 = vpop.f32.mrb[0].mxu0
        %2675 = vmatprep.mubr.bf16.mxu0 0
        %2676 = vmatmul.mubr.bf16.gmra.mrb[0].mxu0 %v1368
        %v2677 = vpop.f32.mrb[0].mxu0
        %v2678 = vadd.f32 %v2538, %v2677
        %v2679 = vpop.f32.mrb[0].mxu0
        %v2680 = vpop.f32.mrb[0].mxu0
        %v2681 = vadd.f32 %v2538, %v2680
        %v2682 = vpop.f32.mrb[0].mxu0
        %2683 = vmatprep.mubr.bf16.mxu0 0
        %2684 = vmatmul.mubr.bf16.gmra.mrb[0].mxu0 %v1372
        %v2685 = vpop.f32.mrb[0].mxu0
        %v2686 = vadd.f32 %v2538, %v2685
        %v2687 = vpop.f32.mrb[0].mxu0
        %v2688 = vpop.f32.mrb[0].mxu0
        %v2689 = vadd.f32 %v2538, %v2688
        %v2690 = vpop.f32.mrb[0].mxu0
        %2691 = vmatprep.mubr.bf16.mxu0 0
        %2692 = vmatmul.mubr.bf16.gmra.mrb[0].mxu0 %v1376
        %v2693 = vpop.f32.mrb[0].mxu0
        %v2694 = vadd.f32 %v2538, %v2693
        %v2695 = vpop.f32.mrb[0].mxu0
        %v2696 = vpop.f32.mrb[0].mxu0
        %v2697 = vadd.f32 %v2538, %v2696
        %v2698 = vpop.f32.mrb[0].mxu0
        %2699 = vmatprep.mubr.bf16.mxu0 0
        %2700 = vmatmul.mubr.bf16.gmra.mrb[0].mxu0 %v1380
        %v2701 = vpop.f32.mrb[0].mxu0
        %v2702 = vadd.f32 %v2538, %v2701
        %v2703 = vpop.f32.mrb[0].mxu0
        %v2704 = vpop.f32.mrb[0].mxu0
        %v2705 = vadd.f32 %v2538, %v2704
        %v2706 = vpop.f32.mrb[0].mxu0
        %2707 = vmatprep.mubr.bf16.mxu0 0
        %2708 = vmatmul.mubr.bf16.gmra.mrb[0].mxu0 %v1384
        %v2709 = vpop.f32.mrb[0].mxu0
        %v2710 = vadd.f32 %v2538, %v2709
        %v2711 = vpop.f32.mrb[0].mxu0
        %v2712 = vpop.f32.mrb[0].mxu0
        %v2713 = vadd.f32 %v2538, %v2712
        %v2714 = vpop.f32.mrb[0].mxu0
        %2715 = vmatprep.mubr.bf16.mxu0 0
        %2716 = vmatmul.mubr.bf16.gmra.mrb[0].mxu0 %v1388
        %v2717 = vpop.f32.mrb[0].mxu0
        %v2718 = vadd.f32 %v2538, %v2717
        %v2719 = vpop.f32.mrb[0].mxu0
        %v2720 = vpop.f32.mrb[0].mxu0
        %v2721 = vadd.f32 %v2538, %v2720
        %v2722 = vpop.f32.mrb[0].mxu0
        %2723 = vmatprep.mubr.bf16.mxu0 0
        %2724 = vmatmul.mubr.bf16.gmra.mrb[0].mxu0 %v1392
        %v2725 = vpop.f32.mrb[0].mxu0
        %v2726 = vadd.f32 %v2538, %v2725
        %v2727 = vpop.f32.mrb[0].mxu0
        %v2728 = vpop.f32.mrb[0].mxu0
        %v2729 = vadd.f32 %v2538, %v2728
        %v2730 = vpop.f32.mrb[0].mxu0
        %2731 = vmatprep.mubr.bf16.mxu0 0
        %2732 = vmatmul.mubr.bf16.gmra.mrb[0].mxu0 %v1396
        %v2733 = vpop.f32.mrb[0].mxu0
        %v2734 = vadd.f32 %v2538, %v2733
        %v2735 = vpop.f32.mrb[0].mxu0
        %v2736 = vpop.f32.mrb[0].mxu0
        %v2737 = vadd.f32 %v2538, %v2736
        %v2738 = vpop.f32.mrb[0].mxu0
        %2739 = vmatprep.mubr.bf16.mxu0 0
        %2740 = vmatmul.mubr.bf16.gmra.mrb[0].mxu0 %v1400
        %v2741 = vpop.f32.mrb[0].mxu0
        %v2742 = vadd.f32 %v2538, %v2741
        %v2743 = vpop.f32.mrb[0].mxu0
        %v2744 = vpop.f32.mrb[0].mxu0
        %v2745 = vadd.f32 %v2538, %v2744
        %v2746 = vpop.f32.mrb[0].mxu0
        %2747 = vdwg.mxu0
        %v2748 = vmax.f32 %v2622, 0.0
        %v2749 = vmax.f32 %v2625, 0.0
        %v2750 = vmax.f32 %v2630, 0.0
        %v2751 = vmax.f32 %v2633, 0.0
        %v2752 = vmax.f32 %v2638, 0.0
        %v2753 = vmax.f32 %v2641, 0.0
        %v2754 = vmax.f32 %v2646, 0.0
        %v2755 = vmax.f32 %v2649, 0.0
        %v2756 = vmax.f32 %v2654, 0.0
        %v2757 = vmax.f32 %v2657, 0.0
        %v2758 = vmax.f32 %v2662, 0.0
        %v2759 = vmax.f32 %v2665, 0.0
        %v2760 = vmax.f32 %v2670, 0.0
        %v2761 = vmax.f32 %v2673, 0.0
        %v2762 = vmax.f32 %v2678, 0.0
        %v2763 = vmax.f32 %v2681, 0.0
        %v2764 = vmax.f32 %v2686, 0.0
        %v2765 = vmax.f32 %v2689, 0.0
        %v2766 = vmax.f32 %v2694, 0.0
        %v2767 = vmax.f32 %v2697, 0.0
        %v2768 = vmax.f32 %v2702, 0.0
        %v2769 = vmax.f32 %v2705, 0.0
        %v2770 = vmax.f32 %v2710, 0.0
        %v2771 = vmax.f32 %v2713, 0.0
        %v2772 = vmax.f32 %v2718, 0.0
        %v2773 = vmax.f32 %v2721, 0.0
        %v2774 = vmax.f32 %v2726, 0.0
        %v2775 = vmax.f32 %v2729, 0.0
        %v2776 = vmax.f32 %v2734, 0.0
        %v2777 = vmax.f32 %v2737, 0.0
        %v2778 = vmax.f32 %v2742, 0.0
        %v2779 = vmax.f32 %v2745, 0.0
        %v2780 = vld [vmem:[#allocation2] sm:$0xff]
        %v2781 = vld [vmem:[#allocation2 + $0x8] sm:$0xff]
        %v2782 = vld [vmem:[#allocation2 + $0x10] sm:$0xff]
        %v2783 = vld [vmem:[#allocation2 + $0x18] sm:$0xff]
        %v2784 = vld [vmem:[#allocation2 + $0x20] sm:$0xff]
        %v2785 = vld [vmem:[#allocation2 + $0x28] sm:$0xff]
        %v2786 = vld [vmem:[#allocation2 + $0x30] sm:$0xff]
        %v2787 = vld [vmem:[#allocation2 + $0x38] sm:$0xff]
        %v2788 = vld [vmem:[#allocation2 + $0x40] sm:$0xff]
        %v2789 = vld [vmem:[#allocation2 + $0x48] sm:$0xff]
        %v2790 = vld [vmem:[#allocation2 + $0x50] sm:$0xff]
        %v2791 = vld [vmem:[#allocation2 + $0x58] sm:$0xff]
        %v2792 = vld [vmem:[#allocation2 + $0x60] sm:$0xff]
        %v2793 = vld [vmem:[#allocation2 + $0x68] sm:$0xff]
        %v2794 = vld [vmem:[#allocation2 + $0x70] sm:$0xff]
        %v2795 = vld [vmem:[#allocation2 + $0x78] sm:$0xff]
        %v2796 = vld [vmem:[#allocation2 + $0x80] sm:$0xff]
        %v2797 = vld [vmem:[#allocation2 + $0x88] sm:$0xff]
        %v2798 = vld [vmem:[#allocation2 + $0x90] sm:$0xff]
        %v2799 = vld [vmem:[#allocation2 + $0x98] sm:$0xff]
        %v2800 = vld [vmem:[#allocation2 + $0xa0] sm:$0xff]
        %v2801 = vld [vmem:[#allocation2 + $0xa8] sm:$0xff]
        %v2802 = vld [vmem:[#allocation2 + $0xb0] sm:$0xff]
        %v2803 = vld [vmem:[#allocation2 + $0xb8] sm:$0xff]
        %v2804 = vld [vmem:[#allocation2 + $0xc0] sm:$0xff]
        %v2805 = vld [vmem:[#allocation2 + $0xc8] sm:$0xff]
        %v2806 = vld [vmem:[#allocation2 + $0xd0] sm:$0xff]
        %v2807 = vld [vmem:[#allocation2 + $0xd8] sm:$0xff]
        %v2808 = vld [vmem:[#allocation2 + $0xe0] sm:$0xff]
        %v2809 = vld [vmem:[#allocation2 + $0xe8] sm:$0xff]
        %v2810 = vld [vmem:[#allocation2 + $0xf0] sm:$0xff]
        %v2811 = vld [vmem:[#allocation2 + $0xf8] sm:$0xff]
        %2813 = vset.pattern.permute.xlu0 0
        %2814 = vperm.xlu0 %2813, %v1973
        %v2815 = vpop.permute.xlu0 %2814
        %2818 = vset.pattern.permute.xlu0 0
        %2819 = vperm.xlu0 %2818, %v1974
        %v2820 = vpop.permute.xlu0 %2819
        %2823 = vset.pattern.permute.xlu0 0
        %2824 = vperm.xlu0 %2823, %v1975
        %v2825 = vpop.permute.xlu0 %2824
        %2828 = vset.pattern.permute.xlu0 0
        %2829 = vperm.xlu0 %2828, %v1976
        %v2830 = vpop.permute.xlu0 %2829
        %2833 = vset.pattern.permute.xlu0 0
        %2834 = vperm.xlu0 %2833, %v1977
        %v2835 = vpop.permute.xlu0 %2834
        %2838 = vset.pattern.permute.xlu0 0
        %2839 = vperm.xlu0 %2838, %v1978
        %v2840 = vpop.permute.xlu0 %2839
        %2843 = vset.pattern.permute.xlu0 0
        %2844 = vperm.xlu0 %2843, %v1979
        %v2845 = vpop.permute.xlu0 %2844
        %2848 = vset.pattern.permute.xlu0 0
        %2849 = vperm.xlu0 %2848, %v1980
        %v2850 = vpop.permute.xlu0 %2849
        %2853 = vset.pattern.permute.xlu0 0
        %2854 = vperm.xlu0 %2853, %v1981
        %v2855 = vpop.permute.xlu0 %2854
        %2858 = vset.pattern.permute.xlu0 0
        %2859 = vperm.xlu0 %2858, %v1982
        %v2860 = vpop.permute.xlu0 %2859
        %2863 = vset.pattern.permute.xlu0 0
        %2864 = vperm.xlu0 %2863, %v1983
        %v2865 = vpop.permute.xlu0 %2864
        %2868 = vset.pattern.permute.xlu0 0
        %2869 = vperm.xlu0 %2868, %v1984
        %v2870 = vpop.permute.xlu0 %2869
        %2873 = vset.pattern.permute.xlu0 0
        %2874 = vperm.xlu0 %2873, %v1985
        %v2875 = vpop.permute.xlu0 %2874
        %2878 = vset.pattern.permute.xlu0 0
        %2879 = vperm.xlu0 %2878, %v1986
        %v2880 = vpop.permute.xlu0 %2879
        %2883 = vset.pattern.permute.xlu0 0
        %2884 = vperm.xlu0 %2883, %v1987
        %v2885 = vpop.permute.xlu0 %2884
        %2888 = vset.pattern.permute.xlu0 0
        %2889 = vperm.xlu0 %2888, %v1988
        %v2890 = vpop.permute.xlu0 %2889
        %2893 = vset.pattern.permute.xlu0 0
        %2894 = vperm.xlu0 %2893, %v1989
        %v2895 = vpop.permute.xlu0 %2894
        %2898 = vset.pattern.permute.xlu0 0
        %2899 = vperm.xlu0 %2898, %v1990
        %v2900 = vpop.permute.xlu0 %2899
        %2903 = vset.pattern.permute.xlu0 0
        %2904 = vperm.xlu0 %2903, %v1991
        %v2905 = vpop.permute.xlu0 %2904
        %2908 = vset.pattern.permute.xlu0 0
        %2909 = vperm.xlu0 %2908, %v1992
        %v2910 = vpop.permute.xlu0 %2909
        %2913 = vset.pattern.permute.xlu0 0
        %2914 = vperm.xlu0 %2913, %v1993
        %v2915 = vpop.permute.xlu0 %2914
        %2918 = vset.pattern.permute.xlu0 0
        %2919 = vperm.xlu0 %2918, %v1994
        %v2920 = vpop.permute.xlu0 %2919
        %2923 = vset.pattern.permute.xlu0 0
        %2924 = vperm.xlu0 %2923, %v1995
        %v2925 = vpop.permute.xlu0 %2924
        %2928 = vset.pattern.permute.xlu0 0
        %2929 = vperm.xlu0 %2928, %v1996
        %v2930 = vpop.permute.xlu0 %2929
        %2933 = vset.pattern.permute.xlu0 0
        %2934 = vperm.xlu0 %2933, %v1997
        %v2935 = vpop.permute.xlu0 %2934
        %2938 = vset.pattern.permute.xlu0 0
        %2939 = vperm.xlu0 %2938, %v1998
        %v2940 = vpop.permute.xlu0 %2939
        %2943 = vset.pattern.permute.xlu0 0
        %2944 = vperm.xlu0 %2943, %v1999
        %v2945 = vpop.permute.xlu0 %2944
        %2948 = vset.pattern.permute.xlu0 0
        %2949 = vperm.xlu0 %2948, %v2000
        %v2950 = vpop.permute.xlu0 %2949
        %2953 = vset.pattern.permute.xlu0 0
        %2954 = vperm.xlu0 %2953, %v2001
        %v2955 = vpop.permute.xlu0 %2954
        %2958 = vset.pattern.permute.xlu0 0
        %2959 = vperm.xlu0 %2958, %v2002
        %v2960 = vpop.permute.xlu0 %2959
        %2963 = vset.pattern.permute.xlu0 0
        %2964 = vperm.xlu0 %2963, %v2003
        %v2965 = vpop.permute.xlu0 %2964
        %2968 = vset.pattern.permute.xlu0 0
        %2969 = vperm.xlu0 %2968, %v2004
        %v2970 = vpop.permute.xlu0 %2969
        %v2972 = vmul.f32 %v2815, %v2748
        %v2973 = vmul.f32 %v2820, %v2749
        %v2974 = vmul.f32 %v2825, %v2750
        %v2975 = vmul.f32 %v2830, %v2751
        %v2976 = vmul.f32 %v2835, %v2752
        %v2977 = vmul.f32 %v2840, %v2753
        %v2978 = vmul.f32 %v2845, %v2754
        %v2979 = vmul.f32 %v2850, %v2755
        %v2980 = vmul.f32 %v2855, %v2756
        %v2981 = vmul.f32 %v2860, %v2757
        %v2982 = vmul.f32 %v2865, %v2758
        %v2983 = vmul.f32 %v2870, %v2759
        %v2984 = vmul.f32 %v2875, %v2760
        %v2985 = vmul.f32 %v2880, %v2761
        %v2986 = vmul.f32 %v2885, %v2762
        %v2987 = vmul.f32 %v2890, %v2763
        %v2988 = vmul.f32 %v2895, %v2764
        %v2989 = vmul.f32 %v2900, %v2765
        %v2990 = vmul.f32 %v2905, %v2766
        %v2991 = vmul.f32 %v2910, %v2767
        %v2992 = vmul.f32 %v2915, %v2768
        %v2993 = vmul.f32 %v2920, %v2769
        %v2994 = vmul.f32 %v2925, %v2770
        %v2995 = vmul.f32 %v2930, %v2771
        %v2996 = vmul.f32 %v2935, %v2772
        %v2997 = vmul.f32 %v2940, %v2773
        %v2998 = vmul.f32 %v2945, %v2774
        %v2999 = vmul.f32 %v2950, %v2775
        %v3000 = vmul.f32 %v2955, %v2776
        %v3001 = vmul.f32 %v2960, %v2777
        %v3002 = vmul.f32 %v2965, %v2778
        %v3003 = vmul.f32 %v2970, %v2779
        %v3004 = vadd.f32 %v2780, %v2972
        %v3005 = vadd.f32 %v2781, %v2973
        %v3006 = vadd.f32 %v2782, %v2974
        %v3007 = vadd.f32 %v2783, %v2975
        %v3008 = vadd.f32 %v2784, %v2976
        %v3009 = vadd.f32 %v2785, %v2977
        %v3010 = vadd.f32 %v2786, %v2978
        %v3011 = vadd.f32 %v2787, %v2979
        %v3012 = vadd.f32 %v2788, %v2980
        %v3013 = vadd.f32 %v2789, %v2981
        %v3014 = vadd.f32 %v2790, %v2982
        %v3015 = vadd.f32 %v2791, %v2983
        %v3016 = vadd.f32 %v2792, %v2984
        %v3017 = vadd.f32 %v2793, %v2985
        %v3018 = vadd.f32 %v2794, %v2986
        %v3019 = vadd.f32 %v2795, %v2987
        %v3020 = vadd.f32 %v2796, %v2988
        %v3021 = vadd.f32 %v2797, %v2989
        %v3022 = vadd.f32 %v2798, %v2990
        %v3023 = vadd.f32 %v2799, %v2991
        %v3024 = vadd.f32 %v2800, %v2992
        %v3025 = vadd.f32 %v2801, %v2993
        %v3026 = vadd.f32 %v2802, %v2994
        %v3027 = vadd.f32 %v2803, %v2995
        %v3028 = vadd.f32 %v2804, %v2996
        %v3029 = vadd.f32 %v2805, %v2997
        %v3030 = vadd.f32 %v2806, %v2998
        %v3031 = vadd.f32 %v2807, %v2999
        %v3032 = vadd.f32 %v2808, %v3000
        %v3033 = vadd.f32 %v2809, %v3001
        %v3034 = vadd.f32 %v2810, %v3002
        %v3035 = vadd.f32 %v2811, %v3003
        %vm3036 = vcmask 523264
        %3037 = vst.msk [vmem:[#allocation2] sm:$0xff] %vm3036, %v3004
        %3038 = vst.msk [vmem:[#allocation2 + $0x8] sm:$0xff] %vm3036, %v3005
        %3039 = vst.msk [vmem:[#allocation2 + $0x10] sm:$0xff] %vm3036, %v3006
        %3040 = vst.msk [vmem:[#allocation2 + $0x18] sm:$0xff] %vm3036, %v3007
        %3041 = vst.msk [vmem:[#allocation2 + $0x20] sm:$0xff] %vm3036, %v3008
        %3042 = vst.msk [vmem:[#allocation2 + $0x28] sm:$0xff] %vm3036, %v3009
        %3043 = vst.msk [vmem:[#allocation2 + $0x30] sm:$0xff] %vm3036, %v3010
        %3044 = vst.msk [vmem:[#allocation2 + $0x38] sm:$0xff] %vm3036, %v3011
        %3045 = vst.msk [vmem:[#allocation2 + $0x40] sm:$0xff] %vm3036, %v3012
        %3046 = vst.msk [vmem:[#allocation2 + $0x48] sm:$0xff] %vm3036, %v3013
        %3047 = vst.msk [vmem:[#allocation2 + $0x50] sm:$0xff] %vm3036, %v3014
        %3048 = vst.msk [vmem:[#allocation2 + $0x58] sm:$0xff] %vm3036, %v3015
        %3049 = vst.msk [vmem:[#allocation2 + $0x60] sm:$0xff] %vm3036, %v3016
        %3050 = vst.msk [vmem:[#allocation2 + $0x68] sm:$0xff] %vm3036, %v3017
        %3051 = vst.msk [vmem:[#allocation2 + $0x70] sm:$0xff] %vm3036, %v3018
        %3052 = vst.msk [vmem:[#allocation2 + $0x78] sm:$0xff] %vm3036, %v3019
        %3053 = vst.msk [vmem:[#allocation2 + $0x80] sm:$0xff] %vm3036, %v3020
        %3054 = vst.msk [vmem:[#allocation2 + $0x88] sm:$0xff] %vm3036, %v3021
        %3055 = vst.msk [vmem:[#allocation2 + $0x90] sm:$0xff] %vm3036, %v3022
        %3056 = vst.msk [vmem:[#allocation2 + $0x98] sm:$0xff] %vm3036, %v3023
        %3057 = vst.msk [vmem:[#allocation2 + $0xa0] sm:$0xff] %vm3036, %v3024
        %3058 = vst.msk [vmem:[#allocation2 + $0xa8] sm:$0xff] %vm3036, %v3025
        %3059 = vst.msk [vmem:[#allocation2 + $0xb0] sm:$0xff] %vm3036, %v3026
        %3060 = vst.msk [vmem:[#allocation2 + $0xb8] sm:$0xff] %vm3036, %v3027
        %3061 = vst.msk [vmem:[#allocation2 + $0xc0] sm:$0xff] %vm3036, %v3028
        %3062 = vst.msk [vmem:[#allocation2 + $0xc8] sm:$0xff] %vm3036, %v3029
        %3063 = vst.msk [vmem:[#allocation2 + $0xd0] sm:$0xff] %vm3036, %v3030
        %3064 = vst.msk [vmem:[#allocation2 + $0xd8] sm:$0xff] %vm3036, %v3031
        %3065 = vst.msk [vmem:[#allocation2 + $0xe0] sm:$0xff] %vm3036, %v3032
        %3066 = vst.msk [vmem:[#allocation2 + $0xe8] sm:$0xff] %vm3036, %v3033
        %3067 = vst.msk [vmem:[#allocation2 + $0xf0] sm:$0xff] %vm3036, %v3034
        %3068 = vst.msk [vmem:[#allocation2 + $0xf8] sm:$0xff] %vm3036, %v3035
        %v3069 = vld [vmem:[#allocation2] sm:$0xff]
        %v3070 = vld [vmem:[#allocation2 + $0x8] sm:$0xff]
        %v3071 = vld [vmem:[#allocation2 + $0x10] sm:$0xff]
        %v3072 = vld [vmem:[#allocation2 + $0x18] sm:$0xff]
        %v3073 = vld [vmem:[#allocation2 + $0x20] sm:$0xff]
        %v3074 = vld [vmem:[#allocation2 + $0x28] sm:$0xff]
        %v3075 = vld [vmem:[#allocation2 + $0x30] sm:$0xff]
        %v3076 = vld [vmem:[#allocation2 + $0x38] sm:$0xff]
        %v3077 = vld [vmem:[#allocation2 + $0x40] sm:$0xff]
        %v3078 = vld [vmem:[#allocation2 + $0x48] sm:$0xff]
        %v3079 = vld [vmem:[#allocation2 + $0x50] sm:$0xff]
        %v3080 = vld [vmem:[#allocation2 + $0x58] sm:$0xff]
        %v3081 = vld [vmem:[#allocation2 + $0x60] sm:$0xff]
        %v3082 = vld [vmem:[#allocation2 + $0x68] sm:$0xff]
        %v3083 = vld [vmem:[#allocation2 + $0x70] sm:$0xff]
        %v3084 = vld [vmem:[#allocation2 + $0x78] sm:$0xff]
        %v3085 = vld [vmem:[#allocation2 + $0x80] sm:$0xff]
        %v3086 = vld [vmem:[#allocation2 + $0x88] sm:$0xff]
        %v3087 = vld [vmem:[#allocation2 + $0x90] sm:$0xff]
        %v3088 = vld [vmem:[#allocation2 + $0x98] sm:$0xff]
        %v3089 = vld [vmem:[#allocation2 + $0xa0] sm:$0xff]
        %v3090 = vld [vmem:[#allocation2 + $0xa8] sm:$0xff]
        %v3091 = vld [vmem:[#allocation2 + $0xb0] sm:$0xff]
        %v3092 = vld [vmem:[#allocation2 + $0xb8] sm:$0xff]
        %v3093 = vld [vmem:[#allocation2 + $0xc0] sm:$0xff]
        %v3094 = vld [vmem:[#allocation2 + $0xc8] sm:$0xff]
        %v3095 = vld [vmem:[#allocation2 + $0xd0] sm:$0xff]
        %v3096 = vld [vmem:[#allocation2 + $0xd8] sm:$0xff]
        %v3097 = vld [vmem:[#allocation2 + $0xe0] sm:$0xff]
        %v3098 = vld [vmem:[#allocation2 + $0xe8] sm:$0xff]
        %v3099 = vld [vmem:[#allocation2 + $0xf0] sm:$0xff]
        %v3100 = vld [vmem:[#allocation2 + $0xf8] sm:$0xff]
        %3102 = vset.pattern.permute.xlu0 4
        %3103 = vperm.xlu0 %3102, %v2454
        %v3104 = vpop.permute.xlu0 %3103
        %3107 = vset.pattern.permute.xlu0 4
        %3108 = vperm.xlu0 %3107, %v2455
        %v3109 = vpop.permute.xlu0 %3108
        %3112 = vset.pattern.permute.xlu0 4
        %3113 = vperm.xlu0 %3112, %v2456
        %v3114 = vpop.permute.xlu0 %3113
        %3117 = vset.pattern.permute.xlu0 4
        %3118 = vperm.xlu0 %3117, %v2457
        %v3119 = vpop.permute.xlu0 %3118
        %3122 = vset.pattern.permute.xlu0 4
        %3123 = vperm.xlu0 %3122, %v2458
        %v3124 = vpop.permute.xlu0 %3123
        %3127 = vset.pattern.permute.xlu0 4
        %3128 = vperm.xlu0 %3127, %v2459
        %v3129 = vpop.permute.xlu0 %3128
        %3132 = vset.pattern.permute.xlu0 4
        %3133 = vperm.xlu0 %3132, %v2460
        %v3134 = vpop.permute.xlu0 %3133
        %3137 = vset.pattern.permute.xlu0 4
        %3138 = vperm.xlu0 %3137, %v2461
        %v3139 = vpop.permute.xlu0 %3138
        %3142 = vset.pattern.permute.xlu0 4
        %3143 = vperm.xlu0 %3142, %v2462
        %v3144 = vpop.permute.xlu0 %3143
        %3147 = vset.pattern.permute.xlu0 4
        %3148 = vperm.xlu0 %3147, %v2463
        %v3149 = vpop.permute.xlu0 %3148
        %3152 = vset.pattern.permute.xlu0 4
        %3153 = vperm.xlu0 %3152, %v2464
        %v3154 = vpop.permute.xlu0 %3153
        %3157 = vset.pattern.permute.xlu0 4
        %3158 = vperm.xlu0 %3157, %v2465
        %v3159 = vpop.permute.xlu0 %3158
        %3162 = vset.pattern.permute.xlu0 4
        %3163 = vperm.xlu0 %3162, %v2466
        %v3164 = vpop.permute.xlu0 %3163
        %3167 = vset.pattern.permute.xlu0 4
        %3168 = vperm.xlu0 %3167, %v2467
        %v3169 = vpop.permute.xlu0 %3168
        %3172 = vset.pattern.permute.xlu0 4
        %3173 = vperm.xlu0 %3172, %v2468
        %v3174 = vpop.permute.xlu0 %3173
        %3177 = vset.pattern.permute.xlu0 4
        %3178 = vperm.xlu0 %3177, %v2469
        %v3179 = vpop.permute.xlu0 %3178
        %3182 = vset.pattern.permute.xlu0 4
        %3183 = vperm.xlu0 %3182, %v2470
        %v3184 = vpop.permute.xlu0 %3183
        %3187 = vset.pattern.permute.xlu0 4
        %3188 = vperm.xlu0 %3187, %v2471
        %v3189 = vpop.permute.xlu0 %3188
        %3192 = vset.pattern.permute.xlu0 4
        %3193 = vperm.xlu0 %3192, %v2472
        %v3194 = vpop.permute.xlu0 %3193
        %3197 = vset.pattern.permute.xlu0 4
        %3198 = vperm.xlu0 %3197, %v2473
        %v3199 = vpop.permute.xlu0 %3198
        %3202 = vset.pattern.permute.xlu0 4
        %3203 = vperm.xlu0 %3202, %v2474
        %v3204 = vpop.permute.xlu0 %3203
        %3207 = vset.pattern.permute.xlu0 4
        %3208 = vperm.xlu0 %3207, %v2475
        %v3209 = vpop.permute.xlu0 %3208
        %3212 = vset.pattern.permute.xlu0 4
        %3213 = vperm.xlu0 %3212, %v2476
        %v3214 = vpop.permute.xlu0 %3213
        %3217 = vset.pattern.permute.xlu0 4
        %3218 = vperm.xlu0 %3217, %v2477
        %v3219 = vpop.permute.xlu0 %3218
        %3222 = vset.pattern.permute.xlu0 4
        %3223 = vperm.xlu0 %3222, %v2478
        %v3224 = vpop.permute.xlu0 %3223
        %3227 = vset.pattern.permute.xlu0 4
        %3228 = vperm.xlu0 %3227, %v2479
        %v3229 = vpop.permute.xlu0 %3228
        %3232 = vset.pattern.permute.xlu0 4
        %3233 = vperm.xlu0 %3232, %v2480
        %v3234 = vpop.permute.xlu0 %3233
        %3237 = vset.pattern.permute.xlu0 4
        %3238 = vperm.xlu0 %3237, %v2481
        %v3239 = vpop.permute.xlu0 %3238
        %3242 = vset.pattern.permute.xlu0 4
        %3243 = vperm.xlu0 %3242, %v2482
        %v3244 = vpop.permute.xlu0 %3243
        %3247 = vset.pattern.permute.xlu0 4
        %3248 = vperm.xlu0 %3247, %v2483
        %v3249 = vpop.permute.xlu0 %3248
        %3252 = vset.pattern.permute.xlu0 4
        %3253 = vperm.xlu0 %3252, %v2484
        %v3254 = vpop.permute.xlu0 %3253
        %3257 = vset.pattern.permute.xlu0 4
        %3258 = vperm.xlu0 %3257, %v2485
        %v3259 = vpop.permute.xlu0 %3258
        %v3261 = vmul.f32 %v3104, %v2748
        %v3262 = vmul.f32 %v3109, %v2749
        %v3263 = vmul.f32 %v3114, %v2750
        %v3264 = vmul.f32 %v3119, %v2751
        %v3265 = vmul.f32 %v3124, %v2752
        %v3266 = vmul.f32 %v3129, %v2753
        %v3267 = vmul.f32 %v3134, %v2754
        %v3268 = vmul.f32 %v3139, %v2755
        %v3269 = vmul.f32 %v3144, %v2756
        %v3270 = vmul.f32 %v3149, %v2757
        %v3271 = vmul.f32 %v3154, %v2758
        %v3272 = vmul.f32 %v3159, %v2759
        %v3273 = vmul.f32 %v3164, %v2760
        %v3274 = vmul.f32 %v3169, %v2761
        %v3275 = vmul.f32 %v3174, %v2762
        %v3276 = vmul.f32 %v3179, %v2763
        %v3277 = vmul.f32 %v3184, %v2764
        %v3278 = vmul.f32 %v3189, %v2765
        %v3279 = vmul.f32 %v3194, %v2766
        %v3280 = vmul.f32 %v3199, %v2767
        %v3281 = vmul.f32 %v3204, %v2768
        %v3282 = vmul.f32 %v3209, %v2769
        %v3283 = vmul.f32 %v3214, %v2770
        %v3284 = vmul.f32 %v3219, %v2771
        %v3285 = vmul.f32 %v3224, %v2772
        %v3286 = vmul.f32 %v3229, %v2773
        %v3287 = vmul.f32 %v3234, %v2774
        %v3288 = vmul.f32 %v3239, %v2775
        %v3289 = vmul.f32 %v3244, %v2776
        %v3290 = vmul.f32 %v3249, %v2777
        %v3291 = vmul.f32 %v3254, %v2778
        %v3292 = vmul.f32 %v3259, %v2779
        %3325 = vrot.lane.b32.xlu0 %v3261, 64
        %v3326 = vpop.permute.xlu0 %3325
        %3327 = vrot.lane.b32.xlu0 %v3262, 64
        %v3328 = vpop.permute.xlu0 %3327
        %3329 = vrot.lane.b32.xlu0 %v3263, 64
        %v3330 = vpop.permute.xlu0 %3329
        %3331 = vrot.lane.b32.xlu0 %v3264, 64
        %v3332 = vpop.permute.xlu0 %3331
        %3333 = vrot.lane.b32.xlu0 %v3265, 64
        %v3334 = vpop.permute.xlu0 %3333
        %3335 = vrot.lane.b32.xlu0 %v3266, 64
        %v3336 = vpop.permute.xlu0 %3335
        %3337 = vrot.lane.b32.xlu0 %v3267, 64
        %v3338 = vpop.permute.xlu0 %3337
        %3339 = vrot.lane.b32.xlu0 %v3268, 64
        %v3340 = vpop.permute.xlu0 %3339
        %3341 = vrot.lane.b32.xlu0 %v3269, 64
        %v3342 = vpop.permute.xlu0 %3341
        %3343 = vrot.lane.b32.xlu0 %v3270, 64
        %v3344 = vpop.permute.xlu0 %3343
        %3345 = vrot.lane.b32.xlu0 %v3271, 64
        %v3346 = vpop.permute.xlu0 %3345
        %3347 = vrot.lane.b32.xlu0 %v3272, 64
        %v3348 = vpop.permute.xlu0 %3347
        %3349 = vrot.lane.b32.xlu0 %v3273, 64
        %v3350 = vpop.permute.xlu0 %3349
        %3351 = vrot.lane.b32.xlu0 %v3274, 64
        %v3352 = vpop.permute.xlu0 %3351
        %3353 = vrot.lane.b32.xlu0 %v3275, 64
        %v3354 = vpop.permute.xlu0 %3353
        %3355 = vrot.lane.b32.xlu0 %v3276, 64
        %v3356 = vpop.permute.xlu0 %3355
        %3357 = vrot.lane.b32.xlu0 %v3277, 64
        %v3358 = vpop.permute.xlu0 %3357
        %3359 = vrot.lane.b32.xlu0 %v3278, 64
        %v3360 = vpop.permute.xlu0 %3359
        %3361 = vrot.lane.b32.xlu0 %v3279, 64
        %v3362 = vpop.permute.xlu0 %3361
        %3363 = vrot.lane.b32.xlu0 %v3280, 64
        %v3364 = vpop.permute.xlu0 %3363
        %3365 = vrot.lane.b32.xlu0 %v3281, 64
        %v3366 = vpop.permute.xlu0 %3365
        %3367 = vrot.lane.b32.xlu0 %v3282, 64
        %v3368 = vpop.permute.xlu0 %3367
        %3369 = vrot.lane.b32.xlu0 %v3283, 64
        %v3370 = vpop.permute.xlu0 %3369
        %3371 = vrot.lane.b32.xlu0 %v3284, 64
        %v3372 = vpop.permute.xlu0 %3371
        %3373 = vrot.lane.b32.xlu0 %v3285, 64
        %v3374 = vpop.permute.xlu0 %3373
        %3375 = vrot.lane.b32.xlu0 %v3286, 64
        %v3376 = vpop.permute.xlu0 %3375
        %3377 = vrot.lane.b32.xlu0 %v3287, 64
        %v3378 = vpop.permute.xlu0 %3377
        %3379 = vrot.lane.b32.xlu0 %v3288, 64
        %v3380 = vpop.permute.xlu0 %3379
        %3381 = vrot.lane.b32.xlu0 %v3289, 64
        %v3382 = vpop.permute.xlu0 %3381
        %3383 = vrot.lane.b32.xlu0 %v3290, 64
        %v3384 = vpop.permute.xlu0 %3383
        %3385 = vrot.lane.b32.xlu0 %v3291, 64
        %v3386 = vpop.permute.xlu0 %3385
        %3387 = vrot.lane.b32.xlu0 %v3292, 64
        %v3388 = vpop.permute.xlu0 %3387
        %v3421 = vadd.f32 %v3069, %v3326
        %v3422 = vadd.f32 %v3070, %v3328
        %v3423 = vadd.f32 %v3071, %v3330
        %v3424 = vadd.f32 %v3072, %v3332
        %v3425 = vadd.f32 %v3073, %v3334
        %v3426 = vadd.f32 %v3074, %v3336
        %v3427 = vadd.f32 %v3075, %v3338
        %v3428 = vadd.f32 %v3076, %v3340
        %v3429 = vadd.f32 %v3077, %v3342
        %v3430 = vadd.f32 %v3078, %v3344
        %v3431 = vadd.f32 %v3079, %v3346
        %v3432 = vadd.f32 %v3080, %v3348
        %v3433 = vadd.f32 %v3081, %v3350
        %v3434 = vadd.f32 %v3082, %v3352
        %v3435 = vadd.f32 %v3083, %v3354
        %v3436 = vadd.f32 %v3084, %v3356
        %v3437 = vadd.f32 %v3085, %v3358
        %v3438 = vadd.f32 %v3086, %v3360
        %v3439 = vadd.f32 %v3087, %v3362
        %v3440 = vadd.f32 %v3088, %v3364
        %v3441 = vadd.f32 %v3089, %v3366
        %v3442 = vadd.f32 %v3090, %v3368
        %v3443 = vadd.f32 %v3091, %v3370
        %v3444 = vadd.f32 %v3092, %v3372
        %v3445 = vadd.f32 %v3093, %v3374
        %v3446 = vadd.f32 %v3094, %v3376
        %v3447 = vadd.f32 %v3095, %v3378
        %v3448 = vadd.f32 %v3096, %v3380
        %v3449 = vadd.f32 %v3097, %v3382
        %v3450 = vadd.f32 %v3098, %v3384
        %v3451 = vadd.f32 %v3099, %v3386
        %v3452 = vadd.f32 %v3100, %v3388
        %vm3453 = vcmask 1048064
        %3454 = vst.msk [vmem:[#allocation2] sm:$0xff] %vm3453, %v3421
        %3455 = vst.msk [vmem:[#allocation2 + $0x8] sm:$0xff] %vm3453, %v3422
        %3456 = vst.msk [vmem:[#allocation2 + $0x10] sm:$0xff] %vm3453, %v3423
        %3457 = vst.msk [vmem:[#allocation2 + $0x18] sm:$0xff] %vm3453, %v3424
        %3458 = vst.msk [vmem:[#allocation2 + $0x20] sm:$0xff] %vm3453, %v3425
        %3459 = vst.msk [vmem:[#allocation2 + $0x28] sm:$0xff] %vm3453, %v3426
        %3460 = vst.msk [vmem:[#allocation2 + $0x30] sm:$0xff] %vm3453, %v3427
        %3461 = vst.msk [vmem:[#allocation2 + $0x38] sm:$0xff] %vm3453, %v3428
        %3462 = vst.msk [vmem:[#allocation2 + $0x40] sm:$0xff] %vm3453, %v3429
        %3463 = vst.msk [vmem:[#allocation2 + $0x48] sm:$0xff] %vm3453, %v3430
        %3464 = vst.msk [vmem:[#allocation2 + $0x50] sm:$0xff] %vm3453, %v3431
        %3465 = vst.msk [vmem:[#allocation2 + $0x58] sm:$0xff] %vm3453, %v3432
        %3466 = vst.msk [vmem:[#allocation2 + $0x60] sm:$0xff] %vm3453, %v3433
        %3467 = vst.msk [vmem:[#allocation2 + $0x68] sm:$0xff] %vm3453, %v3434
        %3468 = vst.msk [vmem:[#allocation2 + $0x70] sm:$0xff] %vm3453, %v3435
        %3469 = vst.msk [vmem:[#allocation2 + $0x78] sm:$0xff] %vm3453, %v3436
        %3470 = vst.msk [vmem:[#allocation2 + $0x80] sm:$0xff] %vm3453, %v3437
        %3471 = vst.msk [vmem:[#allocation2 + $0x88] sm:$0xff] %vm3453, %v3438
        %3472 = vst.msk [vmem:[#allocation2 + $0x90] sm:$0xff] %vm3453, %v3439
        %3473 = vst.msk [vmem:[#allocation2 + $0x98] sm:$0xff] %vm3453, %v3440
        %3474 = vst.msk [vmem:[#allocation2 + $0xa0] sm:$0xff] %vm3453, %v3441
        %3475 = vst.msk [vmem:[#allocation2 + $0xa8] sm:$0xff] %vm3453, %v3442
        %3476 = vst.msk [vmem:[#allocation2 + $0xb0] sm:$0xff] %vm3453, %v3443
        %3477 = vst.msk [vmem:[#allocation2 + $0xb8] sm:$0xff] %vm3453, %v3444
        %3478 = vst.msk [vmem:[#allocation2 + $0xc0] sm:$0xff] %vm3453, %v3445
        %3479 = vst.msk [vmem:[#allocation2 + $0xc8] sm:$0xff] %vm3453, %v3446
        %3480 = vst.msk [vmem:[#allocation2 + $0xd0] sm:$0xff] %vm3453, %v3447
        %3481 = vst.msk [vmem:[#allocation2 + $0xd8] sm:$0xff] %vm3453, %v3448
        %3482 = vst.msk [vmem:[#allocation2 + $0xe0] sm:$0xff] %vm3453, %v3449
        %3483 = vst.msk [vmem:[#allocation2 + $0xe8] sm:$0xff] %vm3453, %v3450
        %3484 = vst.msk [vmem:[#allocation2 + $0xf0] sm:$0xff] %vm3453, %v3451
        %3485 = vst.msk [vmem:[#allocation2 + $0xf8] sm:$0xff] %vm3453, %v3452
        %s3486 = scalar_lea.vmem %s3, 64
        %v3487 = vld [vmem:[%s3486] sm:$0xf]
        %v3488 = vld [vmem:[%s3486 + $0x4] sm:$0xf]
        %v3489 = vld [vmem:[%s3486 + $0x8] sm:$0xf]
        %v3490 = vld [vmem:[%s3486 + $0xc] sm:$0xf]
        %v3491 = vld [vmem:[%s3486 + $0x10] sm:$0xf]
        %v3492 = vld [vmem:[%s3486 + $0x14] sm:$0xf]
        %v3493 = vld [vmem:[%s3486 + $0x18] sm:$0xf]
        %v3494 = vld [vmem:[%s3486 + $0x1c] sm:$0xf]
        %v3495 = vld [vmem:[%s3486 + $0x20] sm:$0xf]
        %v3496 = vld [vmem:[%s3486 + $0x24] sm:$0xf]
        %v3497 = vld [vmem:[%s3486 + $0x28] sm:$0xf]
        %v3498 = vld [vmem:[%s3486 + $0x2c] sm:$0xf]
        %v3499 = vld [vmem:[%s3486 + $0x30] sm:$0xf]
        %v3500 = vld [vmem:[%s3486 + $0x34] sm:$0xf]
        %v3501 = vld [vmem:[%s3486 + $0x38] sm:$0xf]
        %v3502 = vld [vmem:[%s3486 + $0x3c] sm:$0xf]
        %v3503 = vld [vmem:[%s4 + $0x1] sm:$0x1]
        %v3504 = vlaneseq
        %v3505 = vshrl.u32 %v3504, 7
        %v3506 = vsub.s32 0, %v3505
        %v3507 = vrot.slane %v3503, %v3506
        %v3524 = vunpack.c.l.b16 %v3487
        %v3525 = vunpack.c.l.b16 %v3488
        %v3526 = vunpack.c.l.b16 %v3489
        %v3527 = vunpack.c.l.b16 %v3490
        %v3528 = vunpack.c.l.b16 %v3491
        %v3529 = vunpack.c.l.b16 %v3492
        %v3530 = vunpack.c.l.b16 %v3493
        %v3531 = vunpack.c.l.b16 %v3494
        %v3532 = vunpack.c.l.b16 %v3495
        %v3533 = vunpack.c.l.b16 %v3496
        %v3534 = vunpack.c.l.b16 %v3497
        %v3535 = vunpack.c.l.b16 %v3498
        %v3536 = vunpack.c.l.b16 %v3499
        %v3537 = vunpack.c.l.b16 %v3500
        %v3538 = vunpack.c.l.b16 %v3501
        %v3539 = vunpack.c.l.b16 %v3502
        %v3540 = vpack.c.b16 %v3525, %v3524
        %v3541 = vpack.c.b16 %v3527, %v3526
        %v3542 = vpack.c.b16 %v3529, %v3528
        %v3543 = vpack.c.b16 %v3531, %v3530
        %v3544 = vpack.c.b16 %v3533, %v3532
        %v3545 = vpack.c.b16 %v3535, %v3534
        %v3546 = vpack.c.b16 %v3537, %v3536
        %v3547 = vpack.c.b16 %v3539, %v3538
        %3556 = vmatprep.subr.bf16.mxu0 0
        %3557 = vmatpush1.bf16.msra.mxu0 %v3540
        %3558 = vmatprep.subr.bf16.mxu0 0
        %3559 = vmatpush1.bf16.msra.mxu0 %v3541
        %3560 = vmatprep.subr.bf16.mxu0 0
        %3561 = vmatpush1.bf16.msra.mxu0 %v3542
        %3562 = vmatprep.subr.bf16.mxu0 0
        %3563 = vmatpush1.bf16.msra.mxu0 %v3543
        %3564 = vmatprep.subr.bf16.mxu0 0
        %3565 = vmatpush1.bf16.msra.mxu0 %v3544
        %3566 = vmatprep.subr.bf16.mxu0 0
        %3567 = vmatpush1.bf16.msra.mxu0 %v3545
        %3568 = vmatprep.subr.bf16.mxu0 0
        %3569 = vmatpush1.bf16.msra.mxu0 %v3546
        %3570 = vmatprep.subr.bf16.mxu0 0
        %3571 = vmatpush1.bf16.msra.mxu0 %v3547
        %3572 = vmatprep.subr.bf16.mxu0 0
        %3573 = vmatpush1.bf16.msra.mxu0 0
        %3574 = vmatprep.subr.bf16.mxu0 0
        %3575 = vmatpush1.bf16.msra.mxu0 0
        %3576 = vmatprep.subr.bf16.mxu0 0
        %3577 = vmatpush1.bf16.msra.mxu0 0
        %3578 = vmatprep.subr.bf16.mxu0 0
        %3579 = vmatpush1.bf16.msra.mxu0 0
        %3580 = vmatprep.subr.bf16.mxu0 0
        %3581 = vmatpush1.bf16.msra.mxu0 0
        %3582 = vmatprep.subr.bf16.mxu0 0
        %3583 = vmatpush1.bf16.msra.mxu0 0
        %3584 = vmatprep.subr.bf16.mxu0 0
        %3585 = vmatpush1.bf16.msra.mxu0 0
        %3586 = vmatprep.subr.bf16.mxu0 0
        %3587 = vmatpush1.bf16.msra.mxu0 0
        %3588 = vmatprep.mubr.bf16.mxu0 0
        %3589 = vmatmul.mubr.bf16.gmra.mrb[0].mxu0 %v1341
        %v3590 = vpop.f32.mrb[0].mxu0
        %v3591 = vadd.f32 %v3507, %v3590
        %v3592 = vpop.f32.mrb[0].mxu0
        %v3593 = vpop.f32.mrb[0].mxu0
        %v3594 = vadd.f32 %v3507, %v3593
        %v3595 = vpop.f32.mrb[0].mxu0
        %3596 = vmatprep.mubr.bf16.mxu0 0
        %3597 = vmatmul.mubr.bf16.gmra.mrb[0].mxu0 %v1345
        %v3598 = vpop.f32.mrb[0].mxu0
        %v3599 = vadd.f32 %v3507, %v3598
        %v3600 = vpop.f32.mrb[0].mxu0
        %v3601 = vpop.f32.mrb[0].mxu0
        %v3602 = vadd.f32 %v3507, %v3601
        %v3603 = vpop.f32.mrb[0].mxu0
        %3604 = vmatprep.mubr.bf16.mxu0 0
        %3605 = vmatmul.mubr.bf16.gmra.mrb[0].mxu0 %v1349
        %v3606 = vpop.f32.mrb[0].mxu0
        %v3607 = vadd.f32 %v3507, %v3606
        %v3608 = vpop.f32.mrb[0].mxu0
        %v3609 = vpop.f32.mrb[0].mxu0
        %v3610 = vadd.f32 %v3507, %v3609
        %v3611 = vpop.f32.mrb[0].mxu0
        %3612 = vmatprep.mubr.bf16.mxu0 0
        %3613 = vmatmul.mubr.bf16.gmra.mrb[0].mxu0 %v1353
        %v3614 = vpop.f32.mrb[0].mxu0
        %v3615 = vadd.f32 %v3507, %v3614
        %v3616 = vpop.f32.mrb[0].mxu0
        %v3617 = vpop.f32.mrb[0].mxu0
        %v3618 = vadd.f32 %v3507, %v3617
        %v3619 = vpop.f32.mrb[0].mxu0
        %3620 = vmatprep.mubr.bf16.mxu0 0
        %3621 = vmatmul.mubr.bf16.gmra.mrb[0].mxu0 %v1357
        %v3622 = vpop.f32.mrb[0].mxu0
        %v3623 = vadd.f32 %v3507, %v3622
        %v3624 = vpop.f32.mrb[0].mxu0
        %v3625 = vpop.f32.mrb[0].mxu0
        %v3626 = vadd.f32 %v3507, %v3625
        %v3627 = vpop.f32.mrb[0].mxu0
        %3628 = vmatprep.mubr.bf16.mxu0 0
        %3629 = vmatmul.mubr.bf16.gmra.mrb[0].mxu0 %v1361
        %v3630 = vpop.f32.mrb[0].mxu0
        %v3631 = vadd.f32 %v3507, %v3630
        %v3632 = vpop.f32.mrb[0].mxu0
        %v3633 = vpop.f32.mrb[0].mxu0
        %v3634 = vadd.f32 %v3507, %v3633
        %v3635 = vpop.f32.mrb[0].mxu0
        %3636 = vmatprep.mubr.bf16.mxu0 0
        %3637 = vmatmul.mubr.bf16.gmra.mrb[0].mxu0 %v1365
        %v3638 = vpop.f32.mrb[0].mxu0
        %v3639 = vadd.f32 %v3507, %v3638
        %v3640 = vpop.f32.mrb[0].mxu0
        %v3641 = vpop.f32.mrb[0].mxu0
        %v3642 = vadd.f32 %v3507, %v3641
        %v3643 = vpop.f32.mrb[0].mxu0
        %3644 = vmatprep.mubr.bf16.mxu0 0
        %3645 = vmatmul.mubr.bf16.gmra.mrb[0].mxu0 %v1369
        %v3646 = vpop.f32.mrb[0].mxu0
        %v3647 = vadd.f32 %v3507, %v3646
        %v3648 = vpop.f32.mrb[0].mxu0
        %v3649 = vpop.f32.mrb[0].mxu0
        %v3650 = vadd.f32 %v3507, %v3649
        %v3651 = vpop.f32.mrb[0].mxu0
        %3652 = vmatprep.mubr.bf16.mxu0 0
        %3653 = vmatmul.mubr.bf16.gmra.mrb[0].mxu0 %v1373
        %v3654 = vpop.f32.mrb[0].mxu0
        %v3655 = vadd.f32 %v3507, %v3654
        %v3656 = vpop.f32.mrb[0].mxu0
        %v3657 = vpop.f32.mrb[0].mxu0
        %v3658 = vadd.f32 %v3507, %v3657
        %v3659 = vpop.f32.mrb[0].mxu0
        %3660 = vmatprep.mubr.bf16.mxu0 0
        %3661 = vmatmul.mubr.bf16.gmra.mrb[0].mxu0 %v1377
        %v3662 = vpop.f32.mrb[0].mxu0
        %v3663 = vadd.f32 %v3507, %v3662
        %v3664 = vpop.f32.mrb[0].mxu0
        %v3665 = vpop.f32.mrb[0].mxu0
        %v3666 = vadd.f32 %v3507, %v3665
        %v3667 = vpop.f32.mrb[0].mxu0
        %3668 = vmatprep.mubr.bf16.mxu0 0
        %3669 = vmatmul.mubr.bf16.gmra.mrb[0].mxu0 %v1381
        %v3670 = vpop.f32.mrb[0].mxu0
        %v3671 = vadd.f32 %v3507, %v3670
        %v3672 = vpop.f32.mrb[0].mxu0
        %v3673 = vpop.f32.mrb[0].mxu0
        %v3674 = vadd.f32 %v3507, %v3673
        %v3675 = vpop.f32.mrb[0].mxu0
        %3676 = vmatprep.mubr.bf16.mxu0 0
        %3677 = vmatmul.mubr.bf16.gmra.mrb[0].mxu0 %v1385
        %v3678 = vpop.f32.mrb[0].mxu0
        %v3679 = vadd.f32 %v3507, %v3678
        %v3680 = vpop.f32.mrb[0].mxu0
        %v3681 = vpop.f32.mrb[0].mxu0
        %v3682 = vadd.f32 %v3507, %v3681
        %v3683 = vpop.f32.mrb[0].mxu0
        %3684 = vmatprep.mubr.bf16.mxu0 0
        %3685 = vmatmul.mubr.bf16.gmra.mrb[0].mxu0 %v1389
        %v3686 = vpop.f32.mrb[0].mxu0
        %v3687 = vadd.f32 %v3507, %v3686
        %v3688 = vpop.f32.mrb[0].mxu0
        %v3689 = vpop.f32.mrb[0].mxu0
        %v3690 = vadd.f32 %v3507, %v3689
        %v3691 = vpop.f32.mrb[0].mxu0
        %3692 = vmatprep.mubr.bf16.mxu0 0
        %3693 = vmatmul.mubr.bf16.gmra.mrb[0].mxu0 %v1393
        %v3694 = vpop.f32.mrb[0].mxu0
        %v3695 = vadd.f32 %v3507, %v3694
        %v3696 = vpop.f32.mrb[0].mxu0
        %v3697 = vpop.f32.mrb[0].mxu0
        %v3698 = vadd.f32 %v3507, %v3697
        %v3699 = vpop.f32.mrb[0].mxu0
        %3700 = vmatprep.mubr.bf16.mxu0 0
        %3701 = vmatmul.mubr.bf16.gmra.mrb[0].mxu0 %v1397
        %v3702 = vpop.f32.mrb[0].mxu0
        %v3703 = vadd.f32 %v3507, %v3702
        %v3704 = vpop.f32.mrb[0].mxu0
        %v3705 = vpop.f32.mrb[0].mxu0
        %v3706 = vadd.f32 %v3507, %v3705
        %v3707 = vpop.f32.mrb[0].mxu0
        %3708 = vmatprep.mubr.bf16.mxu0 0
        %3709 = vmatmul.mubr.bf16.gmra.mrb[0].mxu0 %v1401
        %v3710 = vpop.f32.mrb[0].mxu0
        %v3711 = vadd.f32 %v3507, %v3710
        %v3712 = vpop.f32.mrb[0].mxu0
        %v3713 = vpop.f32.mrb[0].mxu0
        %v3714 = vadd.f32 %v3507, %v3713
        %v3715 = vpop.f32.mrb[0].mxu0
        %3716 = vdwg.mxu0
        %v3717 = vmax.f32 %v3591, 0.0
        %v3718 = vmax.f32 %v3594, 0.0
        %v3719 = vmax.f32 %v3599, 0.0
        %v3720 = vmax.f32 %v3602, 0.0
        %v3721 = vmax.f32 %v3607, 0.0
        %v3722 = vmax.f32 %v3610, 0.0
        %v3723 = vmax.f32 %v3615, 0.0
        %v3724 = vmax.f32 %v3618, 0.0
        %v3725 = vmax.f32 %v3623, 0.0
        %v3726 = vmax.f32 %v3626, 0.0
        %v3727 = vmax.f32 %v3631, 0.0
        %v3728 = vmax.f32 %v3634, 0.0
        %v3729 = vmax.f32 %v3639, 0.0
        %v3730 = vmax.f32 %v3642, 0.0
        %v3731 = vmax.f32 %v3647, 0.0
        %v3732 = vmax.f32 %v3650, 0.0
        %v3733 = vmax.f32 %v3655, 0.0
        %v3734 = vmax.f32 %v3658, 0.0
        %v3735 = vmax.f32 %v3663, 0.0
        %v3736 = vmax.f32 %v3666, 0.0
        %v3737 = vmax.f32 %v3671, 0.0
        %v3738 = vmax.f32 %v3674, 0.0
        %v3739 = vmax.f32 %v3679, 0.0
        %v3740 = vmax.f32 %v3682, 0.0
        %v3741 = vmax.f32 %v3687, 0.0
        %v3742 = vmax.f32 %v3690, 0.0
        %v3743 = vmax.f32 %v3695, 0.0
        %v3744 = vmax.f32 %v3698, 0.0
        %v3745 = vmax.f32 %v3703, 0.0
        %v3746 = vmax.f32 %v3706, 0.0
        %v3747 = vmax.f32 %v3711, 0.0
        %v3748 = vmax.f32 %v3714, 0.0
        %v3749 = vld [vmem:[#allocation2] sm:$0xff]
        %v3750 = vld [vmem:[#allocation2 + $0x8] sm:$0xff]
        %v3751 = vld [vmem:[#allocation2 + $0x10] sm:$0xff]
        %v3752 = vld [vmem:[#allocation2 + $0x18] sm:$0xff]
        %v3753 = vld [vmem:[#allocation2 + $0x20] sm:$0xff]
        %v3754 = vld [vmem:[#allocation2 + $0x28] sm:$0xff]
        %v3755 = vld [vmem:[#allocation2 + $0x30] sm:$0xff]
        %v3756 = vld [vmem:[#allocation2 + $0x38] sm:$0xff]
        %v3757 = vld [vmem:[#allocation2 + $0x40] sm:$0xff]
        %v3758 = vld [vmem:[#allocation2 + $0x48] sm:$0xff]
        %v3759 = vld [vmem:[#allocation2 + $0x50] sm:$0xff]
        %v3760 = vld [vmem:[#allocation2 + $0x58] sm:$0xff]
        %v3761 = vld [vmem:[#allocation2 + $0x60] sm:$0xff]
        %v3762 = vld [vmem:[#allocation2 + $0x68] sm:$0xff]
        %v3763 = vld [vmem:[#allocation2 + $0x70] sm:$0xff]
        %v3764 = vld [vmem:[#allocation2 + $0x78] sm:$0xff]
        %v3765 = vld [vmem:[#allocation2 + $0x80] sm:$0xff]
        %v3766 = vld [vmem:[#allocation2 + $0x88] sm:$0xff]
        %v3767 = vld [vmem:[#allocation2 + $0x90] sm:$0xff]
        %v3768 = vld [vmem:[#allocation2 + $0x98] sm:$0xff]
        %v3769 = vld [vmem:[#allocation2 + $0xa0] sm:$0xff]
        %v3770 = vld [vmem:[#allocation2 + $0xa8] sm:$0xff]
        %v3771 = vld [vmem:[#allocation2 + $0xb0] sm:$0xff]
        %v3772 = vld [vmem:[#allocation2 + $0xb8] sm:$0xff]
        %v3773 = vld [vmem:[#allocation2 + $0xc0] sm:$0xff]
        %v3774 = vld [vmem:[#allocation2 + $0xc8] sm:$0xff]
        %v3775 = vld [vmem:[#allocation2 + $0xd0] sm:$0xff]
        %v3776 = vld [vmem:[#allocation2 + $0xd8] sm:$0xff]
        %v3777 = vld [vmem:[#allocation2 + $0xe0] sm:$0xff]
        %v3778 = vld [vmem:[#allocation2 + $0xe8] sm:$0xff]
        %v3779 = vld [vmem:[#allocation2 + $0xf0] sm:$0xff]
        %v3780 = vld [vmem:[#allocation2 + $0xf8] sm:$0xff]
        %3781 = vset.pattern.permute.xlu0 1
        %3782 = vperm.xlu0 %3781, %v1973
        %v3783 = vpop.permute.xlu0 %3782
        %3785 = vset.pattern.permute.xlu0 1
        %3786 = vperm.xlu0 %3785, %v1974
        %v3787 = vpop.permute.xlu0 %3786
        %3789 = vset.pattern.permute.xlu0 1
        %3790 = vperm.xlu0 %3789, %v1975
        %v3791 = vpop.permute.xlu0 %3790
        %3793 = vset.pattern.permute.xlu0 1
        %3794 = vperm.xlu0 %3793, %v1976
        %v3795 = vpop.permute.xlu0 %3794
        %3797 = vset.pattern.permute.xlu0 1
        %3798 = vperm.xlu0 %3797, %v1977
        %v3799 = vpop.permute.xlu0 %3798
        %3801 = vset.pattern.permute.xlu0 1
        %3802 = vperm.xlu0 %3801, %v1978
        %v3803 = vpop.permute.xlu0 %3802
        %3805 = vset.pattern.permute.xlu0 1
        %3806 = vperm.xlu0 %3805, %v1979
        %v3807 = vpop.permute.xlu0 %3806
        %3809 = vset.pattern.permute.xlu0 1
        %3810 = vperm.xlu0 %3809, %v1980
        %v3811 = vpop.permute.xlu0 %3810
        %3813 = vset.pattern.permute.xlu0 1
        %3814 = vperm.xlu0 %3813, %v1981
        %v3815 = vpop.permute.xlu0 %3814
        %3817 = vset.pattern.permute.xlu0 1
        %3818 = vperm.xlu0 %3817, %v1982
        %v3819 = vpop.permute.xlu0 %3818
        %3821 = vset.pattern.permute.xlu0 1
        %3822 = vperm.xlu0 %3821, %v1983
        %v3823 = vpop.permute.xlu0 %3822
        %3825 = vset.pattern.permute.xlu0 1
        %3826 = vperm.xlu0 %3825, %v1984
        %v3827 = vpop.permute.xlu0 %3826
        %3829 = vset.pattern.permute.xlu0 1
        %3830 = vperm.xlu0 %3829, %v1985
        %v3831 = vpop.permute.xlu0 %3830
        %3833 = vset.pattern.permute.xlu0 1
        %3834 = vperm.xlu0 %3833, %v1986
        %v3835 = vpop.permute.xlu0 %3834
        %3837 = vset.pattern.permute.xlu0 1
        %3838 = vperm.xlu0 %3837, %v1987
        %v3839 = vpop.permute.xlu0 %3838
        %3841 = vset.pattern.permute.xlu0 1
        %3842 = vperm.xlu0 %3841, %v1988
        %v3843 = vpop.permute.xlu0 %3842
        %3845 = vset.pattern.permute.xlu0 1
        %3846 = vperm.xlu0 %3845, %v1989
        %v3847 = vpop.permute.xlu0 %3846
        %3849 = vset.pattern.permute.xlu0 1
        %3850 = vperm.xlu0 %3849, %v1990
        %v3851 = vpop.permute.xlu0 %3850
        %3853 = vset.pattern.permute.xlu0 1
        %3854 = vperm.xlu0 %3853, %v1991
        %v3855 = vpop.permute.xlu0 %3854
        %3857 = vset.pattern.permute.xlu0 1
        %3858 = vperm.xlu0 %3857, %v1992
        %v3859 = vpop.permute.xlu0 %3858
        %3861 = vset.pattern.permute.xlu0 1
        %3862 = vperm.xlu0 %3861, %v1993
        %v3863 = vpop.permute.xlu0 %3862
        %3865 = vset.pattern.permute.xlu0 1
        %3866 = vperm.xlu0 %3865, %v1994
        %v3867 = vpop.permute.xlu0 %3866
        %3869 = vset.pattern.permute.xlu0 1
        %3870 = vperm.xlu0 %3869, %v1995
        %v3871 = vpop.permute.xlu0 %3870
        %3873 = vset.pattern.permute.xlu0 1
        %3874 = vperm.xlu0 %3873, %v1996
        %v3875 = vpop.permute.xlu0 %3874
        %3877 = vset.pattern.permute.xlu0 1
        %3878 = vperm.xlu0 %3877, %v1997
        %v3879 = vpop.permute.xlu0 %3878
        %3881 = vset.pattern.permute.xlu0 1
        %3882 = vperm.xlu0 %3881, %v1998
        %v3883 = vpop.permute.xlu0 %3882
        %3885 = vset.pattern.permute.xlu0 1
        %3886 = vperm.xlu0 %3885, %v1999
        %v3887 = vpop.permute.xlu0 %3886
        %3889 = vset.pattern.permute.xlu0 1
        %3890 = vperm.xlu0 %3889, %v2000
        %v3891 = vpop.permute.xlu0 %3890
        %3893 = vset.pattern.permute.xlu0 1
        %3894 = vperm.xlu0 %3893, %v2001
        %v3895 = vpop.permute.xlu0 %3894
        %3897 = vset.pattern.permute.xlu0 1
        %3898 = vperm.xlu0 %3897, %v2002
        %v3899 = vpop.permute.xlu0 %3898
        %3901 = vset.pattern.permute.xlu0 1
        %3902 = vperm.xlu0 %3901, %v2003
        %v3903 = vpop.permute.xlu0 %3902
        %3905 = vset.pattern.permute.xlu0 1
        %3906 = vperm.xlu0 %3905, %v2004
        %v3907 = vpop.permute.xlu0 %3906
        %v3909 = vmul.f32 %v3783, %v3717
        %v3910 = vmul.f32 %v3787, %v3718
        %v3911 = vmul.f32 %v3791, %v3719
        %v3912 = vmul.f32 %v3795, %v3720
        %v3913 = vmul.f32 %v3799, %v3721
        %v3914 = vmul.f32 %v3803, %v3722
        %v3915 = vmul.f32 %v3807, %v3723
        %v3916 = vmul.f32 %v3811, %v3724
        %v3917 = vmul.f32 %v3815, %v3725
        %v3918 = vmul.f32 %v3819, %v3726
        %v3919 = vmul.f32 %v3823, %v3727
        %v3920 = vmul.f32 %v3827, %v3728
        %v3921 = vmul.f32 %v3831, %v3729
        %v3922 = vmul.f32 %v3835, %v3730
        %v3923 = vmul.f32 %v3839, %v3731
        %v3924 = vmul.f32 %v3843, %v3732
        %v3925 = vmul.f32 %v3847, %v3733
        %v3926 = vmul.f32 %v3851, %v3734
        %v3927 = vmul.f32 %v3855, %v3735
        %v3928 = vmul.f32 %v3859, %v3736
        %v3929 = vmul.f32 %v3863, %v3737
        %v3930 = vmul.f32 %v3867, %v3738
        %v3931 = vmul.f32 %v3871, %v3739
        %v3932 = vmul.f32 %v3875, %v3740
        %v3933 = vmul.f32 %v3879, %v3741
        %v3934 = vmul.f32 %v3883, %v3742
        %v3935 = vmul.f32 %v3887, %v3743
        %v3936 = vmul.f32 %v3891, %v3744
        %v3937 = vmul.f32 %v3895, %v3745
        %v3938 = vmul.f32 %v3899, %v3746
        %v3939 = vmul.f32 %v3903, %v3747
        %v3940 = vmul.f32 %v3907, %v3748
        %v3941 = vadd.f32 %v3749, %v3909
        %v3942 = vadd.f32 %v3750, %v3910
        %v3943 = vadd.f32 %v3751, %v3911
        %v3944 = vadd.f32 %v3752, %v3912
        %v3945 = vadd.f32 %v3753, %v3913
        %v3946 = vadd.f32 %v3754, %v3914
        %v3947 = vadd.f32 %v3755, %v3915
        %v3948 = vadd.f32 %v3756, %v3916
        %v3949 = vadd.f32 %v3757, %v3917
        %v3950 = vadd.f32 %v3758, %v3918
        %v3951 = vadd.f32 %v3759, %v3919
        %v3952 = vadd.f32 %v3760, %v3920
        %v3953 = vadd.f32 %v3761, %v3921
        %v3954 = vadd.f32 %v3762, %v3922
        %v3955 = vadd.f32 %v3763, %v3923
        %v3956 = vadd.f32 %v3764, %v3924
        %v3957 = vadd.f32 %v3765, %v3925
        %v3958 = vadd.f32 %v3766, %v3926
        %v3959 = vadd.f32 %v3767, %v3927
        %v3960 = vadd.f32 %v3768, %v3928
        %v3961 = vadd.f32 %v3769, %v3929
        %v3962 = vadd.f32 %v3770, %v3930
        %v3963 = vadd.f32 %v3771, %v3931
        %v3964 = vadd.f32 %v3772, %v3932
        %v3965 = vadd.f32 %v3773, %v3933
        %v3966 = vadd.f32 %v3774, %v3934
        %v3967 = vadd.f32 %v3775, %v3935
        %v3968 = vadd.f32 %v3776, %v3936
        %v3969 = vadd.f32 %v3777, %v3937
        %v3970 = vadd.f32 %v3778, %v3938
        %v3971 = vadd.f32 %v3779, %v3939
        %v3972 = vadd.f32 %v3780, %v3940
        %3973 = vst.msk [vmem:[#allocation2] sm:$0xff] %vm3036, %v3941
        %3974 = vst.msk [vmem:[#allocation2 + $0x8] sm:$0xff] %vm3036, %v3942
        %3975 = vst.msk [vmem:[#allocation2 + $0x10] sm:$0xff] %vm3036, %v3943
        %3976 = vst.msk [vmem:[#allocation2 + $0x18] sm:$0xff] %vm3036, %v3944
        %3977 = vst.msk [vmem:[#allocation2 + $0x20] sm:$0xff] %vm3036, %v3945
        %3978 = vst.msk [vmem:[#allocation2 + $0x28] sm:$0xff] %vm3036, %v3946
        %3979 = vst.msk [vmem:[#allocation2 + $0x30] sm:$0xff] %vm3036, %v3947
        %3980 = vst.msk [vmem:[#allocation2 + $0x38] sm:$0xff] %vm3036, %v3948
        %3981 = vst.msk [vmem:[#allocation2 + $0x40] sm:$0xff] %vm3036, %v3949
        %3982 = vst.msk [vmem:[#allocation2 + $0x48] sm:$0xff] %vm3036, %v3950
        %3983 = vst.msk [vmem:[#allocation2 + $0x50] sm:$0xff] %vm3036, %v3951
        %3984 = vst.msk [vmem:[#allocation2 + $0x58] sm:$0xff] %vm3036, %v3952
        %3985 = vst.msk [vmem:[#allocation2 + $0x60] sm:$0xff] %vm3036, %v3953
        %3986 = vst.msk [vmem:[#allocation2 + $0x68] sm:$0xff] %vm3036, %v3954
        %3987 = vst.msk [vmem:[#allocation2 + $0x70] sm:$0xff] %vm3036, %v3955
        %3988 = vst.msk [vmem:[#allocation2 + $0x78] sm:$0xff] %vm3036, %v3956
        %3989 = vst.msk [vmem:[#allocation2 + $0x80] sm:$0xff] %vm3036, %v3957
        %3990 = vst.msk [vmem:[#allocation2 + $0x88] sm:$0xff] %vm3036, %v3958
        %3991 = vst.msk [vmem:[#allocation2 + $0x90] sm:$0xff] %vm3036, %v3959
        %3992 = vst.msk [vmem:[#allocation2 + $0x98] sm:$0xff] %vm3036, %v3960
        %3993 = vst.msk [vmem:[#allocation2 + $0xa0] sm:$0xff] %vm3036, %v3961
        %3994 = vst.msk [vmem:[#allocation2 + $0xa8] sm:$0xff] %vm3036, %v3962
        %3995 = vst.msk [vmem:[#allocation2 + $0xb0] sm:$0xff] %vm3036, %v3963
        %3996 = vst.msk [vmem:[#allocation2 + $0xb8] sm:$0xff] %vm3036, %v3964
        %3997 = vst.msk [vmem:[#allocation2 + $0xc0] sm:$0xff] %vm3036, %v3965
        %3998 = vst.msk [vmem:[#allocation2 + $0xc8] sm:$0xff] %vm3036, %v3966
        %3999 = vst.msk [vmem:[#allocation2 + $0xd0] sm:$0xff] %vm3036, %v3967
        %4000 = vst.msk [vmem:[#allocation2 + $0xd8] sm:$0xff] %vm3036, %v3968
        %4001 = vst.msk [vmem:[#allocation2 + $0xe0] sm:$0xff] %vm3036, %v3969
        %4002 = vst.msk [vmem:[#allocation2 + $0xe8] sm:$0xff] %vm3036, %v3970
        %4003 = vst.msk [vmem:[#allocation2 + $0xf0] sm:$0xff] %vm3036, %v3971
        %4004 = vst.msk [vmem:[#allocation2 + $0xf8] sm:$0xff] %vm3036, %v3972
        %v4005 = vld [vmem:[#allocation2] sm:$0xff]
        %v4006 = vld [vmem:[#allocation2 + $0x8] sm:$0xff]
        %v4007 = vld [vmem:[#allocation2 + $0x10] sm:$0xff]
        %v4008 = vld [vmem:[#allocation2 + $0x18] sm:$0xff]
        %v4009 = vld [vmem:[#allocation2 + $0x20] sm:$0xff]
        %v4010 = vld [vmem:[#allocation2 + $0x28] sm:$0xff]
        %v4011 = vld [vmem:[#allocation2 + $0x30] sm:$0xff]
        %v4012 = vld [vmem:[#allocation2 + $0x38] sm:$0xff]
        %v4013 = vld [vmem:[#allocation2 + $0x40] sm:$0xff]
        %v4014 = vld [vmem:[#allocation2 + $0x48] sm:$0xff]
        %v4015 = vld [vmem:[#allocation2 + $0x50] sm:$0xff]
        %v4016 = vld [vmem:[#allocation2 + $0x58] sm:$0xff]
        %v4017 = vld [vmem:[#allocation2 + $0x60] sm:$0xff]
        %v4018 = vld [vmem:[#allocation2 + $0x68] sm:$0xff]
        %v4019 = vld [vmem:[#allocation2 + $0x70] sm:$0xff]
        %v4020 = vld [vmem:[#allocation2 + $0x78] sm:$0xff]
        %v4021 = vld [vmem:[#allocation2 + $0x80] sm:$0xff]
        %v4022 = vld [vmem:[#allocation2 + $0x88] sm:$0xff]
        %v4023 = vld [vmem:[#allocation2 + $0x90] sm:$0xff]
        %v4024 = vld [vmem:[#allocation2 + $0x98] sm:$0xff]
        %v4025 = vld [vmem:[#allocation2 + $0xa0] sm:$0xff]
        %v4026 = vld [vmem:[#allocation2 + $0xa8] sm:$0xff]
        %v4027 = vld [vmem:[#allocation2 + $0xb0] sm:$0xff]
        %v4028 = vld [vmem:[#allocation2 + $0xb8] sm:$0xff]
        %v4029 = vld [vmem:[#allocation2 + $0xc0] sm:$0xff]
        %v4030 = vld [vmem:[#allocation2 + $0xc8] sm:$0xff]
        %v4031 = vld [vmem:[#allocation2 + $0xd0] sm:$0xff]
        %v4032 = vld [vmem:[#allocation2 + $0xd8] sm:$0xff]
        %v4033 = vld [vmem:[#allocation2 + $0xe0] sm:$0xff]
        %v4034 = vld [vmem:[#allocation2 + $0xe8] sm:$0xff]
        %v4035 = vld [vmem:[#allocation2 + $0xf0] sm:$0xff]
        %v4036 = vld [vmem:[#allocation2 + $0xf8] sm:$0xff]
        %4037 = vset.pattern.permute.xlu0 5
        %4038 = vperm.xlu0 %4037, %v2454
        %v4039 = vpop.permute.xlu0 %4038
        %4041 = vset.pattern.permute.xlu0 5
        %4042 = vperm.xlu0 %4041, %v2455
        %v4043 = vpop.permute.xlu0 %4042
        %4045 = vset.pattern.permute.xlu0 5
        %4046 = vperm.xlu0 %4045, %v2456
        %v4047 = vpop.permute.xlu0 %4046
        %4049 = vset.pattern.permute.xlu0 5
        %4050 = vperm.xlu0 %4049, %v2457
        %v4051 = vpop.permute.xlu0 %4050
        %4053 = vset.pattern.permute.xlu0 5
        %4054 = vperm.xlu0 %4053, %v2458
        %v4055 = vpop.permute.xlu0 %4054
        %4057 = vset.pattern.permute.xlu0 5
        %4058 = vperm.xlu0 %4057, %v2459
        %v4059 = vpop.permute.xlu0 %4058
        %4061 = vset.pattern.permute.xlu0 5
        %4062 = vperm.xlu0 %4061, %v2460
        %v4063 = vpop.permute.xlu0 %4062
        %4065 = vset.pattern.permute.xlu0 5
        %4066 = vperm.xlu0 %4065, %v2461
        %v4067 = vpop.permute.xlu0 %4066
        %4069 = vset.pattern.permute.xlu0 5
        %4070 = vperm.xlu0 %4069, %v2462
        %v4071 = vpop.permute.xlu0 %4070
        %4073 = vset.pattern.permute.xlu0 5
        %4074 = vperm.xlu0 %4073, %v2463
        %v4075 = vpop.permute.xlu0 %4074
        %4077 = vset.pattern.permute.xlu0 5
        %4078 = vperm.xlu0 %4077, %v2464
        %v4079 = vpop.permute.xlu0 %4078
        %4081 = vset.pattern.permute.xlu0 5
        %4082 = vperm.xlu0 %4081, %v2465
        %v4083 = vpop.permute.xlu0 %4082
        %4085 = vset.pattern.permute.xlu0 5
        %4086 = vperm.xlu0 %4085, %v2466
        %v4087 = vpop.permute.xlu0 %4086
        %4089 = vset.pattern.permute.xlu0 5
        %4090 = vperm.xlu0 %4089, %v2467
        %v4091 = vpop.permute.xlu0 %4090
        %4093 = vset.pattern.permute.xlu0 5
        %4094 = vperm.xlu0 %4093, %v2468
        %v4095 = vpop.permute.xlu0 %4094
        %4097 = vset.pattern.permute.xlu0 5
        %4098 = vperm.xlu0 %4097, %v2469
        %v4099 = vpop.permute.xlu0 %4098
        %4101 = vset.pattern.permute.xlu0 5
        %4102 = vperm.xlu0 %4101, %v2470
        %v4103 = vpop.permute.xlu0 %4102
        %4105 = vset.pattern.permute.xlu0 5
        %4106 = vperm.xlu0 %4105, %v2471
        %v4107 = vpop.permute.xlu0 %4106
        %4109 = vset.pattern.permute.xlu0 5
        %4110 = vperm.xlu0 %4109, %v2472
        %v4111 = vpop.permute.xlu0 %4110
        %4113 = vset.pattern.permute.xlu0 5
        %4114 = vperm.xlu0 %4113, %v2473
        %v4115 = vpop.permute.xlu0 %4114
        %4117 = vset.pattern.permute.xlu0 5
        %4118 = vperm.xlu0 %4117, %v2474
        %v4119 = vpop.permute.xlu0 %4118
        %4121 = vset.pattern.permute.xlu0 5
        %4122 = vperm.xlu0 %4121, %v2475
        %v4123 = vpop.permute.xlu0 %4122
        %4125 = vset.pattern.permute.xlu0 5
        %4126 = vperm.xlu0 %4125, %v2476
        %v4127 = vpop.permute.xlu0 %4126
        %4129 = vset.pattern.permute.xlu0 5
        %4130 = vperm.xlu0 %4129, %v2477
        %v4131 = vpop.permute.xlu0 %4130
        %4133 = vset.pattern.permute.xlu0 5
        %4134 = vperm.xlu0 %4133, %v2478
        %v4135 = vpop.permute.xlu0 %4134
        %4137 = vset.pattern.permute.xlu0 5
        %4138 = vperm.xlu0 %4137, %v2479
        %v4139 = vpop.permute.xlu0 %4138
        %4141 = vset.pattern.permute.xlu0 5
        %4142 = vperm.xlu0 %4141, %v2480
        %v4143 = vpop.permute.xlu0 %4142
        %4145 = vset.pattern.permute.xlu0 5
        %4146 = vperm.xlu0 %4145, %v2481
        %v4147 = vpop.permute.xlu0 %4146
        %4149 = vset.pattern.permute.xlu0 5
        %4150 = vperm.xlu0 %4149, %v2482
        %v4151 = vpop.permute.xlu0 %4150
        %4153 = vset.pattern.permute.xlu0 5
        %4154 = vperm.xlu0 %4153, %v2483
        %v4155 = vpop.permute.xlu0 %4154
        %4157 = vset.pattern.permute.xlu0 5
        %4158 = vperm.xlu0 %4157, %v2484
        %v4159 = vpop.permute.xlu0 %4158
        %4161 = vset.pattern.permute.xlu0 5
        %4162 = vperm.xlu0 %4161, %v2485
        %v4163 = vpop.permute.xlu0 %4162
        %v4165 = vmul.f32 %v4039, %v3717
        %v4166 = vmul.f32 %v4043, %v3718
        %v4167 = vmul.f32 %v4047, %v3719
        %v4168 = vmul.f32 %v4051, %v3720
        %v4169 = vmul.f32 %v4055, %v3721
        %v4170 = vmul.f32 %v4059, %v3722
        %v4171 = vmul.f32 %v4063, %v3723
        %v4172 = vmul.f32 %v4067, %v3724
        %v4173 = vmul.f32 %v4071, %v3725
        %v4174 = vmul.f32 %v4075, %v3726
        %v4175 = vmul.f32 %v4079, %v3727
        %v4176 = vmul.f32 %v4083, %v3728
        %v4177 = vmul.f32 %v4087, %v3729
        %v4178 = vmul.f32 %v4091, %v3730
        %v4179 = vmul.f32 %v4095, %v3731
        %v4180 = vmul.f32 %v4099, %v3732
        %v4181 = vmul.f32 %v4103, %v3733
        %v4182 = vmul.f32 %v4107, %v3734
        %v4183 = vmul.f32 %v4111, %v3735
        %v4184 = vmul.f32 %v4115, %v3736
        %v4185 = vmul.f32 %v4119, %v3737
        %v4186 = vmul.f32 %v4123, %v3738
        %v4187 = vmul.f32 %v4127, %v3739
        %v4188 = vmul.f32 %v4131, %v3740
        %v4189 = vmul.f32 %v4135, %v3741
        %v4190 = vmul.f32 %v4139, %v3742
        %v4191 = vmul.f32 %v4143, %v3743
        %v4192 = vmul.f32 %v4147, %v3744
        %v4193 = vmul.f32 %v4151, %v3745
        %v4194 = vmul.f32 %v4155, %v3746
        %v4195 = vmul.f32 %v4159, %v3747
        %v4196 = vmul.f32 %v4163, %v3748
        %4229 = vrot.lane.b32.xlu0 %v4165, 64
        %v4230 = vpop.permute.xlu0 %4229
        %4231 = vrot.lane.b32.xlu0 %v4166, 64
        %v4232 = vpop.permute.xlu0 %4231
        %4233 = vrot.lane.b32.xlu0 %v4167, 64
        %v4234 = vpop.permute.xlu0 %4233
        %4235 = vrot.lane.b32.xlu0 %v4168, 64
        %v4236 = vpop.permute.xlu0 %4235
        %4237 = vrot.lane.b32.xlu0 %v4169, 64
        %v4238 = vpop.permute.xlu0 %4237
        %4239 = vrot.lane.b32.xlu0 %v4170, 64
        %v4240 = vpop.permute.xlu0 %4239
        %4241 = vrot.lane.b32.xlu0 %v4171, 64
        %v4242 = vpop.permute.xlu0 %4241
        %4243 = vrot.lane.b32.xlu0 %v4172, 64
        %v4244 = vpop.permute.xlu0 %4243
        %4245 = vrot.lane.b32.xlu0 %v4173, 64
        %v4246 = vpop.permute.xlu0 %4245
        %4247 = vrot.lane.b32.xlu0 %v4174, 64
        %v4248 = vpop.permute.xlu0 %4247
        %4249 = vrot.lane.b32.xlu0 %v4175, 64
        %v4250 = vpop.permute.xlu0 %4249
        %4251 = vrot.lane.b32.xlu0 %v4176, 64
        %v4252 = vpop.permute.xlu0 %4251
        %4253 = vrot.lane.b32.xlu0 %v4177, 64
        %v4254 = vpop.permute.xlu0 %4253
        %4255 = vrot.lane.b32.xlu0 %v4178, 64
        %v4256 = vpop.permute.xlu0 %4255
        %4257 = vrot.lane.b32.xlu0 %v4179, 64
        %v4258 = vpop.permute.xlu0 %4257
        %4259 = vrot.lane.b32.xlu0 %v4180, 64
        %v4260 = vpop.permute.xlu0 %4259
        %4261 = vrot.lane.b32.xlu0 %v4181, 64
        %v4262 = vpop.permute.xlu0 %4261
        %4263 = vrot.lane.b32.xlu0 %v4182, 64
        %v4264 = vpop.permute.xlu0 %4263
        %4265 = vrot.lane.b32.xlu0 %v4183, 64
        %v4266 = vpop.permute.xlu0 %4265
        %4267 = vrot.lane.b32.xlu0 %v4184, 64
        %v4268 = vpop.permute.xlu0 %4267
        %4269 = vrot.lane.b32.xlu0 %v4185, 64
        %v4270 = vpop.permute.xlu0 %4269
        %4271 = vrot.lane.b32.xlu0 %v4186, 64
        %v4272 = vpop.permute.xlu0 %4271
        %4273 = vrot.lane.b32.xlu0 %v4187, 64
        %v4274 = vpop.permute.xlu0 %4273
        %4275 = vrot.lane.b32.xlu0 %v4188, 64
        %v4276 = vpop.permute.xlu0 %4275
        %4277 = vrot.lane.b32.xlu0 %v4189, 64
        %v4278 = vpop.permute.xlu0 %4277
        %4279 = vrot.lane.b32.xlu0 %v4190, 64
        %v4280 = vpop.permute.xlu0 %4279
        %4281 = vrot.lane.b32.xlu0 %v4191, 64
        %v4282 = vpop.permute.xlu0 %4281
        %4283 = vrot.lane.b32.xlu0 %v4192, 64
        %v4284 = vpop.permute.xlu0 %4283
        %4285 = vrot.lane.b32.xlu0 %v4193, 64
        %v4286 = vpop.permute.xlu0 %4285
        %4287 = vrot.lane.b32.xlu0 %v4194, 64
        %v4288 = vpop.permute.xlu0 %4287
        %4289 = vrot.lane.b32.xlu0 %v4195, 64
        %v4290 = vpop.permute.xlu0 %4289
        %4291 = vrot.lane.b32.xlu0 %v4196, 64
        %v4292 = vpop.permute.xlu0 %4291
        %v4325 = vadd.f32 %v4005, %v4230
        %v4326 = vadd.f32 %v4006, %v4232
        %v4327 = vadd.f32 %v4007, %v4234
        %v4328 = vadd.f32 %v4008, %v4236
        %v4329 = vadd.f32 %v4009, %v4238
        %v4330 = vadd.f32 %v4010, %v4240
        %v4331 = vadd.f32 %v4011, %v4242
        %v4332 = vadd.f32 %v4012, %v4244
        %v4333 = vadd.f32 %v4013, %v4246
        %v4334 = vadd.f32 %v4014, %v4248
        %v4335 = vadd.f32 %v4015, %v4250
        %v4336 = vadd.f32 %v4016, %v4252
        %v4337 = vadd.f32 %v4017, %v4254
        %v4338 = vadd.f32 %v4018, %v4256
        %v4339 = vadd.f32 %v4019, %v4258
        %v4340 = vadd.f32 %v4020, %v4260
        %v4341 = vadd.f32 %v4021, %v4262
        %v4342 = vadd.f32 %v4022, %v4264
        %v4343 = vadd.f32 %v4023, %v4266
        %v4344 = vadd.f32 %v4024, %v4268
        %v4345 = vadd.f32 %v4025, %v4270
        %v4346 = vadd.f32 %v4026, %v4272
        %v4347 = vadd.f32 %v4027, %v4274
        %v4348 = vadd.f32 %v4028, %v4276
        %v4349 = vadd.f32 %v4029, %v4278
        %v4350 = vadd.f32 %v4030, %v4280
        %v4351 = vadd.f32 %v4031, %v4282
        %v4352 = vadd.f32 %v4032, %v4284
        %v4353 = vadd.f32 %v4033, %v4286
        %v4354 = vadd.f32 %v4034, %v4288
        %v4355 = vadd.f32 %v4035, %v4290
        %v4356 = vadd.f32 %v4036, %v4292
        %4357 = vst.msk [vmem:[#allocation2] sm:$0xff] %vm3453, %v4325
        %4358 = vst.msk [vmem:[#allocation2 + $0x8] sm:$0xff] %vm3453, %v4326
        %4359 = vst.msk [vmem:[#allocation2 + $0x10] sm:$0xff] %vm3453, %v4327
        %4360 = vst.msk [vmem:[#allocation2 + $0x18] sm:$0xff] %vm3453, %v4328
        %4361 = vst.msk [vmem:[#allocation2 + $0x20] sm:$0xff] %vm3453, %v4329
        %4362 = vst.msk [vmem:[#allocation2 + $0x28] sm:$0xff] %vm3453, %v4330
        %4363 = vst.msk [vmem:[#allocation2 + $0x30] sm:$0xff] %vm3453, %v4331
        %4364 = vst.msk [vmem:[#allocation2 + $0x38] sm:$0xff] %vm3453, %v4332
        %4365 = vst.msk [vmem:[#allocation2 + $0x40] sm:$0xff] %vm3453, %v4333
        %4366 = vst.msk [vmem:[#allocation2 + $0x48] sm:$0xff] %vm3453, %v4334
        %4367 = vst.msk [vmem:[#allocation2 + $0x50] sm:$0xff] %vm3453, %v4335
        %4368 = vst.msk [vmem:[#allocation2 + $0x58] sm:$0xff] %vm3453, %v4336
        %4369 = vst.msk [vmem:[#allocation2 + $0x60] sm:$0xff] %vm3453, %v4337
        %4370 = vst.msk [vmem:[#allocation2 + $0x68] sm:$0xff] %vm3453, %v4338
        %4371 = vst.msk [vmem:[#allocation2 + $0x70] sm:$0xff] %vm3453, %v4339
        %4372 = vst.msk [vmem:[#allocation2 + $0x78] sm:$0xff] %vm3453, %v4340
        %4373 = vst.msk [vmem:[#allocation2 + $0x80] sm:$0xff] %vm3453, %v4341
        %4374 = vst.msk [vmem:[#allocation2 + $0x88] sm:$0xff] %vm3453, %v4342
        %4375 = vst.msk [vmem:[#allocation2 + $0x90] sm:$0xff] %vm3453, %v4343
        %4376 = vst.msk [vmem:[#allocation2 + $0x98] sm:$0xff] %vm3453, %v4344
        %4377 = vst.msk [vmem:[#allocation2 + $0xa0] sm:$0xff] %vm3453, %v4345
        %4378 = vst.msk [vmem:[#allocation2 + $0xa8] sm:$0xff] %vm3453, %v4346
        %4379 = vst.msk [vmem:[#allocation2 + $0xb0] sm:$0xff] %vm3453, %v4347
        %4380 = vst.msk [vmem:[#allocation2 + $0xb8] sm:$0xff] %vm3453, %v4348
        %4381 = vst.msk [vmem:[#allocation2 + $0xc0] sm:$0xff] %vm3453, %v4349
        %4382 = vst.msk [vmem:[#allocation2 + $0xc8] sm:$0xff] %vm3453, %v4350
        %4383 = vst.msk [vmem:[#allocation2 + $0xd0] sm:$0xff] %vm3453, %v4351
        %4384 = vst.msk [vmem:[#allocation2 + $0xd8] sm:$0xff] %vm3453, %v4352
        %4385 = vst.msk [vmem:[#allocation2 + $0xe0] sm:$0xff] %vm3453, %v4353
        %4386 = vst.msk [vmem:[#allocation2 + $0xe8] sm:$0xff] %vm3453, %v4354
        %4387 = vst.msk [vmem:[#allocation2 + $0xf0] sm:$0xff] %vm3453, %v4355
        %4388 = vst.msk [vmem:[#allocation2 + $0xf8] sm:$0xff] %vm3453, %v4356
        %s4389 = scalar_lea.vmem %s3, 128
        %v4390 = vld [vmem:[%s4389] sm:$0xf]
        %v4391 = vld [vmem:[%s4389 + $0x4] sm:$0xf]
        %v4392 = vld [vmem:[%s4389 + $0x8] sm:$0xf]
        %v4393 = vld [vmem:[%s4389 + $0xc] sm:$0xf]
        %v4394 = vld [vmem:[%s4389 + $0x10] sm:$0xf]
        %v4395 = vld [vmem:[%s4389 + $0x14] sm:$0xf]
        %v4396 = vld [vmem:[%s4389 + $0x18] sm:$0xf]
        %v4397 = vld [vmem:[%s4389 + $0x1c] sm:$0xf]
        %v4398 = vld [vmem:[%s4389 + $0x20] sm:$0xf]
        %v4399 = vld [vmem:[%s4389 + $0x24] sm:$0xf]
        %v4400 = vld [vmem:[%s4389 + $0x28] sm:$0xf]
        %v4401 = vld [vmem:[%s4389 + $0x2c] sm:$0xf]
        %v4402 = vld [vmem:[%s4389 + $0x30] sm:$0xf]
        %v4403 = vld [vmem:[%s4389 + $0x34] sm:$0xf]
        %v4404 = vld [vmem:[%s4389 + $0x38] sm:$0xf]
        %v4405 = vld [vmem:[%s4389 + $0x3c] sm:$0xf]
        %v4406 = vld [vmem:[%s4 + $0x2] sm:$0x1]
        %v4407 = vlaneseq
        %v4408 = vshrl.u32 %v4407, 7
        %v4409 = vsub.s32 0, %v4408
        %v4410 = vrot.slane %v4406, %v4409
        %v4427 = vunpack.c.l.b16 %v4390
        %v4428 = vunpack.c.l.b16 %v4391
        %v4429 = vunpack.c.l.b16 %v4392
        %v4430 = vunpack.c.l.b16 %v4393
        %v4431 = vunpack.c.l.b16 %v4394
        %v4432 = vunpack.c.l.b16 %v4395
        %v4433 = vunpack.c.l.b16 %v4396
        %v4434 = vunpack.c.l.b16 %v4397
        %v4435 = vunpack.c.l.b16 %v4398
        %v4436 = vunpack.c.l.b16 %v4399
        %v4437 = vunpack.c.l.b16 %v4400
        %v4438 = vunpack.c.l.b16 %v4401
        %v4439 = vunpack.c.l.b16 %v4402
        %v4440 = vunpack.c.l.b16 %v4403
        %v4441 = vunpack.c.l.b16 %v4404
        %v4442 = vunpack.c.l.b16 %v4405
        %v4443 = vpack.c.b16 %v4428, %v4427
        %v4444 = vpack.c.b16 %v4430, %v4429
        %v4445 = vpack.c.b16 %v4432, %v4431
        %v4446 = vpack.c.b16 %v4434, %v4433
        %v4447 = vpack.c.b16 %v4436, %v4435
        %v4448 = vpack.c.b16 %v4438, %v4437
        %v4449 = vpack.c.b16 %v4440, %v4439
        %v4450 = vpack.c.b16 %v4442, %v4441
        %4459 = vmatprep.subr.bf16.mxu0 0
        %4460 = vmatpush1.bf16.msra.mxu0 %v4443
        %4461 = vmatprep.subr.bf16.mxu0 0
        %4462 = vmatpush1.bf16.msra.mxu0 %v4444
        %4463 = vmatprep.subr.bf16.mxu0 0
        %4464 = vmatpush1.bf16.msra.mxu0 %v4445
        %4465 = vmatprep.subr.bf16.mxu0 0
        %4466 = vmatpush1.bf16.msra.mxu0 %v4446
        %4467 = vmatprep.subr.bf16.mxu0 0
        %4468 = vmatpush1.bf16.msra.mxu0 %v4447
        %4469 = vmatprep.subr.bf16.mxu0 0
        %4470 = vmatpush1.bf16.msra.mxu0 %v4448
        %4471 = vmatprep.subr.bf16.mxu0 0
        %4472 = vmatpush1.bf16.msra.mxu0 %v4449
        %4473 = vmatprep.subr.bf16.mxu0 0
        %4474 = vmatpush1.bf16.msra.mxu0 %v4450
        %4475 = vmatprep.subr.bf16.mxu0 0
        %4476 = vmatpush1.bf16.msra.mxu0 0
        %4477 = vmatprep.subr.bf16.mxu0 0
        %4478 = vmatpush1.bf16.msra.mxu0 0
        %4479 = vmatprep.subr.bf16.mxu0 0
        %4480 = vmatpush1.bf16.msra.mxu0 0
        %4481 = vmatprep.subr.bf16.mxu0 0
        %4482 = vmatpush1.bf16.msra.mxu0 0
        %4483 = vmatprep.subr.bf16.mxu0 0
        %4484 = vmatpush1.bf16.msra.mxu0 0
        %4485 = vmatprep.subr.bf16.mxu0 0
        %4486 = vmatpush1.bf16.msra.mxu0 0
        %4487 = vmatprep.subr.bf16.mxu0 0
        %4488 = vmatpush1.bf16.msra.mxu0 0
        %4489 = vmatprep.subr.bf16.mxu0 0
        %4490 = vmatpush1.bf16.msra.mxu0 0
        %4491 = vmatprep.mubr.bf16.mxu0 0
        %4492 = vmatmul.mubr.bf16.gmra.mrb[0].mxu0 %v1342
        %v4493 = vpop.f32.mrb[0].mxu0
        %v4494 = vadd.f32 %v4410, %v4493
        %v4495 = vpop.f32.mrb[0].mxu0
        %v4496 = vpop.f32.mrb[0].mxu0
        %v4497 = vadd.f32 %v4410, %v4496
        %v4498 = vpop.f32.mrb[0].mxu0
        %4499 = vmatprep.mubr.bf16.mxu0 0
        %4500 = vmatmul.mubr.bf16.gmra.mrb[0].mxu0 %v1346
        %v4501 = vpop.f32.mrb[0].mxu0
        %v4502 = vadd.f32 %v4410, %v4501
        %v4503 = vpop.f32.mrb[0].mxu0
        %v4504 = vpop.f32.mrb[0].mxu0
        %v4505 = vadd.f32 %v4410, %v4504
        %v4506 = vpop.f32.mrb[0].mxu0
        %4507 = vmatprep.mubr.bf16.mxu0 0
        %4508 = vmatmul.mubr.bf16.gmra.mrb[0].mxu0 %v1350
        %v4509 = vpop.f32.mrb[0].mxu0
        %v4510 = vadd.f32 %v4410, %v4509
        %v4511 = vpop.f32.mrb[0].mxu0
        %v4512 = vpop.f32.mrb[0].mxu0
        %v4513 = vadd.f32 %v4410, %v4512
        %v4514 = vpop.f32.mrb[0].mxu0
        %4515 = vmatprep.mubr.bf16.mxu0 0
        %4516 = vmatmul.mubr.bf16.gmra.mrb[0].mxu0 %v1354
        %v4517 = vpop.f32.mrb[0].mxu0
        %v4518 = vadd.f32 %v4410, %v4517
        %v4519 = vpop.f32.mrb[0].mxu0
        %v4520 = vpop.f32.mrb[0].mxu0
        %v4521 = vadd.f32 %v4410, %v4520
        %v4522 = vpop.f32.mrb[0].mxu0
        %4523 = vmatprep.mubr.bf16.mxu0 0
        %4524 = vmatmul.mubr.bf16.gmra.mrb[0].mxu0 %v1358
        %v4525 = vpop.f32.mrb[0].mxu0
        %v4526 = vadd.f32 %v4410, %v4525
        %v4527 = vpop.f32.mrb[0].mxu0
        %v4528 = vpop.f32.mrb[0].mxu0
        %v4529 = vadd.f32 %v4410, %v4528
        %v4530 = vpop.f32.mrb[0].mxu0
        %4531 = vmatprep.mubr.bf16.mxu0 0
        %4532 = vmatmul.mubr.bf16.gmra.mrb[0].mxu0 %v1362
        %v4533 = vpop.f32.mrb[0].mxu0
        %v4534 = vadd.f32 %v4410, %v4533
        %v4535 = vpop.f32.mrb[0].mxu0
        %v4536 = vpop.f32.mrb[0].mxu0
        %v4537 = vadd.f32 %v4410, %v4536
        %v4538 = vpop.f32.mrb[0].mxu0
        %4539 = vmatprep.mubr.bf16.mxu0 0
        %4540 = vmatmul.mubr.bf16.gmra.mrb[0].mxu0 %v1366
        %v4541 = vpop.f32.mrb[0].mxu0
        %v4542 = vadd.f32 %v4410, %v4541
        %v4543 = vpop.f32.mrb[0].mxu0
        %v4544 = vpop.f32.mrb[0].mxu0
        %v4545 = vadd.f32 %v4410, %v4544
        %v4546 = vpop.f32.mrb[0].mxu0
        %4547 = vmatprep.mubr.bf16.mxu0 0
        %4548 = vmatmul.mubr.bf16.gmra.mrb[0].mxu0 %v1370
        %v4549 = vpop.f32.mrb[0].mxu0
        %v4550 = vadd.f32 %v4410, %v4549
        %v4551 = vpop.f32.mrb[0].mxu0
        %v4552 = vpop.f32.mrb[0].mxu0
        %v4553 = vadd.f32 %v4410, %v4552
        %v4554 = vpop.f32.mrb[0].mxu0
        %4555 = vmatprep.mubr.bf16.mxu0 0
        %4556 = vmatmul.mubr.bf16.gmra.mrb[0].mxu0 %v1374
        %v4557 = vpop.f32.mrb[0].mxu0
        %v4558 = vadd.f32 %v4410, %v4557
        %v4559 = vpop.f32.mrb[0].mxu0
        %v4560 = vpop.f32.mrb[0].mxu0
        %v4561 = vadd.f32 %v4410, %v4560
        %v4562 = vpop.f32.mrb[0].mxu0
        %4563 = vmatprep.mubr.bf16.mxu0 0
        %4564 = vmatmul.mubr.bf16.gmra.mrb[0].mxu0 %v1378
        %v4565 = vpop.f32.mrb[0].mxu0
        %v4566 = vadd.f32 %v4410, %v4565
        %v4567 = vpop.f32.mrb[0].mxu0
        %v4568 = vpop.f32.mrb[0].mxu0
        %v4569 = vadd.f32 %v4410, %v4568
        %v4570 = vpop.f32.mrb[0].mxu0
        %4571 = vmatprep.mubr.bf16.mxu0 0
        %4572 = vmatmul.mubr.bf16.gmra.mrb[0].mxu0 %v1382
        %v4573 = vpop.f32.mrb[0].mxu0
        %v4574 = vadd.f32 %v4410, %v4573
        %v4575 = vpop.f32.mrb[0].mxu0
        %v4576 = vpop.f32.mrb[0].mxu0
        %v4577 = vadd.f32 %v4410, %v4576
        %v4578 = vpop.f32.mrb[0].mxu0
        %4579 = vmatprep.mubr.bf16.mxu0 0
        %4580 = vmatmul.mubr.bf16.gmra.mrb[0].mxu0 %v1386
        %v4581 = vpop.f32.mrb[0].mxu0
        %v4582 = vadd.f32 %v4410, %v4581
        %v4583 = vpop.f32.mrb[0].mxu0
        %v4584 = vpop.f32.mrb[0].mxu0
        %v4585 = vadd.f32 %v4410, %v4584
        %v4586 = vpop.f32.mrb[0].mxu0
        %4587 = vmatprep.mubr.bf16.mxu0 0
        %4588 = vmatmul.mubr.bf16.gmra.mrb[0].mxu0 %v1390
        %v4589 = vpop.f32.mrb[0].mxu0
        %v4590 = vadd.f32 %v4410, %v4589
        %v4591 = vpop.f32.mrb[0].mxu0
        %v4592 = vpop.f32.mrb[0].mxu0
        %v4593 = vadd.f32 %v4410, %v4592
        %v4594 = vpop.f32.mrb[0].mxu0
        %4595 = vmatprep.mubr.bf16.mxu0 0
        %4596 = vmatmul.mubr.bf16.gmra.mrb[0].mxu0 %v1394
        %v4597 = vpop.f32.mrb[0].mxu0
        %v4598 = vadd.f32 %v4410, %v4597
        %v4599 = vpop.f32.mrb[0].mxu0
        %v4600 = vpop.f32.mrb[0].mxu0
        %v4601 = vadd.f32 %v4410, %v4600
        %v4602 = vpop.f32.mrb[0].mxu0
        %4603 = vmatprep.mubr.bf16.mxu0 0
        %4604 = vmatmul.mubr.bf16.gmra.mrb[0].mxu0 %v1398
        %v4605 = vpop.f32.mrb[0].mxu0
        %v4606 = vadd.f32 %v4410, %v4605
        %v4607 = vpop.f32.mrb[0].mxu0
        %v4608 = vpop.f32.mrb[0].mxu0
        %v4609 = vadd.f32 %v4410, %v4608
        %v4610 = vpop.f32.mrb[0].mxu0
        %4611 = vmatprep.mubr.bf16.mxu0 0
        %4612 = vmatmul.mubr.bf16.gmra.mrb[0].mxu0 %v1402
        %v4613 = vpop.f32.mrb[0].mxu0
        %v4614 = vadd.f32 %v4410, %v4613
        %v4615 = vpop.f32.mrb[0].mxu0
        %v4616 = vpop.f32.mrb[0].mxu0
        %v4617 = vadd.f32 %v4410, %v4616
        %v4618 = vpop.f32.mrb[0].mxu0
        %4619 = vdwg.mxu0
        %v4620 = vmax.f32 %v4494, 0.0
        %v4621 = vmax.f32 %v4497, 0.0
        %v4622 = vmax.f32 %v4502, 0.0
        %v4623 = vmax.f32 %v4505, 0.0
        %v4624 = vmax.f32 %v4510, 0.0
        %v4625 = vmax.f32 %v4513, 0.0
        %v4626 = vmax.f32 %v4518, 0.0
        %v4627 = vmax.f32 %v4521, 0.0
        %v4628 = vmax.f32 %v4526, 0.0
        %v4629 = vmax.f32 %v4529, 0.0
        %v4630 = vmax.f32 %v4534, 0.0
        %v4631 = vmax.f32 %v4537, 0.0
        %v4632 = vmax.f32 %v4542, 0.0
        %v4633 = vmax.f32 %v4545, 0.0
        %v4634 = vmax.f32 %v4550, 0.0
        %v4635 = vmax.f32 %v4553, 0.0
        %v4636 = vmax.f32 %v4558, 0.0
        %v4637 = vmax.f32 %v4561, 0.0
        %v4638 = vmax.f32 %v4566, 0.0
        %v4639 = vmax.f32 %v4569, 0.0
        %v4640 = vmax.f32 %v4574, 0.0
        %v4641 = vmax.f32 %v4577, 0.0
        %v4642 = vmax.f32 %v4582, 0.0
        %v4643 = vmax.f32 %v4585, 0.0
        %v4644 = vmax.f32 %v4590, 0.0
        %v4645 = vmax.f32 %v4593, 0.0
        %v4646 = vmax.f32 %v4598, 0.0
        %v4647 = vmax.f32 %v4601, 0.0
        %v4648 = vmax.f32 %v4606, 0.0
        %v4649 = vmax.f32 %v4609, 0.0
        %v4650 = vmax.f32 %v4614, 0.0
        %v4651 = vmax.f32 %v4617, 0.0
        %v4652 = vld [vmem:[#allocation2] sm:$0xff]
        %v4653 = vld [vmem:[#allocation2 + $0x8] sm:$0xff]
        %v4654 = vld [vmem:[#allocation2 + $0x10] sm:$0xff]
        %v4655 = vld [vmem:[#allocation2 + $0x18] sm:$0xff]
        %v4656 = vld [vmem:[#allocation2 + $0x20] sm:$0xff]
        %v4657 = vld [vmem:[#allocation2 + $0x28] sm:$0xff]
        %v4658 = vld [vmem:[#allocation2 + $0x30] sm:$0xff]
        %v4659 = vld [vmem:[#allocation2 + $0x38] sm:$0xff]
        %v4660 = vld [vmem:[#allocation2 + $0x40] sm:$0xff]
        %v4661 = vld [vmem:[#allocation2 + $0x48] sm:$0xff]
        %v4662 = vld [vmem:[#allocation2 + $0x50] sm:$0xff]
        %v4663 = vld [vmem:[#allocation2 + $0x58] sm:$0xff]
        %v4664 = vld [vmem:[#allocation2 + $0x60] sm:$0xff]
        %v4665 = vld [vmem:[#allocation2 + $0x68] sm:$0xff]
        %v4666 = vld [vmem:[#allocation2 + $0x70] sm:$0xff]
        %v4667 = vld [vmem:[#allocation2 + $0x78] sm:$0xff]
        %v4668 = vld [vmem:[#allocation2 + $0x80] sm:$0xff]
        %v4669 = vld [vmem:[#allocation2 + $0x88] sm:$0xff]
        %v4670 = vld [vmem:[#allocation2 + $0x90] sm:$0xff]
        %v4671 = vld [vmem:[#allocation2 + $0x98] sm:$0xff]
        %v4672 = vld [vmem:[#allocation2 + $0xa0] sm:$0xff]
        %v4673 = vld [vmem:[#allocation2 + $0xa8] sm:$0xff]
        %v4674 = vld [vmem:[#allocation2 + $0xb0] sm:$0xff]
        %v4675 = vld [vmem:[#allocation2 + $0xb8] sm:$0xff]
        %v4676 = vld [vmem:[#allocation2 + $0xc0] sm:$0xff]
        %v4677 = vld [vmem:[#allocation2 + $0xc8] sm:$0xff]
        %v4678 = vld [vmem:[#allocation2 + $0xd0] sm:$0xff]
        %v4679 = vld [vmem:[#allocation2 + $0xd8] sm:$0xff]
        %v4680 = vld [vmem:[#allocation2 + $0xe0] sm:$0xff]
        %v4681 = vld [vmem:[#allocation2 + $0xe8] sm:$0xff]
        %v4682 = vld [vmem:[#allocation2 + $0xf0] sm:$0xff]
        %v4683 = vld [vmem:[#allocation2 + $0xf8] sm:$0xff]
        %4684 = vset.pattern.permute.xlu0 2
        %4685 = vperm.xlu0 %4684, %v1973
        %v4686 = vpop.permute.xlu0 %4685
        %4688 = vset.pattern.permute.xlu0 2
        %4689 = vperm.xlu0 %4688, %v1974
        %v4690 = vpop.permute.xlu0 %4689
        %4692 = vset.pattern.permute.xlu0 2
        %4693 = vperm.xlu0 %4692, %v1975
        %v4694 = vpop.permute.xlu0 %4693
        %4696 = vset.pattern.permute.xlu0 2
        %4697 = vperm.xlu0 %4696, %v1976
        %v4698 = vpop.permute.xlu0 %4697
        %4700 = vset.pattern.permute.xlu0 2
        %4701 = vperm.xlu0 %4700, %v1977
        %v4702 = vpop.permute.xlu0 %4701
        %4704 = vset.pattern.permute.xlu0 2
        %4705 = vperm.xlu0 %4704, %v1978
        %v4706 = vpop.permute.xlu0 %4705
        %4708 = vset.pattern.permute.xlu0 2
        %4709 = vperm.xlu0 %4708, %v1979
        %v4710 = vpop.permute.xlu0 %4709
        %4712 = vset.pattern.permute.xlu0 2
        %4713 = vperm.xlu0 %4712, %v1980
        %v4714 = vpop.permute.xlu0 %4713
        %4716 = vset.pattern.permute.xlu0 2
        %4717 = vperm.xlu0 %4716, %v1981
        %v4718 = vpop.permute.xlu0 %4717
        %4720 = vset.pattern.permute.xlu0 2
        %4721 = vperm.xlu0 %4720, %v1982
        %v4722 = vpop.permute.xlu0 %4721
        %4724 = vset.pattern.permute.xlu0 2
        %4725 = vperm.xlu0 %4724, %v1983
        %v4726 = vpop.permute.xlu0 %4725
        %4728 = vset.pattern.permute.xlu0 2
        %4729 = vperm.xlu0 %4728, %v1984
        %v4730 = vpop.permute.xlu0 %4729
        %4732 = vset.pattern.permute.xlu0 2
        %4733 = vperm.xlu0 %4732, %v1985
        %v4734 = vpop.permute.xlu0 %4733
        %4736 = vset.pattern.permute.xlu0 2
        %4737 = vperm.xlu0 %4736, %v1986
        %v4738 = vpop.permute.xlu0 %4737
        %4740 = vset.pattern.permute.xlu0 2
        %4741 = vperm.xlu0 %4740, %v1987
        %v4742 = vpop.permute.xlu0 %4741
        %4744 = vset.pattern.permute.xlu0 2
        %4745 = vperm.xlu0 %4744, %v1988
        %v4746 = vpop.permute.xlu0 %4745
        %4748 = vset.pattern.permute.xlu0 2
        %4749 = vperm.xlu0 %4748, %v1989
        %v4750 = vpop.permute.xlu0 %4749
        %4752 = vset.pattern.permute.xlu0 2
        %4753 = vperm.xlu0 %4752, %v1990
        %v4754 = vpop.permute.xlu0 %4753
        %4756 = vset.pattern.permute.xlu0 2
        %4757 = vperm.xlu0 %4756, %v1991
        %v4758 = vpop.permute.xlu0 %4757
        %4760 = vset.pattern.permute.xlu0 2
        %4761 = vperm.xlu0 %4760, %v1992
        %v4762 = vpop.permute.xlu0 %4761
        %4764 = vset.pattern.permute.xlu0 2
        %4765 = vperm.xlu0 %4764, %v1993
        %v4766 = vpop.permute.xlu0 %4765
        %4768 = vset.pattern.permute.xlu0 2
        %4769 = vperm.xlu0 %4768, %v1994
        %v4770 = vpop.permute.xlu0 %4769
        %4772 = vset.pattern.permute.xlu0 2
        %4773 = vperm.xlu0 %4772, %v1995
        %v4774 = vpop.permute.xlu0 %4773
        %4776 = vset.pattern.permute.xlu0 2
        %4777 = vperm.xlu0 %4776, %v1996
        %v4778 = vpop.permute.xlu0 %4777
        %4780 = vset.pattern.permute.xlu0 2
        %4781 = vperm.xlu0 %4780, %v1997
        %v4782 = vpop.permute.xlu0 %4781
        %4784 = vset.pattern.permute.xlu0 2
        %4785 = vperm.xlu0 %4784, %v1998
        %v4786 = vpop.permute.xlu0 %4785
        %4788 = vset.pattern.permute.xlu0 2
        %4789 = vperm.xlu0 %4788, %v1999
        %v4790 = vpop.permute.xlu0 %4789
        %4792 = vset.pattern.permute.xlu0 2
        %4793 = vperm.xlu0 %4792, %v2000
        %v4794 = vpop.permute.xlu0 %4793
        %4796 = vset.pattern.permute.xlu0 2
        %4797 = vperm.xlu0 %4796, %v2001
        %v4798 = vpop.permute.xlu0 %4797
        %4800 = vset.pattern.permute.xlu0 2
        %4801 = vperm.xlu0 %4800, %v2002
        %v4802 = vpop.permute.xlu0 %4801
        %4804 = vset.pattern.permute.xlu0 2
        %4805 = vperm.xlu0 %4804, %v2003
        %v4806 = vpop.permute.xlu0 %4805
        %4808 = vset.pattern.permute.xlu0 2
        %4809 = vperm.xlu0 %4808, %v2004
        %v4810 = vpop.permute.xlu0 %4809
        %v4812 = vmul.f32 %v4686, %v4620
        %v4813 = vmul.f32 %v4690, %v4621
        %v4814 = vmul.f32 %v4694, %v4622
        %v4815 = vmul.f32 %v4698, %v4623
        %v4816 = vmul.f32 %v4702, %v4624
        %v4817 = vmul.f32 %v4706, %v4625
        %v4818 = vmul.f32 %v4710, %v4626
        %v4819 = vmul.f32 %v4714, %v4627
        %v4820 = vmul.f32 %v4718, %v4628
        %v4821 = vmul.f32 %v4722, %v4629
        %v4822 = vmul.f32 %v4726, %v4630
        %v4823 = vmul.f32 %v4730, %v4631
        %v4824 = vmul.f32 %v4734, %v4632
        %v4825 = vmul.f32 %v4738, %v4633
        %v4826 = vmul.f32 %v4742, %v4634
        %v4827 = vmul.f32 %v4746, %v4635
        %v4828 = vmul.f32 %v4750, %v4636
        %v4829 = vmul.f32 %v4754, %v4637
        %v4830 = vmul.f32 %v4758, %v4638
        %v4831 = vmul.f32 %v4762, %v4639
        %v4832 = vmul.f32 %v4766, %v4640
        %v4833 = vmul.f32 %v4770, %v4641
        %v4834 = vmul.f32 %v4774, %v4642
        %v4835 = vmul.f32 %v4778, %v4643
        %v4836 = vmul.f32 %v4782, %v4644
        %v4837 = vmul.f32 %v4786, %v4645
        %v4838 = vmul.f32 %v4790, %v4646
        %v4839 = vmul.f32 %v4794, %v4647
        %v4840 = vmul.f32 %v4798, %v4648
        %v4841 = vmul.f32 %v4802, %v4649
        %v4842 = vmul.f32 %v4806, %v4650
        %v4843 = vmul.f32 %v4810, %v4651
        %v4844 = vadd.f32 %v4652, %v4812
        %v4845 = vadd.f32 %v4653, %v4813
        %v4846 = vadd.f32 %v4654, %v4814
        %v4847 = vadd.f32 %v4655, %v4815
        %v4848 = vadd.f32 %v4656, %v4816
        %v4849 = vadd.f32 %v4657, %v4817
        %v4850 = vadd.f32 %v4658, %v4818
        %v4851 = vadd.f32 %v4659, %v4819
        %v4852 = vadd.f32 %v4660, %v4820
        %v4853 = vadd.f32 %v4661, %v4821
        %v4854 = vadd.f32 %v4662, %v4822
        %v4855 = vadd.f32 %v4663, %v4823
        %v4856 = vadd.f32 %v4664, %v4824
        %v4857 = vadd.f32 %v4665, %v4825
        %v4858 = vadd.f32 %v4666, %v4826
        %v4859 = vadd.f32 %v4667, %v4827
        %v4860 = vadd.f32 %v4668, %v4828
        %v4861 = vadd.f32 %v4669, %v4829
        %v4862 = vadd.f32 %v4670, %v4830
        %v4863 = vadd.f32 %v4671, %v4831
        %v4864 = vadd.f32 %v4672, %v4832
        %v4865 = vadd.f32 %v4673, %v4833
        %v4866 = vadd.f32 %v4674, %v4834
        %v4867 = vadd.f32 %v4675, %v4835
        %v4868 = vadd.f32 %v4676, %v4836
        %v4869 = vadd.f32 %v4677, %v4837
        %v4870 = vadd.f32 %v4678, %v4838
        %v4871 = vadd.f32 %v4679, %v4839
        %v4872 = vadd.f32 %v4680, %v4840
        %v4873 = vadd.f32 %v4681, %v4841
        %v4874 = vadd.f32 %v4682, %v4842
        %v4875 = vadd.f32 %v4683, %v4843
        %4876 = vst.msk [vmem:[#allocation2] sm:$0xff] %vm3036, %v4844
        %4877 = vst.msk [vmem:[#allocation2 + $0x8] sm:$0xff] %vm3036, %v4845
        %4878 = vst.msk [vmem:[#allocation2 + $0x10] sm:$0xff] %vm3036, %v4846
        %4879 = vst.msk [vmem:[#allocation2 + $0x18] sm:$0xff] %vm3036, %v4847
        %4880 = vst.msk [vmem:[#allocation2 + $0x20] sm:$0xff] %vm3036, %v4848
        %4881 = vst.msk [vmem:[#allocation2 + $0x28] sm:$0xff] %vm3036, %v4849
        %4882 = vst.msk [vmem:[#allocation2 + $0x30] sm:$0xff] %vm3036, %v4850
        %4883 = vst.msk [vmem:[#allocation2 + $0x38] sm:$0xff] %vm3036, %v4851
        %4884 = vst.msk [vmem:[#allocation2 + $0x40] sm:$0xff] %vm3036, %v4852
        %4885 = vst.msk [vmem:[#allocation2 + $0x48] sm:$0xff] %vm3036, %v4853
        %4886 = vst.msk [vmem:[#allocation2 + $0x50] sm:$0xff] %vm3036, %v4854
        %4887 = vst.msk [vmem:[#allocation2 + $0x58] sm:$0xff] %vm3036, %v4855
        %4888 = vst.msk [vmem:[#allocation2 + $0x60] sm:$0xff] %vm3036, %v4856
        %4889 = vst.msk [vmem:[#allocation2 + $0x68] sm:$0xff] %vm3036, %v4857
        %4890 = vst.msk [vmem:[#allocation2 + $0x70] sm:$0xff] %vm3036, %v4858
        %4891 = vst.msk [vmem:[#allocation2 + $0x78] sm:$0xff] %vm3036, %v4859
        %4892 = vst.msk [vmem:[#allocation2 + $0x80] sm:$0xff] %vm3036, %v4860
        %4893 = vst.msk [vmem:[#allocation2 + $0x88] sm:$0xff] %vm3036, %v4861
        %4894 = vst.msk [vmem:[#allocation2 + $0x90] sm:$0xff] %vm3036, %v4862
        %4895 = vst.msk [vmem:[#allocation2 + $0x98] sm:$0xff] %vm3036, %v4863
        %4896 = vst.msk [vmem:[#allocation2 + $0xa0] sm:$0xff] %vm3036, %v4864
        %4897 = vst.msk [vmem:[#allocation2 + $0xa8] sm:$0xff] %vm3036, %v4865
        %4898 = vst.msk [vmem:[#allocation2 + $0xb0] sm:$0xff] %vm3036, %v4866
        %4899 = vst.msk [vmem:[#allocation2 + $0xb8] sm:$0xff] %vm3036, %v4867
        %4900 = vst.msk [vmem:[#allocation2 + $0xc0] sm:$0xff] %vm3036, %v4868
        %4901 = vst.msk [vmem:[#allocation2 + $0xc8] sm:$0xff] %vm3036, %v4869
        %4902 = vst.msk [vmem:[#allocation2 + $0xd0] sm:$0xff] %vm3036, %v4870
        %4903 = vst.msk [vmem:[#allocation2 + $0xd8] sm:$0xff] %vm3036, %v4871
        %4904 = vst.msk [vmem:[#allocation2 + $0xe0] sm:$0xff] %vm3036, %v4872
        %4905 = vst.msk [vmem:[#allocation2 + $0xe8] sm:$0xff] %vm3036, %v4873
        %4906 = vst.msk [vmem:[#allocation2 + $0xf0] sm:$0xff] %vm3036, %v4874
        %4907 = vst.msk [vmem:[#allocation2 + $0xf8] sm:$0xff] %vm3036, %v4875
        %v4908 = vld [vmem:[#allocation2] sm:$0xff]
        %v4909 = vld [vmem:[#allocation2 + $0x8] sm:$0xff]
        %v4910 = vld [vmem:[#allocation2 + $0x10] sm:$0xff]
        %v4911 = vld [vmem:[#allocation2 + $0x18] sm:$0xff]
        %v4912 = vld [vmem:[#allocation2 + $0x20] sm:$0xff]
        %v4913 = vld [vmem:[#allocation2 + $0x28] sm:$0xff]
        %v4914 = vld [vmem:[#allocation2 + $0x30] sm:$0xff]
        %v4915 = vld [vmem:[#allocation2 + $0x38] sm:$0xff]
        %v4916 = vld [vmem:[#allocation2 + $0x40] sm:$0xff]
        %v4917 = vld [vmem:[#allocation2 + $0x48] sm:$0xff]
        %v4918 = vld [vmem:[#allocation2 + $0x50] sm:$0xff]
        %v4919 = vld [vmem:[#allocation2 + $0x58] sm:$0xff]
        %v4920 = vld [vmem:[#allocation2 + $0x60] sm:$0xff]
        %v4921 = vld [vmem:[#allocation2 + $0x68] sm:$0xff]
        %v4922 = vld [vmem:[#allocation2 + $0x70] sm:$0xff]
        %v4923 = vld [vmem:[#allocation2 + $0x78] sm:$0xff]
        %v4924 = vld [vmem:[#allocation2 + $0x80] sm:$0xff]
        %v4925 = vld [vmem:[#allocation2 + $0x88] sm:$0xff]
        %v4926 = vld [vmem:[#allocation2 + $0x90] sm:$0xff]
        %v4927 = vld [vmem:[#allocation2 + $0x98] sm:$0xff]
        %v4928 = vld [vmem:[#allocation2 + $0xa0] sm:$0xff]
        %v4929 = vld [vmem:[#allocation2 + $0xa8] sm:$0xff]
        %v4930 = vld [vmem:[#allocation2 + $0xb0] sm:$0xff]
        %v4931 = vld [vmem:[#allocation2 + $0xb8] sm:$0xff]
        %v4932 = vld [vmem:[#allocation2 + $0xc0] sm:$0xff]
        %v4933 = vld [vmem:[#allocation2 + $0xc8] sm:$0xff]
        %v4934 = vld [vmem:[#allocation2 + $0xd0] sm:$0xff]
        %v4935 = vld [vmem:[#allocation2 + $0xd8] sm:$0xff]
        %v4936 = vld [vmem:[#allocation2 + $0xe0] sm:$0xff]
        %v4937 = vld [vmem:[#allocation2 + $0xe8] sm:$0xff]
        %v4938 = vld [vmem:[#allocation2 + $0xf0] sm:$0xff]
        %v4939 = vld [vmem:[#allocation2 + $0xf8] sm:$0xff]
        %4940 = vset.pattern.permute.xlu0 6
        %4941 = vperm.xlu0 %4940, %v2454
        %v4942 = vpop.permute.xlu0 %4941
        %4944 = vset.pattern.permute.xlu0 6
        %4945 = vperm.xlu0 %4944, %v2455
        %v4946 = vpop.permute.xlu0 %4945
        %4948 = vset.pattern.permute.xlu0 6
        %4949 = vperm.xlu0 %4948, %v2456
        %v4950 = vpop.permute.xlu0 %4949
        %4952 = vset.pattern.permute.xlu0 6
        %4953 = vperm.xlu0 %4952, %v2457
        %v4954 = vpop.permute.xlu0 %4953
        %4956 = vset.pattern.permute.xlu0 6
        %4957 = vperm.xlu0 %4956, %v2458
        %v4958 = vpop.permute.xlu0 %4957
        %4960 = vset.pattern.permute.xlu0 6
        %4961 = vperm.xlu0 %4960, %v2459
        %v4962 = vpop.permute.xlu0 %4961
        %4964 = vset.pattern.permute.xlu0 6
        %4965 = vperm.xlu0 %4964, %v2460
        %v4966 = vpop.permute.xlu0 %4965
        %4968 = vset.pattern.permute.xlu0 6
        %4969 = vperm.xlu0 %4968, %v2461
        %v4970 = vpop.permute.xlu0 %4969
        %4972 = vset.pattern.permute.xlu0 6
        %4973 = vperm.xlu0 %4972, %v2462
        %v4974 = vpop.permute.xlu0 %4973
        %4976 = vset.pattern.permute.xlu0 6
        %4977 = vperm.xlu0 %4976, %v2463
        %v4978 = vpop.permute.xlu0 %4977
        %4980 = vset.pattern.permute.xlu0 6
        %4981 = vperm.xlu0 %4980, %v2464
        %v4982 = vpop.permute.xlu0 %4981
        %4984 = vset.pattern.permute.xlu0 6
        %4985 = vperm.xlu0 %4984, %v2465
        %v4986 = vpop.permute.xlu0 %4985
        %4988 = vset.pattern.permute.xlu0 6
        %4989 = vperm.xlu0 %4988, %v2466
        %v4990 = vpop.permute.xlu0 %4989
        %4992 = vset.pattern.permute.xlu0 6
        %4993 = vperm.xlu0 %4992, %v2467
        %v4994 = vpop.permute.xlu0 %4993
        %4996 = vset.pattern.permute.xlu0 6
        %4997 = vperm.xlu0 %4996, %v2468
        %v4998 = vpop.permute.xlu0 %4997
        %5000 = vset.pattern.permute.xlu0 6
        %5001 = vperm.xlu0 %5000, %v2469
        %v5002 = vpop.permute.xlu0 %5001
        %5004 = vset.pattern.permute.xlu0 6
        %5005 = vperm.xlu0 %5004, %v2470
        %v5006 = vpop.permute.xlu0 %5005
        %5008 = vset.pattern.permute.xlu0 6
        %5009 = vperm.xlu0 %5008, %v2471
        %v5010 = vpop.permute.xlu0 %5009
        %5012 = vset.pattern.permute.xlu0 6
        %5013 = vperm.xlu0 %5012, %v2472
        %v5014 = vpop.permute.xlu0 %5013
        %5016 = vset.pattern.permute.xlu0 6
        %5017 = vperm.xlu0 %5016, %v2473
        %v5018 = vpop.permute.xlu0 %5017
        %5020 = vset.pattern.permute.xlu0 6
        %5021 = vperm.xlu0 %5020, %v2474
        %v5022 = vpop.permute.xlu0 %5021
        %5024 = vset.pattern.permute.xlu0 6
        %5025 = vperm.xlu0 %5024, %v2475
        %v5026 = vpop.permute.xlu0 %5025
        %5028 = vset.pattern.permute.xlu0 6
        %5029 = vperm.xlu0 %5028, %v2476
        %v5030 = vpop.permute.xlu0 %5029
        %5032 = vset.pattern.permute.xlu0 6
        %5033 = vperm.xlu0 %5032, %v2477
        %v5034 = vpop.permute.xlu0 %5033
        %5036 = vset.pattern.permute.xlu0 6
        %5037 = vperm.xlu0 %5036, %v2478
        %v5038 = vpop.permute.xlu0 %5037
        %5040 = vset.pattern.permute.xlu0 6
        %5041 = vperm.xlu0 %5040, %v2479
        %v5042 = vpop.permute.xlu0 %5041
        %5044 = vset.pattern.permute.xlu0 6
        %5045 = vperm.xlu0 %5044, %v2480
        %v5046 = vpop.permute.xlu0 %5045
        %5048 = vset.pattern.permute.xlu0 6
        %5049 = vperm.xlu0 %5048, %v2481
        %v5050 = vpop.permute.xlu0 %5049
        %5052 = vset.pattern.permute.xlu0 6
        %5053 = vperm.xlu0 %5052, %v2482
        %v5054 = vpop.permute.xlu0 %5053
        %5056 = vset.pattern.permute.xlu0 6
        %5057 = vperm.xlu0 %5056, %v2483
        %v5058 = vpop.permute.xlu0 %5057
        %5060 = vset.pattern.permute.xlu0 6
        %5061 = vperm.xlu0 %5060, %v2484
        %v5062 = vpop.permute.xlu0 %5061
        %5064 = vset.pattern.permute.xlu0 6
        %5065 = vperm.xlu0 %5064, %v2485
        %v5066 = vpop.permute.xlu0 %5065
        %v5068 = vmul.f32 %v4942, %v4620
        %v5069 = vmul.f32 %v4946, %v4621
        %v5070 = vmul.f32 %v4950, %v4622
        %v5071 = vmul.f32 %v4954, %v4623
        %v5072 = vmul.f32 %v4958, %v4624
        %v5073 = vmul.f32 %v4962, %v4625
        %v5074 = vmul.f32 %v4966, %v4626
        %v5075 = vmul.f32 %v4970, %v4627
        %v5076 = vmul.f32 %v4974, %v4628
        %v5077 = vmul.f32 %v4978, %v4629
        %v5078 = vmul.f32 %v4982, %v4630
        %v5079 = vmul.f32 %v4986, %v4631
        %v5080 = vmul.f32 %v4990, %v4632
        %v5081 = vmul.f32 %v4994, %v4633
        %v5082 = vmul.f32 %v4998, %v4634
        %v5083 = vmul.f32 %v5002, %v4635
        %v5084 = vmul.f32 %v5006, %v4636
        %v5085 = vmul.f32 %v5010, %v4637
        %v5086 = vmul.f32 %v5014, %v4638
        %v5087 = vmul.f32 %v5018, %v4639
        %v5088 = vmul.f32 %v5022, %v4640
        %v5089 = vmul.f32 %v5026, %v4641
        %v5090 = vmul.f32 %v5030, %v4642
        %v5091 = vmul.f32 %v5034, %v4643
        %v5092 = vmul.f32 %v5038, %v4644
        %v5093 = vmul.f32 %v5042, %v4645
        %v5094 = vmul.f32 %v5046, %v4646
        %v5095 = vmul.f32 %v5050, %v4647
        %v5096 = vmul.f32 %v5054, %v4648
        %v5097 = vmul.f32 %v5058, %v4649
        %v5098 = vmul.f32 %v5062, %v4650
        %v5099 = vmul.f32 %v5066, %v4651
        %5132 = vrot.lane.b32.xlu0 %v5068, 64
        %v5133 = vpop.permute.xlu0 %5132
        %5134 = vrot.lane.b32.xlu0 %v5069, 64
        %v5135 = vpop.permute.xlu0 %5134
        %5136 = vrot.lane.b32.xlu0 %v5070, 64
        %v5137 = vpop.permute.xlu0 %5136
        %5138 = vrot.lane.b32.xlu0 %v5071, 64
        %v5139 = vpop.permute.xlu0 %5138
        %5140 = vrot.lane.b32.xlu0 %v5072, 64
        %v5141 = vpop.permute.xlu0 %5140
        %5142 = vrot.lane.b32.xlu0 %v5073, 64
        %v5143 = vpop.permute.xlu0 %5142
        %5144 = vrot.lane.b32.xlu0 %v5074, 64
        %v5145 = vpop.permute.xlu0 %5144
        %5146 = vrot.lane.b32.xlu0 %v5075, 64
        %v5147 = vpop.permute.xlu0 %5146
        %5148 = vrot.lane.b32.xlu0 %v5076, 64
        %v5149 = vpop.permute.xlu0 %5148
        %5150 = vrot.lane.b32.xlu0 %v5077, 64
        %v5151 = vpop.permute.xlu0 %5150
        %5152 = vrot.lane.b32.xlu0 %v5078, 64
        %v5153 = vpop.permute.xlu0 %5152
        %5154 = vrot.lane.b32.xlu0 %v5079, 64
        %v5155 = vpop.permute.xlu0 %5154
        %5156 = vrot.lane.b32.xlu0 %v5080, 64
        %v5157 = vpop.permute.xlu0 %5156
        %5158 = vrot.lane.b32.xlu0 %v5081, 64
        %v5159 = vpop.permute.xlu0 %5158
        %5160 = vrot.lane.b32.xlu0 %v5082, 64
        %v5161 = vpop.permute.xlu0 %5160
        %5162 = vrot.lane.b32.xlu0 %v5083, 64
        %v5163 = vpop.permute.xlu0 %5162
        %5164 = vrot.lane.b32.xlu0 %v5084, 64
        %v5165 = vpop.permute.xlu0 %5164
        %5166 = vrot.lane.b32.xlu0 %v5085, 64
        %v5167 = vpop.permute.xlu0 %5166
        %5168 = vrot.lane.b32.xlu0 %v5086, 64
        %v5169 = vpop.permute.xlu0 %5168
        %5170 = vrot.lane.b32.xlu0 %v5087, 64
        %v5171 = vpop.permute.xlu0 %5170
        %5172 = vrot.lane.b32.xlu0 %v5088, 64
        %v5173 = vpop.permute.xlu0 %5172
        %5174 = vrot.lane.b32.xlu0 %v5089, 64
        %v5175 = vpop.permute.xlu0 %5174
        %5176 = vrot.lane.b32.xlu0 %v5090, 64
        %v5177 = vpop.permute.xlu0 %5176
        %5178 = vrot.lane.b32.xlu0 %v5091, 64
        %v5179 = vpop.permute.xlu0 %5178
        %5180 = vrot.lane.b32.xlu0 %v5092, 64
        %v5181 = vpop.permute.xlu0 %5180
        %5182 = vrot.lane.b32.xlu0 %v5093, 64
        %v5183 = vpop.permute.xlu0 %5182
        %5184 = vrot.lane.b32.xlu0 %v5094, 64
        %v5185 = vpop.permute.xlu0 %5184
        %5186 = vrot.lane.b32.xlu0 %v5095, 64
        %v5187 = vpop.permute.xlu0 %5186
        %5188 = vrot.lane.b32.xlu0 %v5096, 64
        %v5189 = vpop.permute.xlu0 %5188
        %5190 = vrot.lane.b32.xlu0 %v5097, 64
        %v5191 = vpop.permute.xlu0 %5190
        %5192 = vrot.lane.b32.xlu0 %v5098, 64
        %v5193 = vpop.permute.xlu0 %5192
        %5194 = vrot.lane.b32.xlu0 %v5099, 64
        %v5195 = vpop.permute.xlu0 %5194
        %v5228 = vadd.f32 %v4908, %v5133
        %v5229 = vadd.f32 %v4909, %v5135
        %v5230 = vadd.f32 %v4910, %v5137
        %v5231 = vadd.f32 %v4911, %v5139
        %v5232 = vadd.f32 %v4912, %v5141
        %v5233 = vadd.f32 %v4913, %v5143
        %v5234 = vadd.f32 %v4914, %v5145
        %v5235 = vadd.f32 %v4915, %v5147
        %v5236 = vadd.f32 %v4916, %v5149
        %v5237 = vadd.f32 %v4917, %v5151
        %v5238 = vadd.f32 %v4918, %v5153
        %v5239 = vadd.f32 %v4919, %v5155
        %v5240 = vadd.f32 %v4920, %v5157
        %v5241 = vadd.f32 %v4921, %v5159
        %v5242 = vadd.f32 %v4922, %v5161
        %v5243 = vadd.f32 %v4923, %v5163
        %v5244 = vadd.f32 %v4924, %v5165
        %v5245 = vadd.f32 %v4925, %v5167
        %v5246 = vadd.f32 %v4926, %v5169
        %v5247 = vadd.f32 %v4927, %v5171
        %v5248 = vadd.f32 %v4928, %v5173
        %v5249 = vadd.f32 %v4929, %v5175
        %v5250 = vadd.f32 %v4930, %v5177
        %v5251 = vadd.f32 %v4931, %v5179
        %v5252 = vadd.f32 %v4932, %v5181
        %v5253 = vadd.f32 %v4933, %v5183
        %v5254 = vadd.f32 %v4934, %v5185
        %v5255 = vadd.f32 %v4935, %v5187
        %v5256 = vadd.f32 %v4936, %v5189
        %v5257 = vadd.f32 %v4937, %v5191
        %v5258 = vadd.f32 %v4938, %v5193
        %v5259 = vadd.f32 %v4939, %v5195
        %5260 = vst.msk [vmem:[#allocation2] sm:$0xff] %vm3453, %v5228
        %5261 = vst.msk [vmem:[#allocation2 + $0x8] sm:$0xff] %vm3453, %v5229
        %5262 = vst.msk [vmem:[#allocation2 + $0x10] sm:$0xff] %vm3453, %v5230
        %5263 = vst.msk [vmem:[#allocation2 + $0x18] sm:$0xff] %vm3453, %v5231
        %5264 = vst.msk [vmem:[#allocation2 + $0x20] sm:$0xff] %vm3453, %v5232
        %5265 = vst.msk [vmem:[#allocation2 + $0x28] sm:$0xff] %vm3453, %v5233
        %5266 = vst.msk [vmem:[#allocation2 + $0x30] sm:$0xff] %vm3453, %v5234
        %5267 = vst.msk [vmem:[#allocation2 + $0x38] sm:$0xff] %vm3453, %v5235
        %5268 = vst.msk [vmem:[#allocation2 + $0x40] sm:$0xff] %vm3453, %v5236
        %5269 = vst.msk [vmem:[#allocation2 + $0x48] sm:$0xff] %vm3453, %v5237
        %5270 = vst.msk [vmem:[#allocation2 + $0x50] sm:$0xff] %vm3453, %v5238
        %5271 = vst.msk [vmem:[#allocation2 + $0x58] sm:$0xff] %vm3453, %v5239
        %5272 = vst.msk [vmem:[#allocation2 + $0x60] sm:$0xff] %vm3453, %v5240
        %5273 = vst.msk [vmem:[#allocation2 + $0x68] sm:$0xff] %vm3453, %v5241
        %5274 = vst.msk [vmem:[#allocation2 + $0x70] sm:$0xff] %vm3453, %v5242
        %5275 = vst.msk [vmem:[#allocation2 + $0x78] sm:$0xff] %vm3453, %v5243
        %5276 = vst.msk [vmem:[#allocation2 + $0x80] sm:$0xff] %vm3453, %v5244
        %5277 = vst.msk [vmem:[#allocation2 + $0x88] sm:$0xff] %vm3453, %v5245
        %5278 = vst.msk [vmem:[#allocation2 + $0x90] sm:$0xff] %vm3453, %v5246
        %5279 = vst.msk [vmem:[#allocation2 + $0x98] sm:$0xff] %vm3453, %v5247
        %5280 = vst.msk [vmem:[#allocation2 + $0xa0] sm:$0xff] %vm3453, %v5248
        %5281 = vst.msk [vmem:[#allocation2 + $0xa8] sm:$0xff] %vm3453, %v5249
        %5282 = vst.msk [vmem:[#allocation2 + $0xb0] sm:$0xff] %vm3453, %v5250
        %5283 = vst.msk [vmem:[#allocation2 + $0xb8] sm:$0xff] %vm3453, %v5251
        %5284 = vst.msk [vmem:[#allocation2 + $0xc0] sm:$0xff] %vm3453, %v5252
        %5285 = vst.msk [vmem:[#allocation2 + $0xc8] sm:$0xff] %vm3453, %v5253
        %5286 = vst.msk [vmem:[#allocation2 + $0xd0] sm:$0xff] %vm3453, %v5254
        %5287 = vst.msk [vmem:[#allocation2 + $0xd8] sm:$0xff] %vm3453, %v5255
        %5288 = vst.msk [vmem:[#allocation2 + $0xe0] sm:$0xff] %vm3453, %v5256
        %5289 = vst.msk [vmem:[#allocation2 + $0xe8] sm:$0xff] %vm3453, %v5257
        %5290 = vst.msk [vmem:[#allocation2 + $0xf0] sm:$0xff] %vm3453, %v5258
        %5291 = vst.msk [vmem:[#allocation2 + $0xf8] sm:$0xff] %vm3453, %v5259
        %s5292 = scalar_lea.vmem %s3, 192
        %v5293 = vld [vmem:[%s5292] sm:$0xf]
        %v5294 = vld [vmem:[%s5292 + $0x4] sm:$0xf]
        %v5295 = vld [vmem:[%s5292 + $0x8] sm:$0xf]
        %v5296 = vld [vmem:[%s5292 + $0xc] sm:$0xf]
        %v5297 = vld [vmem:[%s5292 + $0x10] sm:$0xf]
        %v5298 = vld [vmem:[%s5292 + $0x14] sm:$0xf]
        %v5299 = vld [vmem:[%s5292 + $0x18] sm:$0xf]
        %v5300 = vld [vmem:[%s5292 + $0x1c] sm:$0xf]
        %v5301 = vld [vmem:[%s5292 + $0x20] sm:$0xf]
        %v5302 = vld [vmem:[%s5292 + $0x24] sm:$0xf]
        %v5303 = vld [vmem:[%s5292 + $0x28] sm:$0xf]
        %v5304 = vld [vmem:[%s5292 + $0x2c] sm:$0xf]
        %v5305 = vld [vmem:[%s5292 + $0x30] sm:$0xf]
        %v5306 = vld [vmem:[%s5292 + $0x34] sm:$0xf]
        %v5307 = vld [vmem:[%s5292 + $0x38] sm:$0xf]
        %v5308 = vld [vmem:[%s5292 + $0x3c] sm:$0xf]
        %v5309 = vld [vmem:[%s4 + $0x3] sm:$0x1]
        %v5310 = vlaneseq
        %v5311 = vshrl.u32 %v5310, 7
        %v5312 = vsub.s32 0, %v5311
        %v5313 = vrot.slane %v5309, %v5312
        %v5330 = vunpack.c.l.b16 %v5293
        %v5331 = vunpack.c.l.b16 %v5294
        %v5332 = vunpack.c.l.b16 %v5295
        %v5333 = vunpack.c.l.b16 %v5296
        %v5334 = vunpack.c.l.b16 %v5297
        %v5335 = vunpack.c.l.b16 %v5298
        %v5336 = vunpack.c.l.b16 %v5299
        %v5337 = vunpack.c.l.b16 %v5300
        %v5338 = vunpack.c.l.b16 %v5301
        %v5339 = vunpack.c.l.b16 %v5302
        %v5340 = vunpack.c.l.b16 %v5303
        %v5341 = vunpack.c.l.b16 %v5304
        %v5342 = vunpack.c.l.b16 %v5305
        %v5343 = vunpack.c.l.b16 %v5306
        %v5344 = vunpack.c.l.b16 %v5307
        %v5345 = vunpack.c.l.b16 %v5308
        %v5346 = vpack.c.b16 %v5331, %v5330
        %v5347 = vpack.c.b16 %v5333, %v5332
        %v5348 = vpack.c.b16 %v5335, %v5334
        %v5349 = vpack.c.b16 %v5337, %v5336
        %v5350 = vpack.c.b16 %v5339, %v5338
        %v5351 = vpack.c.b16 %v5341, %v5340
        %v5352 = vpack.c.b16 %v5343, %v5342
        %v5353 = vpack.c.b16 %v5345, %v5344
        %5362 = vmatprep.subr.bf16.mxu0 0
        %5363 = vmatpush1.bf16.msra.mxu0 %v5346
        %5364 = vmatprep.subr.bf16.mxu0 0
        %5365 = vmatpush1.bf16.msra.mxu0 %v5347
        %5366 = vmatprep.subr.bf16.mxu0 0
        %5367 = vmatpush1.bf16.msra.mxu0 %v5348
        %5368 = vmatprep.subr.bf16.mxu0 0
        %5369 = vmatpush1.bf16.msra.mxu0 %v5349
        %5370 = vmatprep.subr.bf16.mxu0 0
        %5371 = vmatpush1.bf16.msra.mxu0 %v5350
        %5372 = vmatprep.subr.bf16.mxu0 0
        %5373 = vmatpush1.bf16.msra.mxu0 %v5351
        %5374 = vmatprep.subr.bf16.mxu0 0
        %5375 = vmatpush1.bf16.msra.mxu0 %v5352
        %5376 = vmatprep.subr.bf16.mxu0 0
        %5377 = vmatpush1.bf16.msra.mxu0 %v5353
        %5378 = vmatprep.subr.bf16.mxu0 0
        %5379 = vmatpush1.bf16.msra.mxu0 0
        %5380 = vmatprep.subr.bf16.mxu0 0
        %5381 = vmatpush1.bf16.msra.mxu0 0
        %5382 = vmatprep.subr.bf16.mxu0 0
        %5383 = vmatpush1.bf16.msra.mxu0 0
        %5384 = vmatprep.subr.bf16.mxu0 0
        %5385 = vmatpush1.bf16.msra.mxu0 0
        %5386 = vmatprep.subr.bf16.mxu0 0
        %5387 = vmatpush1.bf16.msra.mxu0 0
        %5388 = vmatprep.subr.bf16.mxu0 0
        %5389 = vmatpush1.bf16.msra.mxu0 0
        %5390 = vmatprep.subr.bf16.mxu0 0
        %5391 = vmatpush1.bf16.msra.mxu0 0
        %5392 = vmatprep.subr.bf16.mxu0 0
        %5393 = vmatpush1.bf16.msra.mxu0 0
        %5394 = vmatprep.mubr.bf16.mxu0 0
        %5395 = vmatmul.mubr.bf16.gmra.mrb[0].mxu0 %v1343
        %v5396 = vpop.f32.mrb[0].mxu0
        %v5397 = vadd.f32 %v5313, %v5396
        %v5398 = vpop.f32.mrb[0].mxu0
        %v5399 = vpop.f32.mrb[0].mxu0
        %v5400 = vadd.f32 %v5313, %v5399
        %v5401 = vpop.f32.mrb[0].mxu0
        %5402 = vmatprep.mubr.bf16.mxu0 0
        %5403 = vmatmul.mubr.bf16.gmra.mrb[0].mxu0 %v1347
        %v5404 = vpop.f32.mrb[0].mxu0
        %v5405 = vadd.f32 %v5313, %v5404
        %v5406 = vpop.f32.mrb[0].mxu0
        %v5407 = vpop.f32.mrb[0].mxu0
        %v5408 = vadd.f32 %v5313, %v5407
        %v5409 = vpop.f32.mrb[0].mxu0
        %5410 = vmatprep.mubr.bf16.mxu0 0
        %5411 = vmatmul.mubr.bf16.gmra.mrb[0].mxu0 %v1351
        %v5412 = vpop.f32.mrb[0].mxu0
        %v5413 = vadd.f32 %v5313, %v5412
        %v5414 = vpop.f32.mrb[0].mxu0
        %v5415 = vpop.f32.mrb[0].mxu0
        %v5416 = vadd.f32 %v5313, %v5415
        %v5417 = vpop.f32.mrb[0].mxu0
        %5418 = vmatprep.mubr.bf16.mxu0 0
        %5419 = vmatmul.mubr.bf16.gmra.mrb[0].mxu0 %v1355
        %v5420 = vpop.f32.mrb[0].mxu0
        %v5421 = vadd.f32 %v5313, %v5420
        %v5422 = vpop.f32.mrb[0].mxu0
        %v5423 = vpop.f32.mrb[0].mxu0
        %v5424 = vadd.f32 %v5313, %v5423
        %v5425 = vpop.f32.mrb[0].mxu0
        %5426 = vmatprep.mubr.bf16.mxu0 0
        %5427 = vmatmul.mubr.bf16.gmra.mrb[0].mxu0 %v1359
        %v5428 = vpop.f32.mrb[0].mxu0
        %v5429 = vadd.f32 %v5313, %v5428
        %v5430 = vpop.f32.mrb[0].mxu0
        %v5431 = vpop.f32.mrb[0].mxu0
        %v5432 = vadd.f32 %v5313, %v5431
        %v5433 = vpop.f32.mrb[0].mxu0
        %5434 = vmatprep.mubr.bf16.mxu0 0
        %5435 = vmatmul.mubr.bf16.gmra.mrb[0].mxu0 %v1363
        %v5436 = vpop.f32.mrb[0].mxu0
        %v5437 = vadd.f32 %v5313, %v5436
        %v5438 = vpop.f32.mrb[0].mxu0
        %v5439 = vpop.f32.mrb[0].mxu0
        %v5440 = vadd.f32 %v5313, %v5439
        %v5441 = vpop.f32.mrb[0].mxu0
        %5442 = vmatprep.mubr.bf16.mxu0 0
        %5443 = vmatmul.mubr.bf16.gmra.mrb[0].mxu0 %v1367
        %v5444 = vpop.f32.mrb[0].mxu0
        %v5445 = vadd.f32 %v5313, %v5444
        %v5446 = vpop.f32.mrb[0].mxu0
        %v5447 = vpop.f32.mrb[0].mxu0
        %v5448 = vadd.f32 %v5313, %v5447
        %v5449 = vpop.f32.mrb[0].mxu0
        %5450 = vmatprep.mubr.bf16.mxu0 0
        %5451 = vmatmul.mubr.bf16.gmra.mrb[0].mxu0 %v1371
        %v5452 = vpop.f32.mrb[0].mxu0
        %v5453 = vadd.f32 %v5313, %v5452
        %v5454 = vpop.f32.mrb[0].mxu0
        %v5455 = vpop.f32.mrb[0].mxu0
        %v5456 = vadd.f32 %v5313, %v5455
        %v5457 = vpop.f32.mrb[0].mxu0
        %5458 = vmatprep.mubr.bf16.mxu0 0
        %5459 = vmatmul.mubr.bf16.gmra.mrb[0].mxu0 %v1375
        %v5460 = vpop.f32.mrb[0].mxu0
        %v5461 = vadd.f32 %v5313, %v5460
        %v5462 = vpop.f32.mrb[0].mxu0
        %v5463 = vpop.f32.mrb[0].mxu0
        %v5464 = vadd.f32 %v5313, %v5463
        %v5465 = vpop.f32.mrb[0].mxu0
        %5466 = vmatprep.mubr.bf16.mxu0 0
        %5467 = vmatmul.mubr.bf16.gmra.mrb[0].mxu0 %v1379
        %v5468 = vpop.f32.mrb[0].mxu0
        %v5469 = vadd.f32 %v5313, %v5468
        %v5470 = vpop.f32.mrb[0].mxu0
        %v5471 = vpop.f32.mrb[0].mxu0
        %v5472 = vadd.f32 %v5313, %v5471
        %v5473 = vpop.f32.mrb[0].mxu0
        %5474 = vmatprep.mubr.bf16.mxu0 0
        %5475 = vmatmul.mubr.bf16.gmra.mrb[0].mxu0 %v1383
        %v5476 = vpop.f32.mrb[0].mxu0
        %v5477 = vadd.f32 %v5313, %v5476
        %v5478 = vpop.f32.mrb[0].mxu0
        %v5479 = vpop.f32.mrb[0].mxu0
        %v5480 = vadd.f32 %v5313, %v5479
        %v5481 = vpop.f32.mrb[0].mxu0
        %5482 = vmatprep.mubr.bf16.mxu0 0
        %5483 = vmatmul.mubr.bf16.gmra.mrb[0].mxu0 %v1387
        %v5484 = vpop.f32.mrb[0].mxu0
        %v5485 = vadd.f32 %v5313, %v5484
        %v5486 = vpop.f32.mrb[0].mxu0
        %v5487 = vpop.f32.mrb[0].mxu0
        %v5488 = vadd.f32 %v5313, %v5487
        %v5489 = vpop.f32.mrb[0].mxu0
        %5490 = vmatprep.mubr.bf16.mxu0 0
        %5491 = vmatmul.mubr.bf16.gmra.mrb[0].mxu0 %v1391
        %v5492 = vpop.f32.mrb[0].mxu0
        %v5493 = vadd.f32 %v5313, %v5492
        %v5494 = vpop.f32.mrb[0].mxu0
        %v5495 = vpop.f32.mrb[0].mxu0
        %v5496 = vadd.f32 %v5313, %v5495
        %v5497 = vpop.f32.mrb[0].mxu0
        %5498 = vmatprep.mubr.bf16.mxu0 0
        %5499 = vmatmul.mubr.bf16.gmra.mrb[0].mxu0 %v1395
        %v5500 = vpop.f32.mrb[0].mxu0
        %v5501 = vadd.f32 %v5313, %v5500
        %v5502 = vpop.f32.mrb[0].mxu0
        %v5503 = vpop.f32.mrb[0].mxu0
        %v5504 = vadd.f32 %v5313, %v5503
        %v5505 = vpop.f32.mrb[0].mxu0
        %5506 = vmatprep.mubr.bf16.mxu0 0
        %5507 = vmatmul.mubr.bf16.gmra.mrb[0].mxu0 %v1399
        %v5508 = vpop.f32.mrb[0].mxu0
        %v5509 = vadd.f32 %v5313, %v5508
        %v5510 = vpop.f32.mrb[0].mxu0
        %v5511 = vpop.f32.mrb[0].mxu0
        %v5512 = vadd.f32 %v5313, %v5511
        %v5513 = vpop.f32.mrb[0].mxu0
        %5514 = vmatprep.mubr.bf16.mxu0 0
        %5515 = vmatmul.mubr.bf16.gmra.mrb[0].mxu0 %v1403
        %v5516 = vpop.f32.mrb[0].mxu0
        %v5517 = vadd.f32 %v5313, %v5516
        %v5518 = vpop.f32.mrb[0].mxu0
        %v5519 = vpop.f32.mrb[0].mxu0
        %v5520 = vadd.f32 %v5313, %v5519
        %v5521 = vpop.f32.mrb[0].mxu0
        %5522 = vdwg.mxu0
        %v5523 = vmax.f32 %v5397, 0.0
        %v5524 = vmax.f32 %v5400, 0.0
        %v5525 = vmax.f32 %v5405, 0.0
        %v5526 = vmax.f32 %v5408, 0.0
        %v5527 = vmax.f32 %v5413, 0.0
        %v5528 = vmax.f32 %v5416, 0.0
        %v5529 = vmax.f32 %v5421, 0.0
        %v5530 = vmax.f32 %v5424, 0.0
        %v5531 = vmax.f32 %v5429, 0.0
        %v5532 = vmax.f32 %v5432, 0.0
        %v5533 = vmax.f32 %v5437, 0.0
        %v5534 = vmax.f32 %v5440, 0.0
        %v5535 = vmax.f32 %v5445, 0.0
        %v5536 = vmax.f32 %v5448, 0.0
        %v5537 = vmax.f32 %v5453, 0.0
        %v5538 = vmax.f32 %v5456, 0.0
        %v5539 = vmax.f32 %v5461, 0.0
        %v5540 = vmax.f32 %v5464, 0.0
        %v5541 = vmax.f32 %v5469, 0.0
        %v5542 = vmax.f32 %v5472, 0.0
        %v5543 = vmax.f32 %v5477, 0.0
        %v5544 = vmax.f32 %v5480, 0.0
        %v5545 = vmax.f32 %v5485, 0.0
        %v5546 = vmax.f32 %v5488, 0.0
        %v5547 = vmax.f32 %v5493, 0.0
        %v5548 = vmax.f32 %v5496, 0.0
        %v5549 = vmax.f32 %v5501, 0.0
        %v5550 = vmax.f32 %v5504, 0.0
        %v5551 = vmax.f32 %v5509, 0.0
        %v5552 = vmax.f32 %v5512, 0.0
        %v5553 = vmax.f32 %v5517, 0.0
        %v5554 = vmax.f32 %v5520, 0.0
        %v5555 = vld [vmem:[#allocation2] sm:$0xff]
        %v5556 = vld [vmem:[#allocation2 + $0x8] sm:$0xff]
        %v5557 = vld [vmem:[#allocation2 + $0x10] sm:$0xff]
        %v5558 = vld [vmem:[#allocation2 + $0x18] sm:$0xff]
        %v5559 = vld [vmem:[#allocation2 + $0x20] sm:$0xff]
        %v5560 = vld [vmem:[#allocation2 + $0x28] sm:$0xff]
        %v5561 = vld [vmem:[#allocation2 + $0x30] sm:$0xff]
        %v5562 = vld [vmem:[#allocation2 + $0x38] sm:$0xff]
        %v5563 = vld [vmem:[#allocation2 + $0x40] sm:$0xff]
        %v5564 = vld [vmem:[#allocation2 + $0x48] sm:$0xff]
        %v5565 = vld [vmem:[#allocation2 + $0x50] sm:$0xff]
        %v5566 = vld [vmem:[#allocation2 + $0x58] sm:$0xff]
        %v5567 = vld [vmem:[#allocation2 + $0x60] sm:$0xff]
        %v5568 = vld [vmem:[#allocation2 + $0x68] sm:$0xff]
        %v5569 = vld [vmem:[#allocation2 + $0x70] sm:$0xff]
        %v5570 = vld [vmem:[#allocation2 + $0x78] sm:$0xff]
        %v5571 = vld [vmem:[#allocation2 + $0x80] sm:$0xff]
        %v5572 = vld [vmem:[#allocation2 + $0x88] sm:$0xff]
        %v5573 = vld [vmem:[#allocation2 + $0x90] sm:$0xff]
        %v5574 = vld [vmem:[#allocation2 + $0x98] sm:$0xff]
        %v5575 = vld [vmem:[#allocation2 + $0xa0] sm:$0xff]
        %v5576 = vld [vmem:[#allocation2 + $0xa8] sm:$0xff]
        %v5577 = vld [vmem:[#allocation2 + $0xb0] sm:$0xff]
        %v5578 = vld [vmem:[#allocation2 + $0xb8] sm:$0xff]
        %v5579 = vld [vmem:[#allocation2 + $0xc0] sm:$0xff]
        %v5580 = vld [vmem:[#allocation2 + $0xc8] sm:$0xff]
        %v5581 = vld [vmem:[#allocation2 + $0xd0] sm:$0xff]
        %v5582 = vld [vmem:[#allocation2 + $0xd8] sm:$0xff]
        %v5583 = vld [vmem:[#allocation2 + $0xe0] sm:$0xff]
        %v5584 = vld [vmem:[#allocation2 + $0xe8] sm:$0xff]
        %v5585 = vld [vmem:[#allocation2 + $0xf0] sm:$0xff]
        %v5586 = vld [vmem:[#allocation2 + $0xf8] sm:$0xff]
        %5587 = vset.pattern.permute.xlu0 3
        %5588 = vperm.xlu0 %5587, %v1973
        %v5589 = vpop.permute.xlu0 %5588
        %5591 = vset.pattern.permute.xlu0 3
        %5592 = vperm.xlu0 %5591, %v1974
        %v5593 = vpop.permute.xlu0 %5592
        %5595 = vset.pattern.permute.xlu0 3
        %5596 = vperm.xlu0 %5595, %v1975
        %v5597 = vpop.permute.xlu0 %5596
        %5599 = vset.pattern.permute.xlu0 3
        %5600 = vperm.xlu0 %5599, %v1976
        %v5601 = vpop.permute.xlu0 %5600
        %5603 = vset.pattern.permute.xlu0 3
        %5604 = vperm.xlu0 %5603, %v1977
        %v5605 = vpop.permute.xlu0 %5604
        %5607 = vset.pattern.permute.xlu0 3
        %5608 = vperm.xlu0 %5607, %v1978
        %v5609 = vpop.permute.xlu0 %5608
        %5611 = vset.pattern.permute.xlu0 3
        %5612 = vperm.xlu0 %5611, %v1979
        %v5613 = vpop.permute.xlu0 %5612
        %5615 = vset.pattern.permute.xlu0 3
        %5616 = vperm.xlu0 %5615, %v1980
        %v5617 = vpop.permute.xlu0 %5616
        %5619 = vset.pattern.permute.xlu0 3
        %5620 = vperm.xlu0 %5619, %v1981
        %v5621 = vpop.permute.xlu0 %5620
        %5623 = vset.pattern.permute.xlu0 3
        %5624 = vperm.xlu0 %5623, %v1982
        %v5625 = vpop.permute.xlu0 %5624
        %5627 = vset.pattern.permute.xlu0 3
        %5628 = vperm.xlu0 %5627, %v1983
        %v5629 = vpop.permute.xlu0 %5628
        %5631 = vset.pattern.permute.xlu0 3
        %5632 = vperm.xlu0 %5631, %v1984
        %v5633 = vpop.permute.xlu0 %5632
        %5635 = vset.pattern.permute.xlu0 3
        %5636 = vperm.xlu0 %5635, %v1985
        %v5637 = vpop.permute.xlu0 %5636
        %5639 = vset.pattern.permute.xlu0 3
        %5640 = vperm.xlu0 %5639, %v1986
        %v5641 = vpop.permute.xlu0 %5640
        %5643 = vset.pattern.permute.xlu0 3
        %5644 = vperm.xlu0 %5643, %v1987
        %v5645 = vpop.permute.xlu0 %5644
        %5647 = vset.pattern.permute.xlu0 3
        %5648 = vperm.xlu0 %5647, %v1988
        %v5649 = vpop.permute.xlu0 %5648
        %5651 = vset.pattern.permute.xlu0 3
        %5652 = vperm.xlu0 %5651, %v1989
        %v5653 = vpop.permute.xlu0 %5652
        %5655 = vset.pattern.permute.xlu0 3
        %5656 = vperm.xlu0 %5655, %v1990
        %v5657 = vpop.permute.xlu0 %5656
        %5659 = vset.pattern.permute.xlu0 3
        %5660 = vperm.xlu0 %5659, %v1991
        %v5661 = vpop.permute.xlu0 %5660
        %5663 = vset.pattern.permute.xlu0 3
        %5664 = vperm.xlu0 %5663, %v1992
        %v5665 = vpop.permute.xlu0 %5664
        %5667 = vset.pattern.permute.xlu0 3
        %5668 = vperm.xlu0 %5667, %v1993
        %v5669 = vpop.permute.xlu0 %5668
        %5671 = vset.pattern.permute.xlu0 3
        %5672 = vperm.xlu0 %5671, %v1994
        %v5673 = vpop.permute.xlu0 %5672
        %5675 = vset.pattern.permute.xlu0 3
        %5676 = vperm.xlu0 %5675, %v1995
        %v5677 = vpop.permute.xlu0 %5676
        %5679 = vset.pattern.permute.xlu0 3
        %5680 = vperm.xlu0 %5679, %v1996
        %v5681 = vpop.permute.xlu0 %5680
        %5683 = vset.pattern.permute.xlu0 3
        %5684 = vperm.xlu0 %5683, %v1997
        %v5685 = vpop.permute.xlu0 %5684
        %5687 = vset.pattern.permute.xlu0 3
        %5688 = vperm.xlu0 %5687, %v1998
        %v5689 = vpop.permute.xlu0 %5688
        %5691 = vset.pattern.permute.xlu0 3
        %5692 = vperm.xlu0 %5691, %v1999
        %v5693 = vpop.permute.xlu0 %5692
        %5695 = vset.pattern.permute.xlu0 3
        %5696 = vperm.xlu0 %5695, %v2000
        %v5697 = vpop.permute.xlu0 %5696
        %5699 = vset.pattern.permute.xlu0 3
        %5700 = vperm.xlu0 %5699, %v2001
        %v5701 = vpop.permute.xlu0 %5700
        %5703 = vset.pattern.permute.xlu0 3
        %5704 = vperm.xlu0 %5703, %v2002
        %v5705 = vpop.permute.xlu0 %5704
        %5707 = vset.pattern.permute.xlu0 3
        %5708 = vperm.xlu0 %5707, %v2003
        %v5709 = vpop.permute.xlu0 %5708
        %5711 = vset.pattern.permute.xlu0 3
        %5712 = vperm.xlu0 %5711, %v2004
        %v5713 = vpop.permute.xlu0 %5712
        %v5715 = vmul.f32 %v5589, %v5523
        %v5716 = vmul.f32 %v5593, %v5524
        %v5717 = vmul.f32 %v5597, %v5525
        %v5718 = vmul.f32 %v5601, %v5526
        %v5719 = vmul.f32 %v5605, %v5527
        %v5720 = vmul.f32 %v5609, %v5528
        %v5721 = vmul.f32 %v5613, %v5529
        %v5722 = vmul.f32 %v5617, %v5530
        %v5723 = vmul.f32 %v5621, %v5531
        %v5724 = vmul.f32 %v5625, %v5532
        %v5725 = vmul.f32 %v5629, %v5533
        %v5726 = vmul.f32 %v5633, %v5534
        %v5727 = vmul.f32 %v5637, %v5535
        %v5728 = vmul.f32 %v5641, %v5536
        %v5729 = vmul.f32 %v5645, %v5537
        %v5730 = vmul.f32 %v5649, %v5538
        %v5731 = vmul.f32 %v5653, %v5539
        %v5732 = vmul.f32 %v5657, %v5540
        %v5733 = vmul.f32 %v5661, %v5541
        %v5734 = vmul.f32 %v5665, %v5542
        %v5735 = vmul.f32 %v5669, %v5543
        %v5736 = vmul.f32 %v5673, %v5544
        %v5737 = vmul.f32 %v5677, %v5545
        %v5738 = vmul.f32 %v5681, %v5546
        %v5739 = vmul.f32 %v5685, %v5547
        %v5740 = vmul.f32 %v5689, %v5548
        %v5741 = vmul.f32 %v5693, %v5549
        %v5742 = vmul.f32 %v5697, %v5550
        %v5743 = vmul.f32 %v5701, %v5551
        %v5744 = vmul.f32 %v5705, %v5552
        %v5745 = vmul.f32 %v5709, %v5553
        %v5746 = vmul.f32 %v5713, %v5554
        %v5747 = vadd.f32 %v5555, %v5715
        %v5748 = vadd.f32 %v5556, %v5716
        %v5749 = vadd.f32 %v5557, %v5717
        %v5750 = vadd.f32 %v5558, %v5718
        %v5751 = vadd.f32 %v5559, %v5719
        %v5752 = vadd.f32 %v5560, %v5720
        %v5753 = vadd.f32 %v5561, %v5721
        %v5754 = vadd.f32 %v5562, %v5722
        %v5755 = vadd.f32 %v5563, %v5723
        %v5756 = vadd.f32 %v5564, %v5724
        %v5757 = vadd.f32 %v5565, %v5725
        %v5758 = vadd.f32 %v5566, %v5726
        %v5759 = vadd.f32 %v5567, %v5727
        %v5760 = vadd.f32 %v5568, %v5728
        %v5761 = vadd.f32 %v5569, %v5729
        %v5762 = vadd.f32 %v5570, %v5730
        %v5763 = vadd.f32 %v5571, %v5731
        %v5764 = vadd.f32 %v5572, %v5732
        %v5765 = vadd.f32 %v5573, %v5733
        %v5766 = vadd.f32 %v5574, %v5734
        %v5767 = vadd.f32 %v5575, %v5735
        %v5768 = vadd.f32 %v5576, %v5736
        %v5769 = vadd.f32 %v5577, %v5737
        %v5770 = vadd.f32 %v5578, %v5738
        %v5771 = vadd.f32 %v5579, %v5739
        %v5772 = vadd.f32 %v5580, %v5740
        %v5773 = vadd.f32 %v5581, %v5741
        %v5774 = vadd.f32 %v5582, %v5742
        %v5775 = vadd.f32 %v5583, %v5743
        %v5776 = vadd.f32 %v5584, %v5744
        %v5777 = vadd.f32 %v5585, %v5745
        %v5778 = vadd.f32 %v5586, %v5746
        %5779 = vst.msk [vmem:[#allocation2] sm:$0xff] %vm3036, %v5747
        %5780 = vst.msk [vmem:[#allocation2 + $0x8] sm:$0xff] %vm3036, %v5748
        %5781 = vst.msk [vmem:[#allocation2 + $0x10] sm:$0xff] %vm3036, %v5749
        %5782 = vst.msk [vmem:[#allocation2 + $0x18] sm:$0xff] %vm3036, %v5750
        %5783 = vst.msk [vmem:[#allocation2 + $0x20] sm:$0xff] %vm3036, %v5751
        %5784 = vst.msk [vmem:[#allocation2 + $0x28] sm:$0xff] %vm3036, %v5752
        %5785 = vst.msk [vmem:[#allocation2 + $0x30] sm:$0xff] %vm3036, %v5753
        %5786 = vst.msk [vmem:[#allocation2 + $0x38] sm:$0xff] %vm3036, %v5754
        %5787 = vst.msk [vmem:[#allocation2 + $0x40] sm:$0xff] %vm3036, %v5755
        %5788 = vst.msk [vmem:[#allocation2 + $0x48] sm:$0xff] %vm3036, %v5756
        %5789 = vst.msk [vmem:[#allocation2 + $0x50] sm:$0xff] %vm3036, %v5757
        %5790 = vst.msk [vmem:[#allocation2 + $0x58] sm:$0xff] %vm3036, %v5758
        %5791 = vst.msk [vmem:[#allocation2 + $0x60] sm:$0xff] %vm3036, %v5759
        %5792 = vst.msk [vmem:[#allocation2 + $0x68] sm:$0xff] %vm3036, %v5760
        %5793 = vst.msk [vmem:[#allocation2 + $0x70] sm:$0xff] %vm3036, %v5761
        %5794 = vst.msk [vmem:[#allocation2 + $0x78] sm:$0xff] %vm3036, %v5762
        %5795 = vst.msk [vmem:[#allocation2 + $0x80] sm:$0xff] %vm3036, %v5763
        %5796 = vst.msk [vmem:[#allocation2 + $0x88] sm:$0xff] %vm3036, %v5764
        %5797 = vst.msk [vmem:[#allocation2 + $0x90] sm:$0xff] %vm3036, %v5765
        %5798 = vst.msk [vmem:[#allocation2 + $0x98] sm:$0xff] %vm3036, %v5766
        %5799 = vst.msk [vmem:[#allocation2 + $0xa0] sm:$0xff] %vm3036, %v5767
        %5800 = vst.msk [vmem:[#allocation2 + $0xa8] sm:$0xff] %vm3036, %v5768
        %5801 = vst.msk [vmem:[#allocation2 + $0xb0] sm:$0xff] %vm3036, %v5769
        %5802 = vst.msk [vmem:[#allocation2 + $0xb8] sm:$0xff] %vm3036, %v5770
        %5803 = vst.msk [vmem:[#allocation2 + $0xc0] sm:$0xff] %vm3036, %v5771
        %5804 = vst.msk [vmem:[#allocation2 + $0xc8] sm:$0xff] %vm3036, %v5772
        %5805 = vst.msk [vmem:[#allocation2 + $0xd0] sm:$0xff] %vm3036, %v5773
        %5806 = vst.msk [vmem:[#allocation2 + $0xd8] sm:$0xff] %vm3036, %v5774
        %5807 = vst.msk [vmem:[#allocation2 + $0xe0] sm:$0xff] %vm3036, %v5775
        %5808 = vst.msk [vmem:[#allocation2 + $0xe8] sm:$0xff] %vm3036, %v5776
        %5809 = vst.msk [vmem:[#allocation2 + $0xf0] sm:$0xff] %vm3036, %v5777
        %5810 = vst.msk [vmem:[#allocation2 + $0xf8] sm:$0xff] %vm3036, %v5778
        %v5811 = vld [vmem:[#allocation2] sm:$0xff]
        %v5812 = vld [vmem:[#allocation2 + $0x8] sm:$0xff]
        %v5813 = vld [vmem:[#allocation2 + $0x10] sm:$0xff]
        %v5814 = vld [vmem:[#allocation2 + $0x18] sm:$0xff]
        %v5815 = vld [vmem:[#allocation2 + $0x20] sm:$0xff]
        %v5816 = vld [vmem:[#allocation2 + $0x28] sm:$0xff]
        %v5817 = vld [vmem:[#allocation2 + $0x30] sm:$0xff]
        %v5818 = vld [vmem:[#allocation2 + $0x38] sm:$0xff]
        %v5819 = vld [vmem:[#allocation2 + $0x40] sm:$0xff]
        %v5820 = vld [vmem:[#allocation2 + $0x48] sm:$0xff]
        %v5821 = vld [vmem:[#allocation2 + $0x50] sm:$0xff]
        %v5822 = vld [vmem:[#allocation2 + $0x58] sm:$0xff]
        %v5823 = vld [vmem:[#allocation2 + $0x60] sm:$0xff]
        %v5824 = vld [vmem:[#allocation2 + $0x68] sm:$0xff]
        %v5825 = vld [vmem:[#allocation2 + $0x70] sm:$0xff]
        %v5826 = vld [vmem:[#allocation2 + $0x78] sm:$0xff]
        %v5827 = vld [vmem:[#allocation2 + $0x80] sm:$0xff]
        %v5828 = vld [vmem:[#allocation2 + $0x88] sm:$0xff]
        %v5829 = vld [vmem:[#allocation2 + $0x90] sm:$0xff]
        %v5830 = vld [vmem:[#allocation2 + $0x98] sm:$0xff]
        %v5831 = vld [vmem:[#allocation2 + $0xa0] sm:$0xff]
        %v5832 = vld [vmem:[#allocation2 + $0xa8] sm:$0xff]
        %v5833 = vld [vmem:[#allocation2 + $0xb0] sm:$0xff]
        %v5834 = vld [vmem:[#allocation2 + $0xb8] sm:$0xff]
        %v5835 = vld [vmem:[#allocation2 + $0xc0] sm:$0xff]
        %v5836 = vld [vmem:[#allocation2 + $0xc8] sm:$0xff]
        %v5837 = vld [vmem:[#allocation2 + $0xd0] sm:$0xff]
        %v5838 = vld [vmem:[#allocation2 + $0xd8] sm:$0xff]
        %v5839 = vld [vmem:[#allocation2 + $0xe0] sm:$0xff]
        %v5840 = vld [vmem:[#allocation2 + $0xe8] sm:$0xff]
        %v5841 = vld [vmem:[#allocation2 + $0xf0] sm:$0xff]
        %v5842 = vld [vmem:[#allocation2 + $0xf8] sm:$0xff]
        %5843 = vset.pattern.permute.xlu0 7
        %5844 = vperm.xlu0 %5843, %v2454
        %v5845 = vpop.permute.xlu0 %5844
        %5847 = vset.pattern.permute.xlu0 7
        %5848 = vperm.xlu0 %5847, %v2455
        %v5849 = vpop.permute.xlu0 %5848
        %5851 = vset.pattern.permute.xlu0 7
        %5852 = vperm.xlu0 %5851, %v2456
        %v5853 = vpop.permute.xlu0 %5852
        %5855 = vset.pattern.permute.xlu0 7
        %5856 = vperm.xlu0 %5855, %v2457
        %v5857 = vpop.permute.xlu0 %5856
        %5859 = vset.pattern.permute.xlu0 7
        %5860 = vperm.xlu0 %5859, %v2458
        %v5861 = vpop.permute.xlu0 %5860
        %5863 = vset.pattern.permute.xlu0 7
        %5864 = vperm.xlu0 %5863, %v2459
        %v5865 = vpop.permute.xlu0 %5864
        %5867 = vset.pattern.permute.xlu0 7
        %5868 = vperm.xlu0 %5867, %v2460
        %v5869 = vpop.permute.xlu0 %5868
        %5871 = vset.pattern.permute.xlu0 7
        %5872 = vperm.xlu0 %5871, %v2461
        %v5873 = vpop.permute.xlu0 %5872
        %5875 = vset.pattern.permute.xlu0 7
        %5876 = vperm.xlu0 %5875, %v2462
        %v5877 = vpop.permute.xlu0 %5876
        %5879 = vset.pattern.permute.xlu0 7
        %5880 = vperm.xlu0 %5879, %v2463
        %v5881 = vpop.permute.xlu0 %5880
        %5883 = vset.pattern.permute.xlu0 7
        %5884 = vperm.xlu0 %5883, %v2464
        %v5885 = vpop.permute.xlu0 %5884
        %5887 = vset.pattern.permute.xlu0 7
        %5888 = vperm.xlu0 %5887, %v2465
        %v5889 = vpop.permute.xlu0 %5888
        %5891 = vset.pattern.permute.xlu0 7
        %5892 = vperm.xlu0 %5891, %v2466
        %v5893 = vpop.permute.xlu0 %5892
        %5895 = vset.pattern.permute.xlu0 7
        %5896 = vperm.xlu0 %5895, %v2467
        %v5897 = vpop.permute.xlu0 %5896
        %5899 = vset.pattern.permute.xlu0 7
        %5900 = vperm.xlu0 %5899, %v2468
        %v5901 = vpop.permute.xlu0 %5900
        %5903 = vset.pattern.permute.xlu0 7
        %5904 = vperm.xlu0 %5903, %v2469
        %v5905 = vpop.permute.xlu0 %5904
        %5907 = vset.pattern.permute.xlu0 7
        %5908 = vperm.xlu0 %5907, %v2470
        %v5909 = vpop.permute.xlu0 %5908
        %5911 = vset.pattern.permute.xlu0 7
        %5912 = vperm.xlu0 %5911, %v2471
        %v5913 = vpop.permute.xlu0 %5912
        %5915 = vset.pattern.permute.xlu0 7
        %5916 = vperm.xlu0 %5915, %v2472
        %v5917 = vpop.permute.xlu0 %5916
        %5919 = vset.pattern.permute.xlu0 7
        %5920 = vperm.xlu0 %5919, %v2473
        %v5921 = vpop.permute.xlu0 %5920
        %5923 = vset.pattern.permute.xlu0 7
        %5924 = vperm.xlu0 %5923, %v2474
        %v5925 = vpop.permute.xlu0 %5924
        %5927 = vset.pattern.permute.xlu0 7
        %5928 = vperm.xlu0 %5927, %v2475
        %v5929 = vpop.permute.xlu0 %5928
        %5931 = vset.pattern.permute.xlu0 7
        %5932 = vperm.xlu0 %5931, %v2476
        %v5933 = vpop.permute.xlu0 %5932
        %5935 = vset.pattern.permute.xlu0 7
        %5936 = vperm.xlu0 %5935, %v2477
        %v5937 = vpop.permute.xlu0 %5936
        %5939 = vset.pattern.permute.xlu0 7
        %5940 = vperm.xlu0 %5939, %v2478
        %v5941 = vpop.permute.xlu0 %5940
        %5943 = vset.pattern.permute.xlu0 7
        %5944 = vperm.xlu0 %5943, %v2479
        %v5945 = vpop.permute.xlu0 %5944
        %5947 = vset.pattern.permute.xlu0 7
        %5948 = vperm.xlu0 %5947, %v2480
        %v5949 = vpop.permute.xlu0 %5948
        %5951 = vset.pattern.permute.xlu0 7
        %5952 = vperm.xlu0 %5951, %v2481
        %v5953 = vpop.permute.xlu0 %5952
        %5955 = vset.pattern.permute.xlu0 7
        %5956 = vperm.xlu0 %5955, %v2482
        %v5957 = vpop.permute.xlu0 %5956
        %5959 = vset.pattern.permute.xlu0 7
        %5960 = vperm.xlu0 %5959, %v2483
        %v5961 = vpop.permute.xlu0 %5960
        %5963 = vset.pattern.permute.xlu0 7
        %5964 = vperm.xlu0 %5963, %v2484
        %v5965 = vpop.permute.xlu0 %5964
        %5967 = vset.pattern.permute.xlu0 7
        %5968 = vperm.xlu0 %5967, %v2485
        %v5969 = vpop.permute.xlu0 %5968
        %v5971 = vmul.f32 %v5845, %v5523
        %v5972 = vmul.f32 %v5849, %v5524
        %v5973 = vmul.f32 %v5853, %v5525
        %v5974 = vmul.f32 %v5857, %v5526
        %v5975 = vmul.f32 %v5861, %v5527
        %v5976 = vmul.f32 %v5865, %v5528
        %v5977 = vmul.f32 %v5869, %v5529
        %v5978 = vmul.f32 %v5873, %v5530
        %v5979 = vmul.f32 %v5877, %v5531
        %v5980 = vmul.f32 %v5881, %v5532
        %v5981 = vmul.f32 %v5885, %v5533
        %v5982 = vmul.f32 %v5889, %v5534
        %v5983 = vmul.f32 %v5893, %v5535
        %v5984 = vmul.f32 %v5897, %v5536
        %v5985 = vmul.f32 %v5901, %v5537
        %v5986 = vmul.f32 %v5905, %v5538
        %v5987 = vmul.f32 %v5909, %v5539
        %v5988 = vmul.f32 %v5913, %v5540
        %v5989 = vmul.f32 %v5917, %v5541
        %v5990 = vmul.f32 %v5921, %v5542
        %v5991 = vmul.f32 %v5925, %v5543
        %v5992 = vmul.f32 %v5929, %v5544
        %v5993 = vmul.f32 %v5933, %v5545
        %v5994 = vmul.f32 %v5937, %v5546
        %v5995 = vmul.f32 %v5941, %v5547
        %v5996 = vmul.f32 %v5945, %v5548
        %v5997 = vmul.f32 %v5949, %v5549
        %v5998 = vmul.f32 %v5953, %v5550
        %v5999 = vmul.f32 %v5957, %v5551
        %v6000 = vmul.f32 %v5961, %v5552
        %v6001 = vmul.f32 %v5965, %v5553
        %v6002 = vmul.f32 %v5969, %v5554
        %6035 = vrot.lane.b32.xlu0 %v5971, 64
        %v6036 = vpop.permute.xlu0 %6035
        %6037 = vrot.lane.b32.xlu0 %v5972, 64
        %v6038 = vpop.permute.xlu0 %6037
        %6039 = vrot.lane.b32.xlu0 %v5973, 64
        %v6040 = vpop.permute.xlu0 %6039
        %6041 = vrot.lane.b32.xlu0 %v5974, 64
        %v6042 = vpop.permute.xlu0 %6041
        %6043 = vrot.lane.b32.xlu0 %v5975, 64
        %v6044 = vpop.permute.xlu0 %6043
        %6045 = vrot.lane.b32.xlu0 %v5976, 64
        %v6046 = vpop.permute.xlu0 %6045
        %6047 = vrot.lane.b32.xlu0 %v5977, 64
        %v6048 = vpop.permute.xlu0 %6047
        %6049 = vrot.lane.b32.xlu0 %v5978, 64
        %v6050 = vpop.permute.xlu0 %6049
        %6051 = vrot.lane.b32.xlu0 %v5979, 64
        %v6052 = vpop.permute.xlu0 %6051
        %6053 = vrot.lane.b32.xlu0 %v5980, 64
        %v6054 = vpop.permute.xlu0 %6053
        %6055 = vrot.lane.b32.xlu0 %v5981, 64
        %v6056 = vpop.permute.xlu0 %6055
        %6057 = vrot.lane.b32.xlu0 %v5982, 64
        %v6058 = vpop.permute.xlu0 %6057
        %6059 = vrot.lane.b32.xlu0 %v5983, 64
        %v6060 = vpop.permute.xlu0 %6059
        %6061 = vrot.lane.b32.xlu0 %v5984, 64
        %v6062 = vpop.permute.xlu0 %6061
        %6063 = vrot.lane.b32.xlu0 %v5985, 64
        %v6064 = vpop.permute.xlu0 %6063
        %6065 = vrot.lane.b32.xlu0 %v5986, 64
        %v6066 = vpop.permute.xlu0 %6065
        %6067 = vrot.lane.b32.xlu0 %v5987, 64
        %v6068 = vpop.permute.xlu0 %6067
        %6069 = vrot.lane.b32.xlu0 %v5988, 64
        %v6070 = vpop.permute.xlu0 %6069
        %6071 = vrot.lane.b32.xlu0 %v5989, 64
        %v6072 = vpop.permute.xlu0 %6071
        %6073 = vrot.lane.b32.xlu0 %v5990, 64
        %v6074 = vpop.permute.xlu0 %6073
        %6075 = vrot.lane.b32.xlu0 %v5991, 64
        %v6076 = vpop.permute.xlu0 %6075
        %6077 = vrot.lane.b32.xlu0 %v5992, 64
        %v6078 = vpop.permute.xlu0 %6077
        %6079 = vrot.lane.b32.xlu0 %v5993, 64
        %v6080 = vpop.permute.xlu0 %6079
        %6081 = vrot.lane.b32.xlu0 %v5994, 64
        %v6082 = vpop.permute.xlu0 %6081
        %6083 = vrot.lane.b32.xlu0 %v5995, 64
        %v6084 = vpop.permute.xlu0 %6083
        %6085 = vrot.lane.b32.xlu0 %v5996, 64
        %v6086 = vpop.permute.xlu0 %6085
        %6087 = vrot.lane.b32.xlu0 %v5997, 64
        %v6088 = vpop.permute.xlu0 %6087
        %6089 = vrot.lane.b32.xlu0 %v5998, 64
        %v6090 = vpop.permute.xlu0 %6089
        %6091 = vrot.lane.b32.xlu0 %v5999, 64
        %v6092 = vpop.permute.xlu0 %6091
        %6093 = vrot.lane.b32.xlu0 %v6000, 64
        %v6094 = vpop.permute.xlu0 %6093
        %6095 = vrot.lane.b32.xlu0 %v6001, 64
        %v6096 = vpop.permute.xlu0 %6095
        %6097 = vrot.lane.b32.xlu0 %v6002, 64
        %v6098 = vpop.permute.xlu0 %6097
        %v6131 = vadd.f32 %v5811, %v6036
        %v6132 = vadd.f32 %v5812, %v6038
        %v6133 = vadd.f32 %v5813, %v6040
        %v6134 = vadd.f32 %v5814, %v6042
        %v6135 = vadd.f32 %v5815, %v6044
        %v6136 = vadd.f32 %v5816, %v6046
        %v6137 = vadd.f32 %v5817, %v6048
        %v6138 = vadd.f32 %v5818, %v6050
        %v6139 = vadd.f32 %v5819, %v6052
        %v6140 = vadd.f32 %v5820, %v6054
        %v6141 = vadd.f32 %v5821, %v6056
        %v6142 = vadd.f32 %v5822, %v6058
        %v6143 = vadd.f32 %v5823, %v6060
        %v6144 = vadd.f32 %v5824, %v6062
        %v6145 = vadd.f32 %v5825, %v6064
        %v6146 = vadd.f32 %v5826, %v6066
        %v6147 = vadd.f32 %v5827, %v6068
        %v6148 = vadd.f32 %v5828, %v6070
        %v6149 = vadd.f32 %v5829, %v6072
        %v6150 = vadd.f32 %v5830, %v6074
        %v6151 = vadd.f32 %v5831, %v6076
        %v6152 = vadd.f32 %v5832, %v6078
        %v6153 = vadd.f32 %v5833, %v6080
        %v6154 = vadd.f32 %v5834, %v6082
        %v6155 = vadd.f32 %v5835, %v6084
        %v6156 = vadd.f32 %v5836, %v6086
        %v6157 = vadd.f32 %v5837, %v6088
        %v6158 = vadd.f32 %v5838, %v6090
        %v6159 = vadd.f32 %v5839, %v6092
        %v6160 = vadd.f32 %v5840, %v6094
        %v6161 = vadd.f32 %v5841, %v6096
        %v6162 = vadd.f32 %v5842, %v6098
        %6163 = vst.msk [vmem:[#allocation2] sm:$0xff] %vm3453, %v6131
        %6164 = vst.msk [vmem:[#allocation2 + $0x8] sm:$0xff] %vm3453, %v6132
        %6165 = vst.msk [vmem:[#allocation2 + $0x10] sm:$0xff] %vm3453, %v6133
        %6166 = vst.msk [vmem:[#allocation2 + $0x18] sm:$0xff] %vm3453, %v6134
        %6167 = vst.msk [vmem:[#allocation2 + $0x20] sm:$0xff] %vm3453, %v6135
        %6168 = vst.msk [vmem:[#allocation2 + $0x28] sm:$0xff] %vm3453, %v6136
        %6169 = vst.msk [vmem:[#allocation2 + $0x30] sm:$0xff] %vm3453, %v6137
        %6170 = vst.msk [vmem:[#allocation2 + $0x38] sm:$0xff] %vm3453, %v6138
        %6171 = vst.msk [vmem:[#allocation2 + $0x40] sm:$0xff] %vm3453, %v6139
        %6172 = vst.msk [vmem:[#allocation2 + $0x48] sm:$0xff] %vm3453, %v6140
        %6173 = vst.msk [vmem:[#allocation2 + $0x50] sm:$0xff] %vm3453, %v6141
        %6174 = vst.msk [vmem:[#allocation2 + $0x58] sm:$0xff] %vm3453, %v6142
        %6175 = vst.msk [vmem:[#allocation2 + $0x60] sm:$0xff] %vm3453, %v6143
        %6176 = vst.msk [vmem:[#allocation2 + $0x68] sm:$0xff] %vm3453, %v6144
        %6177 = vst.msk [vmem:[#allocation2 + $0x70] sm:$0xff] %vm3453, %v6145
        %6178 = vst.msk [vmem:[#allocation2 + $0x78] sm:$0xff] %vm3453, %v6146
        %6179 = vst.msk [vmem:[#allocation2 + $0x80] sm:$0xff] %vm3453, %v6147
        %6180 = vst.msk [vmem:[#allocation2 + $0x88] sm:$0xff] %vm3453, %v6148
        %6181 = vst.msk [vmem:[#allocation2 + $0x90] sm:$0xff] %vm3453, %v6149
        %6182 = vst.msk [vmem:[#allocation2 + $0x98] sm:$0xff] %vm3453, %v6150
        %6183 = vst.msk [vmem:[#allocation2 + $0xa0] sm:$0xff] %vm3453, %v6151
        %6184 = vst.msk [vmem:[#allocation2 + $0xa8] sm:$0xff] %vm3453, %v6152
        %6185 = vst.msk [vmem:[#allocation2 + $0xb0] sm:$0xff] %vm3453, %v6153
        %6186 = vst.msk [vmem:[#allocation2 + $0xb8] sm:$0xff] %vm3453, %v6154
        %6187 = vst.msk [vmem:[#allocation2 + $0xc0] sm:$0xff] %vm3453, %v6155
        %6188 = vst.msk [vmem:[#allocation2 + $0xc8] sm:$0xff] %vm3453, %v6156
        %6189 = vst.msk [vmem:[#allocation2 + $0xd0] sm:$0xff] %vm3453, %v6157
        %6190 = vst.msk [vmem:[#allocation2 + $0xd8] sm:$0xff] %vm3453, %v6158
        %6191 = vst.msk [vmem:[#allocation2 + $0xe0] sm:$0xff] %vm3453, %v6159
        %6192 = vst.msk [vmem:[#allocation2 + $0xe8] sm:$0xff] %vm3453, %v6160
        %6193 = vst.msk [vmem:[#allocation2 + $0xf0] sm:$0xff] %vm3453, %v6161
        %6194 = vst.msk [vmem:[#allocation2 + $0xf8] sm:$0xff] %vm3453, %v6162
        %v6195 = vld [vmem:[#allocation2] sm:$0xff]
        %v6196 = vld [vmem:[#allocation2 + $0x8] sm:$0xff]
        %v6197 = vld [vmem:[#allocation2 + $0x10] sm:$0xff]
        %v6198 = vld [vmem:[#allocation2 + $0x18] sm:$0xff]
        %v6199 = vld [vmem:[#allocation2 + $0x20] sm:$0xff]
        %v6200 = vld [vmem:[#allocation2 + $0x28] sm:$0xff]
        %v6201 = vld [vmem:[#allocation2 + $0x30] sm:$0xff]
        %v6202 = vld [vmem:[#allocation2 + $0x38] sm:$0xff]
        %v6203 = vld [vmem:[#allocation2 + $0x40] sm:$0xff]
        %v6204 = vld [vmem:[#allocation2 + $0x48] sm:$0xff]
        %v6205 = vld [vmem:[#allocation2 + $0x50] sm:$0xff]
        %v6206 = vld [vmem:[#allocation2 + $0x58] sm:$0xff]
        %v6207 = vld [vmem:[#allocation2 + $0x60] sm:$0xff]
        %v6208 = vld [vmem:[#allocation2 + $0x68] sm:$0xff]
        %v6209 = vld [vmem:[#allocation2 + $0x70] sm:$0xff]
        %v6210 = vld [vmem:[#allocation2 + $0x78] sm:$0xff]
        %v6211 = vld [vmem:[#allocation2 + $0x80] sm:$0xff]
        %v6212 = vld [vmem:[#allocation2 + $0x88] sm:$0xff]
        %v6213 = vld [vmem:[#allocation2 + $0x90] sm:$0xff]
        %v6214 = vld [vmem:[#allocation2 + $0x98] sm:$0xff]
        %v6215 = vld [vmem:[#allocation2 + $0xa0] sm:$0xff]
        %v6216 = vld [vmem:[#allocation2 + $0xa8] sm:$0xff]
        %v6217 = vld [vmem:[#allocation2 + $0xb0] sm:$0xff]
        %v6218 = vld [vmem:[#allocation2 + $0xb8] sm:$0xff]
        %v6219 = vld [vmem:[#allocation2 + $0xc0] sm:$0xff]
        %v6220 = vld [vmem:[#allocation2 + $0xc8] sm:$0xff]
        %v6221 = vld [vmem:[#allocation2 + $0xd0] sm:$0xff]
        %v6222 = vld [vmem:[#allocation2 + $0xd8] sm:$0xff]
        %v6223 = vld [vmem:[#allocation2 + $0xe0] sm:$0xff]
        %v6224 = vld [vmem:[#allocation2 + $0xe8] sm:$0xff]
        %v6225 = vld [vmem:[#allocation2 + $0xf0] sm:$0xff]
        %v6226 = vld [vmem:[#allocation2 + $0xf8] sm:$0xff]
        %v6227 = vpack.c.bf16 %v6196, %v6195
        %v6228 = vpack.c.bf16 %v6198, %v6197
        %v6229 = vpack.c.bf16 %v6200, %v6199
        %v6230 = vpack.c.bf16 %v6202, %v6201
        %v6231 = vpack.c.bf16 %v6204, %v6203
        %v6232 = vpack.c.bf16 %v6206, %v6205
        %v6233 = vpack.c.bf16 %v6208, %v6207
        %v6234 = vpack.c.bf16 %v6210, %v6209
        %v6235 = vpack.c.bf16 %v6212, %v6211
        %v6236 = vpack.c.bf16 %v6214, %v6213
        %v6237 = vpack.c.bf16 %v6216, %v6215
        %v6238 = vpack.c.bf16 %v6218, %v6217
        %v6239 = vpack.c.bf16 %v6220, %v6219
        %v6240 = vpack.c.bf16 %v6222, %v6221
        %v6241 = vpack.c.bf16 %v6224, %v6223
        %v6242 = vpack.c.bf16 %v6226, %v6225
        %v6259 = vunpack.c.l.b16 %v6227
        %v6260 = vunpack.c.h.b16 %v6227
        %v6261 = vunpack.c.l.b16 %v6228
        %v6262 = vunpack.c.h.b16 %v6228
        %v6263 = vunpack.c.l.b16 %v6229
        %v6264 = vunpack.c.h.b16 %v6229
        %v6265 = vunpack.c.l.b16 %v6230
        %v6266 = vunpack.c.h.b16 %v6230
        %v6267 = vunpack.c.l.b16 %v6231
        %v6268 = vunpack.c.h.b16 %v6231
        %v6269 = vunpack.c.l.b16 %v6232
        %v6270 = vunpack.c.h.b16 %v6232
        %v6271 = vunpack.c.l.b16 %v6233
        %v6272 = vunpack.c.h.b16 %v6233
        %v6273 = vunpack.c.l.b16 %v6234
        %v6274 = vunpack.c.h.b16 %v6234
        %v6275 = vunpack.c.l.b16 %v6235
        %v6276 = vunpack.c.h.b16 %v6235
        %v6277 = vunpack.c.l.b16 %v6236
        %v6278 = vunpack.c.h.b16 %v6236
        %v6279 = vunpack.c.l.b16 %v6237
        %v6280 = vunpack.c.h.b16 %v6237
        %v6281 = vunpack.c.l.b16 %v6238
        %v6282 = vunpack.c.h.b16 %v6238
        %v6283 = vunpack.c.l.b16 %v6239
        %v6284 = vunpack.c.h.b16 %v6239
        %v6285 = vunpack.c.l.b16 %v6240
        %v6286 = vunpack.c.h.b16 %v6240
        %v6287 = vunpack.c.l.b16 %v6241
        %v6288 = vunpack.c.h.b16 %v6241
        %v6289 = vunpack.c.l.b16 %v6242
        %v6290 = vunpack.c.h.b16 %v6242
        %v6291 = vpack.c.b16 %v6259, %v6259
        %v6292 = vpack.c.b16 %v6260, %v6260
        %v6293 = vpack.c.b16 %v6261, %v6261
        %v6294 = vpack.c.b16 %v6262, %v6262
        %v6295 = vpack.c.b16 %v6263, %v6263
        %v6296 = vpack.c.b16 %v6264, %v6264
        %v6297 = vpack.c.b16 %v6265, %v6265
        %v6298 = vpack.c.b16 %v6266, %v6266
        %v6299 = vpack.c.b16 %v6267, %v6267
        %v6300 = vpack.c.b16 %v6268, %v6268
        %v6301 = vpack.c.b16 %v6269, %v6269
        %v6302 = vpack.c.b16 %v6270, %v6270
        %v6303 = vpack.c.b16 %v6271, %v6271
        %v6304 = vpack.c.b16 %v6272, %v6272
        %v6305 = vpack.c.b16 %v6273, %v6273
        %v6306 = vpack.c.b16 %v6274, %v6274
        %v6307 = vpack.c.b16 %v6275, %v6275
        %v6308 = vpack.c.b16 %v6276, %v6276
        %v6309 = vpack.c.b16 %v6277, %v6277
        %v6310 = vpack.c.b16 %v6278, %v6278
        %v6311 = vpack.c.b16 %v6279, %v6279
        %v6312 = vpack.c.b16 %v6280, %v6280
        %v6313 = vpack.c.b16 %v6281, %v6281
        %v6314 = vpack.c.b16 %v6282, %v6282
        %v6315 = vpack.c.b16 %v6283, %v6283
        %v6316 = vpack.c.b16 %v6284, %v6284
        %v6317 = vpack.c.b16 %v6285, %v6285
        %v6318 = vpack.c.b16 %v6286, %v6286
        %v6319 = vpack.c.b16 %v6287, %v6287
        %v6320 = vpack.c.b16 %v6288, %v6288
        %v6321 = vpack.c.b16 %v6289, %v6289
        %v6322 = vpack.c.b16 %v6290, %v6290
        %6355 = vst [vmem:[%s299] sm:$0xf] %v6291
        %6356 = vst [vmem:[%s299 + $0x4] sm:$0xf] %v6292
        %6357 = vst [vmem:[%s299 + $0x8] sm:$0xf] %v6293
        %6358 = vst [vmem:[%s299 + $0xc] sm:$0xf] %v6294
        %6359 = vst [vmem:[%s299 + $0x10] sm:$0xf] %v6295
        %6360 = vst [vmem:[%s299 + $0x14] sm:$0xf] %v6296
        %6361 = vst [vmem:[%s299 + $0x18] sm:$0xf] %v6297
        %6362 = vst [vmem:[%s299 + $0x1c] sm:$0xf] %v6298
        %6363 = vst [vmem:[%s299 + $0x20] sm:$0xf] %v6299
        %6364 = vst [vmem:[%s299 + $0x24] sm:$0xf] %v6300
        %6365 = vst [vmem:[%s299 + $0x28] sm:$0xf] %v6301
        %6366 = vst [vmem:[%s299 + $0x2c] sm:$0xf] %v6302
        %6367 = vst [vmem:[%s299 + $0x30] sm:$0xf] %v6303
        %6368 = vst [vmem:[%s299 + $0x34] sm:$0xf] %v6304
        %6369 = vst [vmem:[%s299 + $0x38] sm:$0xf] %v6305
        %6370 = vst [vmem:[%s299 + $0x3c] sm:$0xf] %v6306
        %6371 = vst [vmem:[%s299 + $0x40] sm:$0xf] %v6307
        %6372 = vst [vmem:[%s299 + $0x44] sm:$0xf] %v6308
        %6373 = vst [vmem:[%s299 + $0x48] sm:$0xf] %v6309
        %6374 = vst [vmem:[%s299 + $0x4c] sm:$0xf] %v6310
        %6375 = vst [vmem:[%s299 + $0x50] sm:$0xf] %v6311
        %6376 = vst [vmem:[%s299 + $0x54] sm:$0xf] %v6312
        %6377 = vst [vmem:[%s299 + $0x58] sm:$0xf] %v6313
        %6378 = vst [vmem:[%s299 + $0x5c] sm:$0xf] %v6314
        %6379 = vst [vmem:[%s299 + $0x60] sm:$0xf] %v6315
        %6380 = vst [vmem:[%s299 + $0x64] sm:$0xf] %v6316
        %6381 = vst [vmem:[%s299 + $0x68] sm:$0xf] %v6317
        %6382 = vst [vmem:[%s299 + $0x6c] sm:$0xf] %v6318
        %6383 = vst [vmem:[%s299 + $0x70] sm:$0xf] %v6319
        %6384 = vst [vmem:[%s299 + $0x74] sm:$0xf] %v6320
        %6385 = vst [vmem:[%s299 + $0x78] sm:$0xf] %v6321
        %6386 = vst [vmem:[%s299 + $0x7c] sm:$0xf] %v6322
        %s6387 = smul.u32 32, %s21
        %p6388 = scmp.lt.s32.totalorder %s6387, 63
        %s6389 = scalar_select %p6388, %s6387, 63
        %s6390 = smul.addr %s6389, 4
        %s6391 = scalar_lea.vmem %s7, %s6390
        // Predicated region
        $region53: #{_lambda_.1} parent=47 // pred_check
          %p6392 = pneg %p191
        $region54: #{_lambda_.1} parent=47 // pred_check_branch
          %6394 = sbr.rel (%p6392) target = $region56
        $region55: #{_lambda_.1} parent=47 // pred_region
          %s6395 = smul.u32 32, %s21
        $region56: #{_lambda_.1} parent=47 // pred_fallthru
          _
      $region48: #{_lambda_.1} parent=5 // pred_fallthru
        _
      %p6396 = scmp.le.s32.totalorder 2, %s16
      // Predicated region
      $region57: #{_lambda_.1} parent=5 // pred_check
        %p6397 = pneg %p6396
      $region58: #{_lambda_.1} parent=5 // pred_check_branch
        %6399 = sbr.rel (%p6397) target = $region60
      $region59: #{_lambda_.1} parent=5 // pred_region
        %s6400 = ssub.s32 %s16, 2
        // Predicated region
        $region61: #{_lambda_.1} parent=59 // pred_check
          %p6401 = pneg %p197
        $region62: #{_lambda_.1} parent=59 // pred_check_branch
          %6403 = sbr.rel (%p6401) target = $region64
        $region63: #{_lambda_.1} parent=59 // pred_region
          %s6404 = smul.u32 32, %s22
          %p6405 = scmp.lt.s32.totalorder %s6404, 63
          %s6406 = scalar_select %p6405, %s6404, 63
          %s6407 = smul.addr %s6406, 4
          %s6408 = scalar_lea.vmem %s7, %s6407
        $region64: #{_lambda_.1} parent=59 // pred_fallthru
          _
      $region60: #{_lambda_.1} parent=5 // pred_fallthru
        _
    $region6: #{_lambda_.1} parent=1 // loop_footer
      %s20 = sadd.s32 1, %s16
    $region7: #{_lambda_.1} parent=1 // loop_footer_branch
      %15 = sbr.rel target = $region3
    $region8: #{_lambda_.1} parent=1 // loop_exit
      _
    %6409 = vsyncpa [#allocation4], 1
    %s6410 = scalar_lea.sflag [#allocation4], 1
    %6411 = vsyncpa %s6410, 1

</llo_original>
